<compile_context>
chip_gen: v6e
topology: v6e:2x2x1
jax: 0.10.0
libtpu: 0.0.40
codegen_flags: <defaults>
</compile_context>

<pallas_src>
import jax
import jax.numpy as jnp
import numpy as np
from jax import lax
from jax.experimental import pallas as pl
from jax.experimental.pallas import tpu as pltpu

SLOPE = 0.05  # LeakyReLU negative slope used throughout the module


def _leaky(v):
    return jnp.where(v >= 0, v, SLOPE * v)


# --------------------------------------------------------------------------
# Kernel factory (closure over static shape constants)
# --------------------------------------------------------------------------
def _make_kernel(N, D, H1, H2, O_pad, TI):
    f32 = jnp.float32
    dn = (((1,), (1,)), ((), ()))     # contract the minor dim of both operands

    def kernel(x_ref, adj_ref,
               w1a_ref, w1bt_ref, w1ct_ref, rjkc_ref, b1c_ref,
               rij_ref, rik_ref,
               w2a_ref, w2b_ref, r2d_ref, w2m_ref, b2_ref,
               w3a_ref, w3b_ref, b3_ref,
               o_ref,
               degr_scr, n2r_scr, termj_scr,
               xa_scr, xw2a_scr, xw3a_scr, axw2b_scr):
        i_blk = pl.program_id(1)

        # ---- per-batch stage: j-indexed maps cached in VMEM scratch -------
        @pl.when(i_blk == 0)
        def _():
            x_all = x_ref[0]                                   # (N, D)
            adj = adj_ref[0]                                   # (N, N)
            ones_n = jnp.ones((1, N), f32)
            deg_r = lax.dot_general(ones_n, adj, dn,
                                    preferred_element_type=f32)            # (1, N)
            xsq = x_all * x_all
            n2_r = lax.dot_general(jnp.ones((1, D), f32), xsq, dn,
                                   preferred_element_type=f32)             # (1, N)
            n2_c = jnp.sum(xsq, axis=1, keepdims=True)                     # (N, 1)
            gram = lax.dot_general(x_all, x_all, dn,
                                   preferred_element_type=f32)             # (N, N)
            dis = jnp.sqrt(jnp.maximum(n2_c + n2_r - 2.0 * gram, 0.0) + 1e-10)
            wd_r = lax.dot_general(ones_n, adj * dis, dn,
                                   preferred_element_type=f32)             # (1, N)
            adjx = jnp.dot(adj, x_all, preferred_element_type=f32)         # (N, D)
            tj_b = lax.dot_general(w1bt_ref[...], x_all, dn,
                                   preferred_element_type=f32)             # (H1, N)
            tj_c = lax.dot_general(w1ct_ref[...], adjx, dn,
                                   preferred_element_type=f32)             # (H1, N)
            termj_scr[...] = ((tj_b + b1c_ref[...]) * deg_r + tj_c
                              + rjkc_ref[...] * wd_r)                      # (H1, N)
            degr_scr[...] = deg_r
            n2r_scr[...] = n2_r
            xa_scr[...] = jnp.dot(x_all, w1a_ref[...], preferred_element_type=f32)
            xw2a_scr[...] = jnp.dot(x_all, w2a_ref[...], preferred_element_type=f32)
            xw3a_scr[...] = jnp.dot(x_all, w3a_ref[...], preferred_element_type=f32)
            axw2b_scr[...] = jnp.dot(adjx, w2b_ref[...], preferred_element_type=f32)

        # ---- per-i-tile stage ---------------------------------------------
        i0 = pl.multiple_of(i_blk * TI, TI)
        x_all = x_ref[0]                                       # (N, D)
        adj_full = adj_ref[0]                                  # (N, N)
        x_i = x_ref[0, pl.ds(i0, TI), :]                       # (TI, D)
        adj_i = adj_ref[0, pl.ds(i0, TI), :]                   # (TI, N)
        deg_r = degr_scr[...]                                  # (1, N)
        n2_r = n2r_scr[...]                                    # (1, N)

        # pairwise distances for tile rows (Gram form, clamped)
        g_i = lax.dot_general(x_i, x_all, dn, preferred_element_type=f32)  # (TI, N)
        n2_ci = jnp.sum(x_i * x_i, axis=1, keepdims=True)                  # (TI, 1)
        dis_i = jnp.sqrt(jnp.maximum(n2_ci + n2_r - 2.0 * g_i, 0.0) + 1e-10)
        # sum_k dis[i,k] * adj[j,k]  (no adj transpose materialized)
        dadjt_i = lax.dot_general(dis_i, adj_full, dn,
                                  preferred_element_type=f32)              # (TI, N)
        deg_ci = jnp.sum(adj_i, axis=1, keepdims=True)                     # (TI, 1)
        wd_ci = jnp.sum(adj_i * dis_i, axis=1, keepdims=True)              # (TI, 1)
        disdeg = dis_i * deg_r                                             # (TI, N)

        # stage 3 + stage-2 j-sum: lane-dense per-channel sweep
        xa_i = xa_scr[pl.ds(i0, TI), :]                                    # (TI, H1)
        cols = []
        for h in range(H1):
            inner_h = (xa_i[:, h:h + 1] * deg_r
                       + rij_ref[h] * disdeg
                       + rik_ref[h] * dadjt_i
                       + termj_scr[h:h + 1, :])                            # (TI, N)
            t = _leaky(adj_i * inner_h)
            cols.append(jnp.sum(adj_i * t, axis=1, keepdims=True))         # (TI, 1)
        s = jnp.concatenate(cols, axis=1)                                  # (TI, H1)

        # stage 2 (j-sum already pushed through W2)
        m2 = (deg_ci * xw2a_scr[pl.ds(i0, TI), :]
              + axw2b_scr[pl.ds(i0, TI), :]
              + wd_ci * r2d_ref[...]
              + jnp.dot(s, w2m_ref[...], preferred_element_type=f32)
              + deg_ci * b2_ref[...])                                      # (TI, H2)
        m2s = _leaky(m2)

        # stage 1
        m1 = (xw3a_scr[pl.ds(i0, TI), :]
              + jnp.dot(m2s, w3b_ref[...], preferred_element_type=f32)
              + b3_ref[...])                                               # (TI, O_pad)
        o_ref[0] = _leaky(m1)

    return kernel


# --------------------------------------------------------------------------
# Wrapper
# --------------------------------------------------------------------------
def spatial_graph_conv(x, adj, params):
    """Pallas SpatialGraphConv forward.  x: (B, N, D), adj: (B, N, N)."""
    f32 = jnp.float32
    B, N, D = x.shape
    w1, b1, w2, b2, w3, b3 = params
    H1 = int(w1.shape[1])
    H2 = int(w2.shape[1])
    O = int(w3.shape[1])
    O_pad = ((O + 127) // 128) * 128

    # generation-aware VMEM limit (<=~40% of physical; 64/128 MiB fallback)
    try:
        cap = int(getattr(pltpu.get_tpu_info(), "vmem_capacity_bytes", 64 << 20))
    except Exception:
        cap = 64 << 20
    vmem_limit = max(32 << 20, min(int(cap * 0.6), 96 << 20))

    # i-tile size: largest multiple of 8 dividing N whose working set fits
    TI = N
    for cand in (256, 128, 64, 32, 16, 8):
        if cand <= N and N % cand == 0 and 12 * cand * N * 4 <= vmem_limit // 2:
            TI = cand
            break
    assert N % TI == 0
    NI = N // TI

    x = x.astype(f32)
    adj = adj.astype(f32)
    w1, b1 = w1.astype(f32), b1.astype(f32)
    w2, b2 = w2.astype(f32), b2.astype(f32)
    w3, b3 = w3.astype(f32), b3.astype(f32)

    # Host-side glue: split the weights into the row blocks the concatenated
    # features would have multiplied (no lane-axis concat inside the kernel).
    w1a, w1b, w1c = w1[:D], w1[D:2 * D], w1[2 * D:3 * D]
    rij = w1[3 * D]                         # (H1,)  -> SMEM scalars
    rjk_c = w1[3 * D + 1].reshape(H1, 1)    # (H1,1) column for term_j outer prod
    rik = w1[3 * D + 2]                     # (H1,)  -> SMEM scalars
    b1_c = b1.reshape(H1, 1)                # (H1,1)
    w1b_t = w1b.T                           # (H1,D)
    w1c_t = w1c.T                           # (H1,D)
    w2a, w2b = w2[:D], w2[D:2 * D]
    r2d = w2[2 * D:2 * D + 1]               # (1,H2)
    w2m = w2[2 * D + 1:]                    # (H1,H2)
    w3a, w3b = w3[:D], w3[D:]
    pad = O_pad - O
    if pad:
        w3a = jnp.pad(w3a, ((0, 0), (0, pad)))
        w3b = jnp.pad(w3b, ((0, 0), (0, pad)))
        b3p = jnp.pad(b3, ((0, 0), (0, pad)))
    else:
        b3p = b3

    def vfull(a):
        nd = a.ndim
        return pl.BlockSpec(a.shape, lambda b, i, _nd=nd: (0,) * _nd)

    smem_spec = pl.BlockSpec(memory_space=pltpu.MemorySpace.SMEM)

    in_specs = [
        pl.BlockSpec((1, N, D), lambda b, i: (b, 0, 0)),   # x   (resident per batch)
        pl.BlockSpec((1, N, N), lambda b, i: (b, 0, 0)),   # adj (resident per batch)
        vfull(w1a), vfull(w1b_t), vfull(w1c_t), vfull(rjk_c), vfull(b1_c),
        smem_spec, smem_spec,                              # rij, rik (SMEM scalars)
        vfull(w2a), vfull(w2b), vfull(r2d), vfull(w2m), vfull(b2),
        vfull(w3a), vfull(w3b), vfull(b3p),
    ]
    out_spec = pl.BlockSpec((1, TI, O_pad), lambda b, i: (b, i, 0))

    scratch = [
        pltpu.VMEM((1, N), f32),        # deg_r  (lane-indexed node degree)
        pltpu.VMEM((1, N), f32),        # n2_r   (lane-indexed squared norms)
        pltpu.VMEM((H1, N), f32),       # term_j (j-indexed stage-3 partials)
        pltpu.VMEM((N, H1), f32),       # x @ W1a
        pltpu.VMEM((N, H2), f32),       # x @ W2a
        pltpu.VMEM((N, O_pad), f32),    # x @ W3a (lane-padded)
        pltpu.VMEM((N, H2), f32),       # (adj @ x) @ W2b
    ]

    kernel = _make_kernel(N, D, H1, H2, O_pad, TI)
    out = pl.pallas_call(
        kernel,
        out_shape=jax.ShapeDtypeStruct((B, N, O_pad), f32),
        grid=(B, NI),
        in_specs=in_specs,
        out_specs=out_spec,
        scratch_shapes=scratch,
        compiler_params=pltpu.CompilerParams(
            dimension_semantics=("parallel", "arbitrary"),
            vmem_limit_bytes=vmem_limit),
    )(x, adj,
      w1a, w1b_t, w1c_t, rjk_c, b1_c,
      rij, rik,
      w2a, w2b, r2d, w2m, b2,
      w3a, w3b, b3p)
    return out[..., :O]


# --------------------------------------------------------------------------
# Deterministic parameter init (module's __init__ gives the shapes only)
# --------------------------------------------------------------------------
def init_sgc_params(key, input_dim, output_dim, hidden=(50, 50, 50)):
    ks = jax.random.split(key, 6)
    h1 = input_dim * 3 + 3
    h2 = input_dim * 2 + hidden[0] + 1
    h3 = input_dim + hidden[1]

    def w(k, i, o):
        return jax.random.normal(k, (i, o), jnp.float32) / np.sqrt(i)

    def b(k, o):
        return 0.1 * jax.random.normal(k, (1, o), jnp.float32)

    return (w(ks[0], h1, hidden[0]), b(ks[1], hidden[0]),
            w(ks[2], h2, hidden[1]), b(ks[3], hidden[1]),
            w(ks[4], h3, output_dim), b(ks[5], output_dim))


# --------------------------------------------------------------------------
# Pure-JAX reference: literal port of the PyTorch forward (for validation)
# --------------------------------------------------------------------------
def spatial_graph_conv_ref(x, adj, params):
    w1, b1, w2, b2, w3, b3 = params
    B, N, D = x.shape
    H1, H2, O = w1.shape[1], w2.shape[1], w3.shape[1]
    xi = jnp.broadcast_to(x[:, :, None, :], (B, N, N, D))
    xj = jnp.broadcast_to(x[:, None, :, :], (B, N, N, D))
    dis = jnp.sqrt(jnp.sum((xi - xj) ** 2, axis=3) + 1e-10)
    rel_ij = jnp.broadcast_to(dis[:, :, :, None, None], (B, N, N, N, 1))
    rel_jk = jnp.broadcast_to(dis[:, None, :, :, None], (B, N, N, N, 1))
    rel_ik = jnp.broadcast_to(dis[:, :, None, :, None], (B, N, N, N, 1))
    adj3 = adj[:, :, :, None] * adj[:, None, :, :]                 # (B,N,N,N)
    x_x = jnp.broadcast_to(x[:, :, None, None, :], (B, N, N, N, D))
    x_y = jnp.broadcast_to(x[:, None, :, None, :], (B, N, N, N, D))
    x_z = jnp.broadcast_to(x[:, None, None, :, :], (B, N, N, N, D))
    m3 = jnp.concatenate([x_x, x_y, x_z, rel_ij, rel_jk, rel_ik], axis=-1)
    m3 = (m3.reshape(-1, 3 * D + 3) @ w1 + b1).reshape(B, N, N, N, H1)
    m3_sum = _leaky(jnp.einsum("bijkh,bijk->bijh", m3, adj3))
    m2 = jnp.concatenate([xi, xj, dis[..., None], m3_sum], axis=-1)
    m2 = (m2.reshape(-1, 2 * D + 1 + H1) @ w2 + b2).reshape(B, N, N, H2)
    m2_sum = _leaky(jnp.einsum("bijh,bij->bih", m2, adj))
    m1 = jnp.concatenate([x, m2_sum], axis=2).reshape(-1, D + H2)
    return _leaky(m1 @ w3 + b3).reshape(B, N, O)


# --------------------------------------------------------------------------
if __name__ == "__main__":
    B, N, D, O = 2, 8, 4, 20          # batch=2, node_num=8, input_dim=4
    key = jax.random.PRNGKey(0)
    kx, ka, kp = jax.random.split(key, 3)
    x = jax.random.normal(kx, (B, N, D), jnp.float32)
    adj = jax.random.uniform(ka, (B, N, N), jnp.float32)
    params = init_sgc_params(kp, D, O)

    out = jax.jit(spatial_graph_conv)(x, adj, params)
    out = jax.block_until_ready(out)

    ref = spatial_graph_conv_ref(x, adj, params)
    np.testing.assert_allclose(np.asarray(out), np.asarray(ref),
                               rtol=2e-2, atol=2e-2)
    print("KERNEL_OK")
</pallas_src>

<mosaic_0001>
module attributes {stable_mosaic.version = 11 : i64} {
  func.func @kernel(%arg0: i32, %arg1: i32, %arg2: memref<1x8x4xf32, #tpu.memory_space<vmem>>, %arg3: memref<1x8x8xf32, #tpu.memory_space<vmem>>, %arg4: memref<4x50xf32, #tpu.memory_space<vmem>>, %arg5: memref<50x4xf32, #tpu.memory_space<vmem>>, %arg6: memref<50x4xf32, #tpu.memory_space<vmem>>, %arg7: memref<50x1xf32, #tpu.memory_space<vmem>>, %arg8: memref<50x1xf32, #tpu.memory_space<vmem>>, %arg9: memref<50xf32, #tpu.memory_space<smem>>, %arg10: memref<50xf32, #tpu.memory_space<smem>>, %arg11: memref<4x50xf32, #tpu.memory_space<vmem>>, %arg12: memref<4x50xf32, #tpu.memory_space<vmem>>, %arg13: memref<1x50xf32, #tpu.memory_space<vmem>>, %arg14: memref<50x50xf32, #tpu.memory_space<vmem>>, %arg15: memref<1x50xf32, #tpu.memory_space<vmem>>, %arg16: memref<4x128xf32, #tpu.memory_space<vmem>>, %arg17: memref<50x128xf32, #tpu.memory_space<vmem>>, %arg18: memref<1x128xf32, #tpu.memory_space<vmem>>, %arg19: memref<1x8x128xf32, #tpu.memory_space<vmem>>, %arg20: memref<1x8xf32, #tpu.memory_space<vmem>>, %arg21: memref<1x8xf32, #tpu.memory_space<vmem>>, %arg22: memref<50x8xf32, #tpu.memory_space<vmem>>, %arg23: memref<8x50xf32, #tpu.memory_space<vmem>>, %arg24: memref<8x50xf32, #tpu.memory_space<vmem>>, %arg25: memref<8x128xf32, #tpu.memory_space<vmem>>, %arg26: memref<8x50xf32, #tpu.memory_space<vmem>>) attributes {dimension_semantics = [#tpu.dimension_semantics<parallel>, #tpu.dimension_semantics<arbitrary>], iteration_bounds = array<i64: 2, 1>, scalar_prefetch = 0 : i64, scratch_operands = 7 : i64, tpu.core_type = #tpu.core_type<tc>, window_params = [{transform_indices = @transform_0, window_bounds = array<i64: 1, 8, 4>}, {transform_indices = @transform_1, window_bounds = array<i64: 1, 8, 8>}, {pipeline_mode = #tpu.pipeline_mode<synchronous>, transform_indices = @transform_2, window_bounds = array<i64: 4, 50>}, {pipeline_mode = #tpu.pipeline_mode<synchronous>, transform_indices = @transform_3, window_bounds = array<i64: 50, 4>}, {pipeline_mode = #tpu.pipeline_mode<synchronous>, transform_indices = @transform_4, window_bounds = array<i64: 50, 4>}, {pipeline_mode = #tpu.pipeline_mode<synchronous>, transform_indices = @transform_5, window_bounds = array<i64: 50, 1>}, {pipeline_mode = #tpu.pipeline_mode<synchronous>, transform_indices = @transform_6, window_bounds = array<i64: 50, 1>}, {transform_indices = @transform_7, window_bounds = array<i64: 50>}, {transform_indices = @transform_8, window_bounds = array<i64: 50>}, {pipeline_mode = #tpu.pipeline_mode<synchronous>, transform_indices = @transform_9, window_bounds = array<i64: 4, 50>}, {pipeline_mode = #tpu.pipeline_mode<synchronous>, transform_indices = @transform_10, window_bounds = array<i64: 4, 50>}, {pipeline_mode = #tpu.pipeline_mode<synchronous>, transform_indices = @transform_11, window_bounds = array<i64: 1, 50>}, {pipeline_mode = #tpu.pipeline_mode<synchronous>, transform_indices = @transform_12, window_bounds = array<i64: 50, 50>}, {pipeline_mode = #tpu.pipeline_mode<synchronous>, transform_indices = @transform_13, window_bounds = array<i64: 1, 50>}, {pipeline_mode = #tpu.pipeline_mode<synchronous>, transform_indices = @transform_14, window_bounds = array<i64: 4, 128>}, {pipeline_mode = #tpu.pipeline_mode<synchronous>, transform_indices = @transform_15, window_bounds = array<i64: 50, 128>}, {pipeline_mode = #tpu.pipeline_mode<synchronous>, transform_indices = @transform_16, window_bounds = array<i64: 1, 128>}, {transform_indices = @transform_17, window_bounds = array<i64: 1, 8, 128>}]} {
    %c0_i32 = arith.constant 0 : i32
    %0 = arith.cmpi eq, %arg1, %c0_i32 : i32
    %1 = arith.extui %0 : i1 to i32
    %c0_i32_0 = arith.constant 0 : i32
    %2 = arith.cmpi ne, %1, %c0_i32_0 : i32
    scf.if %2 {
      %c0_345 = arith.constant 0 : index
      %c0_346 = arith.constant 0 : index
      %c0_347 = arith.constant 0 : index
      %1288 = vector.load %arg2[%c0_345, %c0_346, %c0_347] : memref<1x8x4xf32, #tpu.memory_space<vmem>>, vector<1x8x4xf32>
      %1289 = vector.shape_cast %1288 : vector<1x8x4xf32> to vector<8x4xf32>
      %c0_348 = arith.constant 0 : index
      %c0_349 = arith.constant 0 : index
      %c0_350 = arith.constant 0 : index
      %1290 = vector.load %arg3[%c0_348, %c0_349, %c0_350] : memref<1x8x8xf32, #tpu.memory_space<vmem>>, vector<1x8x8xf32>
      %1291 = vector.shape_cast %1290 : vector<1x8x8xf32> to vector<8x8xf32>
      %cst_351 = arith.constant 1.000000e+00 : f32
      %1292 = vector.broadcast %cst_351 : f32 to vector<1x8xf32>
      %cst_352 = arith.constant dense<0.000000e+00> : vector<1x8xf32>
      %1293 = tpu.matmul %1292, %1291, %cst_352 {dimension_numbers = #tpu.dot_dimension_numbers<[1], [1], [0], [0], [0, 0, 1, 0], [], []>} : vector<1x8xf32>, vector<8x8xf32>, vector<1x8xf32> -> vector<1x8xf32>
      %1294 = arith.mulf %1289, %1289 : vector<8x4xf32>
      %cst_353 = arith.constant 1.000000e+00 : f32
      %1295 = vector.broadcast %cst_353 : f32 to vector<1x4xf32>
      %cst_354 = arith.constant dense<0.000000e+00> : vector<1x8xf32>
      %1296 = tpu.matmul %1295, %1294, %cst_354 {dimension_numbers = #tpu.dot_dimension_numbers<[1], [1], [0], [0], [0, 0, 1, 0], [], []>} : vector<1x4xf32>, vector<8x4xf32>, vector<1x8xf32> -> vector<1x8xf32>
      %cst_355 = arith.constant dense<0.000000e+00> : vector<8xf32>
      %1297 = vector.multi_reduction <add>, %1294, %cst_355 [1] : vector<8x4xf32> to vector<8xf32>
      %1298 = vector.shape_cast %1297 : vector<8xf32> to vector<8x1xf32>
      %cst_356 = arith.constant dense<0.000000e+00> : vector<8x8xf32>
      %1299 = tpu.matmul %1289, %1289, %cst_356 {dimension_numbers = #tpu.dot_dimension_numbers<[1], [1], [0], [0], [0, 0, 1, 0], [], []>} : vector<8x4xf32>, vector<8x4xf32>, vector<8x8xf32> -> vector<8x8xf32>
      %1300 = vector.broadcast %1298 : vector<8x1xf32> to vector<8x8xf32>
      %1301 = vector.broadcast %1296 : vector<1x8xf32> to vector<8x8xf32>
      %1302 = arith.addf %1300, %1301 : vector<8x8xf32>
      %cst_357 = arith.constant 2.000000e+00 : f32
      %1303 = vector.broadcast %cst_357 : f32 to vector<8x8xf32>
      %1304 = arith.mulf %1303, %1299 : vector<8x8xf32>
      %1305 = arith.subf %1302, %1304 : vector<8x8xf32>
      %cst_358 = arith.constant 0.000000e+00 : f32
      %1306 = vector.broadcast %cst_358 : f32 to vector<8x8xf32>
      %1307 = arith.maximumf %1305, %1306 : vector<8x8xf32>
      %cst_359 = arith.constant 1.000000e-10 : f32
      %1308 = vector.broadcast %cst_359 : f32 to vector<8x8xf32>
      %1309 = arith.addf %1307, %1308 : vector<8x8xf32>
      %1310 = math.sqrt %1309 : vector<8x8xf32>
      %1311 = arith.mulf %1291, %1310 : vector<8x8xf32>
      %cst_360 = arith.constant dense<0.000000e+00> : vector<1x8xf32>
      %1312 = tpu.matmul %1292, %1311, %cst_360 {dimension_numbers = #tpu.dot_dimension_numbers<[1], [1], [0], [0], [0, 0, 1, 0], [], []>} : vector<1x8xf32>, vector<8x8xf32>, vector<1x8xf32> -> vector<1x8xf32>
      %cst_361 = arith.constant dense<0.000000e+00> : vector<8x4xf32>
      %1313 = tpu.matmul %1291, %1289, %cst_361 {dimension_numbers = #tpu.dot_dimension_numbers<[1], [0], [0], [1], [0, 0, 1, 1], [], []>} : vector<8x8xf32>, vector<8x4xf32>, vector<8x4xf32> -> vector<8x4xf32>
      %c0_362 = arith.constant 0 : index
      %c0_363 = arith.constant 0 : index
      %1314 = vector.load %arg5[%c0_362, %c0_363] : memref<50x4xf32, #tpu.memory_space<vmem>>, vector<50x4xf32>
      %cst_364 = arith.constant dense<0.000000e+00> : vector<50x8xf32>
      %1315 = tpu.matmul %1314, %1289, %cst_364 {dimension_numbers = #tpu.dot_dimension_numbers<[1], [1], [0], [0], [0, 0, 1, 0], [], []>} : vector<50x4xf32>, vector<8x4xf32>, vector<50x8xf32> -> vector<50x8xf32>
      %c0_365 = arith.constant 0 : index
      %c0_366 = arith.constant 0 : index
      %1316 = vector.load %arg6[%c0_365, %c0_366] : memref<50x4xf32, #tpu.memory_space<vmem>>, vector<50x4xf32>
      %cst_367 = arith.constant dense<0.000000e+00> : vector<50x8xf32>
      %1317 = tpu.matmul %1316, %1313, %cst_367 {dimension_numbers = #tpu.dot_dimension_numbers<[1], [1], [0], [0], [0, 0, 1, 0], [], []>} : vector<50x4xf32>, vector<8x4xf32>, vector<50x8xf32> -> vector<50x8xf32>
      %c0_368 = arith.constant 0 : index
      %c0_369 = arith.constant 0 : index
      %1318 = vector.load %arg8[%c0_368, %c0_369] : memref<50x1xf32, #tpu.memory_space<vmem>>, vector<50x1xf32>
      %1319 = vector.broadcast %1318 : vector<50x1xf32> to vector<50x8xf32>
      %1320 = arith.addf %1315, %1319 : vector<50x8xf32>
      %1321 = vector.broadcast %1293 : vector<1x8xf32> to vector<50x8xf32>
      %1322 = arith.mulf %1320, %1321 : vector<50x8xf32>
      %1323 = arith.addf %1322, %1317 : vector<50x8xf32>
      %c0_370 = arith.constant 0 : index
      %c0_371 = arith.constant 0 : index
      %1324 = vector.load %arg7[%c0_370, %c0_371] : memref<50x1xf32, #tpu.memory_space<vmem>>, vector<50x1xf32>
      %1325 = vector.broadcast %1324 : vector<50x1xf32> to vector<50x8xf32>
      %1326 = vector.broadcast %1312 : vector<1x8xf32> to vector<50x8xf32>
      %1327 = arith.mulf %1325, %1326 : vector<50x8xf32>
      %1328 = arith.addf %1323, %1327 : vector<50x8xf32>
      %c0_372 = arith.constant 0 : index
      %c0_373 = arith.constant 0 : index
      %1329 = vector.load %arg22[%c0_372, %c0_373] : memref<50x8xf32, #tpu.memory_space<vmem>>, vector<50x8xf32>
      tpu.vector_store %arg22[%c0_372, %c0_373], %1328 {strides = array<i32>} : memref<50x8xf32, #tpu.memory_space<vmem>>, vector<50x8xf32>,
      %c0_374 = arith.constant 0 : index
      %c0_375 = arith.constant 0 : index
      %1330 = vector.load %arg20[%c0_374, %c0_375] : memref<1x8xf32, #tpu.memory_space<vmem>>, vector<1x8xf32>
      tpu.vector_store %arg20[%c0_374, %c0_375], %1293 {strides = array<i32>} : memref<1x8xf32, #tpu.memory_space<vmem>>, vector<1x8xf32>,
      %c0_376 = arith.constant 0 : index
      %c0_377 = arith.constant 0 : index
      %1331 = vector.load %arg21[%c0_376, %c0_377] : memref<1x8xf32, #tpu.memory_space<vmem>>, vector<1x8xf32>
      tpu.vector_store %arg21[%c0_376, %c0_377], %1296 {strides = array<i32>} : memref<1x8xf32, #tpu.memory_space<vmem>>, vector<1x8xf32>,
      %c0_378 = arith.constant 0 : index
      %c0_379 = arith.constant 0 : index
      %1332 = vector.load %arg4[%c0_378, %c0_379] : memref<4x50xf32, #tpu.memory_space<vmem>>, vector<4x50xf32>
      %cst_380 = arith.constant dense<0.000000e+00> : vector<8x50xf32>
      %1333 = tpu.matmul %1289, %1332, %cst_380 {dimension_numbers = #tpu.dot_dimension_numbers<[1], [0], [0], [1], [0, 0, 1, 1], [], []>} : vector<8x4xf32>, vector<4x50xf32>, vector<8x50xf32> -> vector<8x50xf32>
      %c0_381 = arith.constant 0 : index
      %c0_382 = arith.constant 0 : index
      %1334 = vector.load %arg23[%c0_381, %c0_382] : memref<8x50xf32, #tpu.memory_space<vmem>>, vector<8x50xf32>
      tpu.vector_store %arg23[%c0_381, %c0_382], %1333 {strides = array<i32>} : memref<8x50xf32, #tpu.memory_space<vmem>>, vector<8x50xf32>,
      %c0_383 = arith.constant 0 : index
      %c0_384 = arith.constant 0 : index
      %1335 = vector.load %arg11[%c0_383, %c0_384] : memref<4x50xf32, #tpu.memory_space<vmem>>, vector<4x50xf32>
      %cst_385 = arith.constant dense<0.000000e+00> : vector<8x50xf32>
      %1336 = tpu.matmul %1289, %1335, %cst_385 {dimension_numbers = #tpu.dot_dimension_numbers<[1], [0], [0], [1], [0, 0, 1, 1], [], []>} : vector<8x4xf32>, vector<4x50xf32>, vector<8x50xf32> -> vector<8x50xf32>
      %c0_386 = arith.constant 0 : index
      %c0_387 = arith.constant 0 : index
      %1337 = vector.load %arg24[%c0_386, %c0_387] : memref<8x50xf32, #tpu.memory_space<vmem>>, vector<8x50xf32>
      tpu.vector_store %arg24[%c0_386, %c0_387], %1336 {strides = array<i32>} : memref<8x50xf32, #tpu.memory_space<vmem>>, vector<8x50xf32>,
      %c0_388 = arith.constant 0 : index
      %c0_389 = arith.constant 0 : index
      %1338 = vector.load %arg16[%c0_388, %c0_389] : memref<4x128xf32, #tpu.memory_space<vmem>>, vector<4x128xf32>
      %cst_390 = arith.constant dense<0.000000e+00> : vector<8x128xf32>
      %1339 = tpu.matmul %1289, %1338, %cst_390 {dimension_numbers = #tpu.dot_dimension_numbers<[1], [0], [0], [1], [0, 0, 1, 1], [], []>} : vector<8x4xf32>, vector<4x128xf32>, vector<8x128xf32> -> vector<8x128xf32>
      %c0_391 = arith.constant 0 : index
      %c0_392 = arith.constant 0 : index
      %1340 = vector.load %arg25[%c0_391, %c0_392] : memref<8x128xf32, #tpu.memory_space<vmem>>, vector<8x128xf32>
      tpu.vector_store %arg25[%c0_391, %c0_392], %1339 {strides = array<i32>} : memref<8x128xf32, #tpu.memory_space<vmem>>, vector<8x128xf32>,
      %c0_393 = arith.constant 0 : index
      %c0_394 = arith.constant 0 : index
      %1341 = vector.load %arg12[%c0_393, %c0_394] : memref<4x50xf32, #tpu.memory_space<vmem>>, vector<4x50xf32>
      %cst_395 = arith.constant dense<0.000000e+00> : vector<8x50xf32>
      %1342 = tpu.matmul %1313, %1341, %cst_395 {dimension_numbers = #tpu.dot_dimension_numbers<[1], [0], [0], [1], [0, 0, 1, 1], [], []>} : vector<8x4xf32>, vector<4x50xf32>, vector<8x50xf32> -> vector<8x50xf32>
      %c0_396 = arith.constant 0 : index
      %c0_397 = arith.constant 0 : index
      %1343 = vector.load %arg26[%c0_396, %c0_397] : memref<8x50xf32, #tpu.memory_space<vmem>>, vector<8x50xf32>
      tpu.vector_store %arg26[%c0_396, %c0_397], %1342 {strides = array<i32>} : memref<8x50xf32, #tpu.memory_space<vmem>>, vector<8x50xf32>,
    } else {
    }
    %c8_i32 = arith.constant 8 : i32
    %3 = arith.muli %arg1, %c8_i32 : i32
    %4 = tpu.assume_multiple %3, 8 : i32
    %c0 = arith.constant 0 : index
    %c0_1 = arith.constant 0 : index
    %c0_2 = arith.constant 0 : index
    %5 = vector.load %arg2[%c0, %c0_1, %c0_2] : memref<1x8x4xf32, #tpu.memory_space<vmem>>, vector<1x8x4xf32>
    %6 = vector.shape_cast %5 : vector<1x8x4xf32> to vector<8x4xf32>
    %c0_3 = arith.constant 0 : index
    %c0_4 = arith.constant 0 : index
    %c0_5 = arith.constant 0 : index
    %7 = vector.load %arg3[%c0_3, %c0_4, %c0_5] : memref<1x8x8xf32, #tpu.memory_space<vmem>>, vector<1x8x8xf32>
    %8 = vector.shape_cast %7 : vector<1x8x8xf32> to vector<8x8xf32>
    %c0_6 = arith.constant 0 : index
    %9 = arith.index_cast %4 : i32 to index
    %c0_7 = arith.constant 0 : index
    %10 = vector.load %arg2[%c0_6, %9, %c0_7] : memref<1x8x4xf32, #tpu.memory_space<vmem>>, vector<1x8x4xf32>
    %11 = vector.shape_cast %10 : vector<1x8x4xf32> to vector<8x4xf32>
    %c0_8 = arith.constant 0 : index
    %12 = arith.index_cast %4 : i32 to index
    %c0_9 = arith.constant 0 : index
    %13 = vector.load %arg3[%c0_8, %12, %c0_9] : memref<1x8x8xf32, #tpu.memory_space<vmem>>, vector<1x8x8xf32>
    %14 = vector.shape_cast %13 : vector<1x8x8xf32> to vector<8x8xf32>
    %c0_10 = arith.constant 0 : index
    %c0_11 = arith.constant 0 : index
    %15 = vector.load %arg20[%c0_10, %c0_11] : memref<1x8xf32, #tpu.memory_space<vmem>>, vector<1x8xf32>
    %c0_12 = arith.constant 0 : index
    %c0_13 = arith.constant 0 : index
    %16 = vector.load %arg21[%c0_12, %c0_13] : memref<1x8xf32, #tpu.memory_space<vmem>>, vector<1x8xf32>
    %cst = arith.constant dense<0.000000e+00> : vector<8x8xf32>
    %17 = tpu.matmul %11, %6, %cst {dimension_numbers = #tpu.dot_dimension_numbers<[1], [1], [0], [0], [0, 0, 1, 0], [], []>} : vector<8x4xf32>, vector<8x4xf32>, vector<8x8xf32> -> vector<8x8xf32>
    %18 = arith.mulf %11, %11 : vector<8x4xf32>
    %cst_14 = arith.constant dense<0.000000e+00> : vector<8xf32>
    %19 = vector.multi_reduction <add>, %18, %cst_14 [1] : vector<8x4xf32> to vector<8xf32>
    %20 = vector.shape_cast %19 : vector<8xf32> to vector<8x1xf32>
    %21 = vector.broadcast %20 : vector<8x1xf32> to vector<8x8xf32>
    %22 = vector.broadcast %16 : vector<1x8xf32> to vector<8x8xf32>
    %23 = arith.addf %21, %22 : vector<8x8xf32>
    %cst_15 = arith.constant 2.000000e+00 : f32
    %24 = vector.broadcast %cst_15 : f32 to vector<8x8xf32>
    %25 = arith.mulf %24, %17 : vector<8x8xf32>
    %26 = arith.subf %23, %25 : vector<8x8xf32>
    %cst_16 = arith.constant 0.000000e+00 : f32
    %27 = vector.broadcast %cst_16 : f32 to vector<8x8xf32>
    %28 = arith.maximumf %26, %27 : vector<8x8xf32>
    %cst_17 = arith.constant 1.000000e-10 : f32
    %29 = vector.broadcast %cst_17 : f32 to vector<8x8xf32>
    %30 = arith.addf %28, %29 : vector<8x8xf32>
    %31 = math.sqrt %30 : vector<8x8xf32>
    %cst_18 = arith.constant dense<0.000000e+00> : vector<8x8xf32>
    %32 = tpu.matmul %31, %8, %cst_18 {dimension_numbers = #tpu.dot_dimension_numbers<[1], [1], [0], [0], [0, 0, 1, 0], [], []>} : vector<8x8xf32>, vector<8x8xf32>, vector<8x8xf32> -> vector<8x8xf32>
    %cst_19 = arith.constant dense<0.000000e+00> : vector<8xf32>
    %33 = vector.multi_reduction <add>, %14, %cst_19 [1] : vector<8x8xf32> to vector<8xf32>
    %34 = vector.shape_cast %33 : vector<8xf32> to vector<8x1xf32>
    %35 = arith.mulf %14, %31 : vector<8x8xf32>
    %cst_20 = arith.constant dense<0.000000e+00> : vector<8xf32>
    %36 = vector.multi_reduction <add>, %35, %cst_20 [1] : vector<8x8xf32> to vector<8xf32>
    %37 = vector.shape_cast %36 : vector<8xf32> to vector<8x1xf32>
    %38 = vector.broadcast %15 : vector<1x8xf32> to vector<8x8xf32>
    %39 = arith.mulf %31, %38 : vector<8x8xf32>
    %40 = arith.index_cast %4 : i32 to index
    %c0_21 = arith.constant 0 : index
    %41 = vector.load %arg23[%40, %c0_21] : memref<8x50xf32, #tpu.memory_space<vmem>>, vector<8x50xf32>
    %42 = vector.extract_strided_slice %41 {offsets = [0, 0], sizes = [8, 1], strides = [1, 1]} : vector<8x50xf32> to vector<8x1xf32>
    %43 = vector.broadcast %42 : vector<8x1xf32> to vector<8x8xf32>
    %44 = vector.broadcast %15 : vector<1x8xf32> to vector<8x8xf32>
    %45 = arith.mulf %43, %44 : vector<8x8xf32>
    %c0_22 = arith.constant 0 : index
    %46 = memref.load %arg9[%c0_22] : memref<50xf32, #tpu.memory_space<smem>>
    %47 = vector.broadcast %46 : f32 to vector<8x8xf32>
    %48 = arith.mulf %47, %39 : vector<8x8xf32>
    %49 = arith.addf %45, %48 : vector<8x8xf32>
    %c0_23 = arith.constant 0 : index
    %50 = memref.load %arg10[%c0_23] : memref<50xf32, #tpu.memory_space<smem>>
    %51 = vector.broadcast %50 : f32 to vector<8x8xf32>
    %52 = arith.mulf %51, %32 : vector<8x8xf32>
    %53 = arith.addf %49, %52 : vector<8x8xf32>
    %c0_24 = arith.constant 0 : index
    %c0_25 = arith.constant 0 : index
    %54 = vector.load %arg22[%c0_24, %c0_25] : memref<50x8xf32, #tpu.memory_space<vmem>>, vector<1x8xf32>
    %55 = vector.broadcast %54 : vector<1x8xf32> to vector<8x8xf32>
    %56 = arith.addf %53, %55 : vector<8x8xf32>
    %57 = arith.mulf %14, %56 : vector<8x8xf32>
    %cst_26 = arith.constant 0.000000e+00 : f32
    %58 = vector.broadcast %cst_26 : f32 to vector<8x8xf32>
    %59 = arith.cmpf oge, %57, %58 : vector<8x8xf32>
    %cst_27 = arith.constant 5.000000e-02 : f32
    %60 = vector.broadcast %cst_27 : f32 to vector<8x8xf32>
    %61 = arith.mulf %60, %57 : vector<8x8xf32>
    %62 = arith.select %59, %57, %61 : vector<8x8xi1>, vector<8x8xf32>
    %63 = arith.mulf %14, %62 : vector<8x8xf32>
    %cst_28 = arith.constant dense<0.000000e+00> : vector<8xf32>
    %64 = vector.multi_reduction <add>, %63, %cst_28 [1] : vector<8x8xf32> to vector<8xf32>
    %65 = vector.shape_cast %64 : vector<8xf32> to vector<8x1xf32>
    %66 = vector.extract_strided_slice %41 {offsets = [0, 1], sizes = [8, 1], strides = [1, 1]} : vector<8x50xf32> to vector<8x1xf32>
    %67 = vector.broadcast %66 : vector<8x1xf32> to vector<8x8xf32>
    %68 = vector.broadcast %15 : vector<1x8xf32> to vector<8x8xf32>
    %69 = arith.mulf %67, %68 : vector<8x8xf32>
    %c1 = arith.constant 1 : index
    %70 = memref.load %arg9[%c1] : memref<50xf32, #tpu.memory_space<smem>>
    %71 = vector.broadcast %70 : f32 to vector<8x8xf32>
    %72 = arith.mulf %71, %39 : vector<8x8xf32>
    %73 = arith.addf %69, %72 : vector<8x8xf32>
    %c1_29 = arith.constant 1 : index
    %74 = memref.load %arg10[%c1_29] : memref<50xf32, #tpu.memory_space<smem>>
    %75 = vector.broadcast %74 : f32 to vector<8x8xf32>
    %76 = arith.mulf %75, %32 : vector<8x8xf32>
    %77 = arith.addf %73, %76 : vector<8x8xf32>
    %c1_30 = arith.constant 1 : index
    %c0_31 = arith.constant 0 : index
    %78 = vector.load %arg22[%c1_30, %c0_31] : memref<50x8xf32, #tpu.memory_space<vmem>>, vector<1x8xf32>
    %79 = vector.broadcast %78 : vector<1x8xf32> to vector<8x8xf32>
    %80 = arith.addf %77, %79 : vector<8x8xf32>
    %81 = arith.mulf %14, %80 : vector<8x8xf32>
    %cst_32 = arith.constant 0.000000e+00 : f32
    %82 = vector.broadcast %cst_32 : f32 to vector<8x8xf32>
    %83 = arith.cmpf oge, %81, %82 : vector<8x8xf32>
    %cst_33 = arith.constant 5.000000e-02 : f32
    %84 = vector.broadcast %cst_33 : f32 to vector<8x8xf32>
    %85 = arith.mulf %84, %81 : vector<8x8xf32>
    %86 = arith.select %83, %81, %85 : vector<8x8xi1>, vector<8x8xf32>
    %87 = arith.mulf %14, %86 : vector<8x8xf32>
    %cst_34 = arith.constant dense<0.000000e+00> : vector<8xf32>
    %88 = vector.multi_reduction <add>, %87, %cst_34 [1] : vector<8x8xf32> to vector<8xf32>
    %89 = vector.shape_cast %88 : vector<8xf32> to vector<8x1xf32>
    %90 = vector.extract_strided_slice %41 {offsets = [0, 2], sizes = [8, 1], strides = [1, 1]} : vector<8x50xf32> to vector<8x1xf32>
    %91 = vector.broadcast %90 : vector<8x1xf32> to vector<8x8xf32>
    %92 = vector.broadcast %15 : vector<1x8xf32> to vector<8x8xf32>
    %93 = arith.mulf %91, %92 : vector<8x8xf32>
    %c2 = arith.constant 2 : index
    %94 = memref.load %arg9[%c2] : memref<50xf32, #tpu.memory_space<smem>>
    %95 = vector.broadcast %94 : f32 to vector<8x8xf32>
    %96 = arith.mulf %95, %39 : vector<8x8xf32>
    %97 = arith.addf %93, %96 : vector<8x8xf32>
    %c2_35 = arith.constant 2 : index
    %98 = memref.load %arg10[%c2_35] : memref<50xf32, #tpu.memory_space<smem>>
    %99 = vector.broadcast %98 : f32 to vector<8x8xf32>
    %100 = arith.mulf %99, %32 : vector<8x8xf32>
    %101 = arith.addf %97, %100 : vector<8x8xf32>
    %c2_36 = arith.constant 2 : index
    %c0_37 = arith.constant 0 : index
    %102 = vector.load %arg22[%c2_36, %c0_37] : memref<50x8xf32, #tpu.memory_space<vmem>>, vector<1x8xf32>
    %103 = vector.broadcast %102 : vector<1x8xf32> to vector<8x8xf32>
    %104 = arith.addf %101, %103 : vector<8x8xf32>
    %105 = arith.mulf %14, %104 : vector<8x8xf32>
    %cst_38 = arith.constant 0.000000e+00 : f32
    %106 = vector.broadcast %cst_38 : f32 to vector<8x8xf32>
    %107 = arith.cmpf oge, %105, %106 : vector<8x8xf32>
    %cst_39 = arith.constant 5.000000e-02 : f32
    %108 = vector.broadcast %cst_39 : f32 to vector<8x8xf32>
    %109 = arith.mulf %108, %105 : vector<8x8xf32>
    %110 = arith.select %107, %105, %109 : vector<8x8xi1>, vector<8x8xf32>
    %111 = arith.mulf %14, %110 : vector<8x8xf32>
    %cst_40 = arith.constant dense<0.000000e+00> : vector<8xf32>
    %112 = vector.multi_reduction <add>, %111, %cst_40 [1] : vector<8x8xf32> to vector<8xf32>
    %113 = vector.shape_cast %112 : vector<8xf32> to vector<8x1xf32>
    %114 = vector.extract_strided_slice %41 {offsets = [0, 3], sizes = [8, 1], strides = [1, 1]} : vector<8x50xf32> to vector<8x1xf32>
    %115 = vector.broadcast %114 : vector<8x1xf32> to vector<8x8xf32>
    %116 = vector.broadcast %15 : vector<1x8xf32> to vector<8x8xf32>
    %117 = arith.mulf %115, %116 : vector<8x8xf32>
    %c3 = arith.constant 3 : index
    %118 = memref.load %arg9[%c3] : memref<50xf32, #tpu.memory_space<smem>>
    %119 = vector.broadcast %118 : f32 to vector<8x8xf32>
    %120 = arith.mulf %119, %39 : vector<8x8xf32>
    %121 = arith.addf %117, %120 : vector<8x8xf32>
    %c3_41 = arith.constant 3 : index
    %122 = memref.load %arg10[%c3_41] : memref<50xf32, #tpu.memory_space<smem>>
    %123 = vector.broadcast %122 : f32 to vector<8x8xf32>
    %124 = arith.mulf %123, %32 : vector<8x8xf32>
    %125 = arith.addf %121, %124 : vector<8x8xf32>
    %c3_42 = arith.constant 3 : index
    %c0_43 = arith.constant 0 : index
    %126 = vector.load %arg22[%c3_42, %c0_43] : memref<50x8xf32, #tpu.memory_space<vmem>>, vector<1x8xf32>
    %127 = vector.broadcast %126 : vector<1x8xf32> to vector<8x8xf32>
    %128 = arith.addf %125, %127 : vector<8x8xf32>
    %129 = arith.mulf %14, %128 : vector<8x8xf32>
    %cst_44 = arith.constant 0.000000e+00 : f32
    %130 = vector.broadcast %cst_44 : f32 to vector<8x8xf32>
    %131 = arith.cmpf oge, %129, %130 : vector<8x8xf32>
    %cst_45 = arith.constant 5.000000e-02 : f32
    %132 = vector.broadcast %cst_45 : f32 to vector<8x8xf32>
    %133 = arith.mulf %132, %129 : vector<8x8xf32>
    %134 = arith.select %131, %129, %133 : vector<8x8xi1>, vector<8x8xf32>
    %135 = arith.mulf %14, %134 : vector<8x8xf32>
    %cst_46 = arith.constant dense<0.000000e+00> : vector<8xf32>
    %136 = vector.multi_reduction <add>, %135, %cst_46 [1] : vector<8x8xf32> to vector<8xf32>
    %137 = vector.shape_cast %136 : vector<8xf32> to vector<8x1xf32>
    %138 = vector.extract_strided_slice %41 {offsets = [0, 4], sizes = [8, 1], strides = [1, 1]} : vector<8x50xf32> to vector<8x1xf32>
    %139 = vector.broadcast %138 : vector<8x1xf32> to vector<8x8xf32>
    %140 = vector.broadcast %15 : vector<1x8xf32> to vector<8x8xf32>
    %141 = arith.mulf %139, %140 : vector<8x8xf32>
    %c4 = arith.constant 4 : index
    %142 = memref.load %arg9[%c4] : memref<50xf32, #tpu.memory_space<smem>>
    %143 = vector.broadcast %142 : f32 to vector<8x8xf32>
    %144 = arith.mulf %143, %39 : vector<8x8xf32>
    %145 = arith.addf %141, %144 : vector<8x8xf32>
    %c4_47 = arith.constant 4 : index
    %146 = memref.load %arg10[%c4_47] : memref<50xf32, #tpu.memory_space<smem>>
    %147 = vector.broadcast %146 : f32 to vector<8x8xf32>
    %148 = arith.mulf %147, %32 : vector<8x8xf32>
    %149 = arith.addf %145, %148 : vector<8x8xf32>
    %c4_48 = arith.constant 4 : index
    %c0_49 = arith.constant 0 : index
    %150 = vector.load %arg22[%c4_48, %c0_49] : memref<50x8xf32, #tpu.memory_space<vmem>>, vector<1x8xf32>
    %151 = vector.broadcast %150 : vector<1x8xf32> to vector<8x8xf32>
    %152 = arith.addf %149, %151 : vector<8x8xf32>
    %153 = arith.mulf %14, %152 : vector<8x8xf32>
    %cst_50 = arith.constant 0.000000e+00 : f32
    %154 = vector.broadcast %cst_50 : f32 to vector<8x8xf32>
    %155 = arith.cmpf oge, %153, %154 : vector<8x8xf32>
    %cst_51 = arith.constant 5.000000e-02 : f32
    %156 = vector.broadcast %cst_51 : f32 to vector<8x8xf32>
    %157 = arith.mulf %156, %153 : vector<8x8xf32>
    %158 = arith.select %155, %153, %157 : vector<8x8xi1>, vector<8x8xf32>
    %159 = arith.mulf %14, %158 : vector<8x8xf32>
    %cst_52 = arith.constant dense<0.000000e+00> : vector<8xf32>
    %160 = vector.multi_reduction <add>, %159, %cst_52 [1] : vector<8x8xf32> to vector<8xf32>
    %161 = vector.shape_cast %160 : vector<8xf32> to vector<8x1xf32>
    %162 = vector.extract_strided_slice %41 {offsets = [0, 5], sizes = [8, 1], strides = [1, 1]} : vector<8x50xf32> to vector<8x1xf32>
    %163 = vector.broadcast %162 : vector<8x1xf32> to vector<8x8xf32>
    %164 = vector.broadcast %15 : vector<1x8xf32> to vector<8x8xf32>
    %165 = arith.mulf %163, %164 : vector<8x8xf32>
    %c5 = arith.constant 5 : index
    %166 = memref.load %arg9[%c5] : memref<50xf32, #tpu.memory_space<smem>>
    %167 = vector.broadcast %166 : f32 to vector<8x8xf32>
    %168 = arith.mulf %167, %39 : vector<8x8xf32>
    %169 = arith.addf %165, %168 : vector<8x8xf32>
    %c5_53 = arith.constant 5 : index
    %170 = memref.load %arg10[%c5_53] : memref<50xf32, #tpu.memory_space<smem>>
    %171 = vector.broadcast %170 : f32 to vector<8x8xf32>
    %172 = arith.mulf %171, %32 : vector<8x8xf32>
    %173 = arith.addf %169, %172 : vector<8x8xf32>
    %c5_54 = arith.constant 5 : index
    %c0_55 = arith.constant 0 : index
    %174 = vector.load %arg22[%c5_54, %c0_55] : memref<50x8xf32, #tpu.memory_space<vmem>>, vector<1x8xf32>
    %175 = vector.broadcast %174 : vector<1x8xf32> to vector<8x8xf32>
    %176 = arith.addf %173, %175 : vector<8x8xf32>
    %177 = arith.mulf %14, %176 : vector<8x8xf32>
    %cst_56 = arith.constant 0.000000e+00 : f32
    %178 = vector.broadcast %cst_56 : f32 to vector<8x8xf32>
    %179 = arith.cmpf oge, %177, %178 : vector<8x8xf32>
    %cst_57 = arith.constant 5.000000e-02 : f32
    %180 = vector.broadcast %cst_57 : f32 to vector<8x8xf32>
    %181 = arith.mulf %180, %177 : vector<8x8xf32>
    %182 = arith.select %179, %177, %181 : vector<8x8xi1>, vector<8x8xf32>
    %183 = arith.mulf %14, %182 : vector<8x8xf32>
    %cst_58 = arith.constant dense<0.000000e+00> : vector<8xf32>
    %184 = vector.multi_reduction <add>, %183, %cst_58 [1] : vector<8x8xf32> to vector<8xf32>
    %185 = vector.shape_cast %184 : vector<8xf32> to vector<8x1xf32>
    %186 = vector.extract_strided_slice %41 {offsets = [0, 6], sizes = [8, 1], strides = [1, 1]} : vector<8x50xf32> to vector<8x1xf32>
    %187 = vector.broadcast %186 : vector<8x1xf32> to vector<8x8xf32>
    %188 = vector.broadcast %15 : vector<1x8xf32> to vector<8x8xf32>
    %189 = arith.mulf %187, %188 : vector<8x8xf32>
    %c6 = arith.constant 6 : index
    %190 = memref.load %arg9[%c6] : memref<50xf32, #tpu.memory_space<smem>>
    %191 = vector.broadcast %190 : f32 to vector<8x8xf32>
    %192 = arith.mulf %191, %39 : vector<8x8xf32>
    %193 = arith.addf %189, %192 : vector<8x8xf32>
    %c6_59 = arith.constant 6 : index
    %194 = memref.load %arg10[%c6_59] : memref<50xf32, #tpu.memory_space<smem>>
    %195 = vector.broadcast %194 : f32 to vector<8x8xf32>
    %196 = arith.mulf %195, %32 : vector<8x8xf32>
    %197 = arith.addf %193, %196 : vector<8x8xf32>
    %c6_60 = arith.constant 6 : index
    %c0_61 = arith.constant 0 : index
    %198 = vector.load %arg22[%c6_60, %c0_61] : memref<50x8xf32, #tpu.memory_space<vmem>>, vector<1x8xf32>
    %199 = vector.broadcast %198 : vector<1x8xf32> to vector<8x8xf32>
    %200 = arith.addf %197, %199 : vector<8x8xf32>
    %201 = arith.mulf %14, %200 : vector<8x8xf32>
    %cst_62 = arith.constant 0.000000e+00 : f32
    %202 = vector.broadcast %cst_62 : f32 to vector<8x8xf32>
    %203 = arith.cmpf oge, %201, %202 : vector<8x8xf32>
    %cst_63 = arith.constant 5.000000e-02 : f32
    %204 = vector.broadcast %cst_63 : f32 to vector<8x8xf32>
    %205 = arith.mulf %204, %201 : vector<8x8xf32>
    %206 = arith.select %203, %201, %205 : vector<8x8xi1>, vector<8x8xf32>
    %207 = arith.mulf %14, %206 : vector<8x8xf32>
    %cst_64 = arith.constant dense<0.000000e+00> : vector<8xf32>
    %208 = vector.multi_reduction <add>, %207, %cst_64 [1] : vector<8x8xf32> to vector<8xf32>
    %209 = vector.shape_cast %208 : vector<8xf32> to vector<8x1xf32>
    %210 = vector.extract_strided_slice %41 {offsets = [0, 7], sizes = [8, 1], strides = [1, 1]} : vector<8x50xf32> to vector<8x1xf32>
    %211 = vector.broadcast %210 : vector<8x1xf32> to vector<8x8xf32>
    %212 = vector.broadcast %15 : vector<1x8xf32> to vector<8x8xf32>
    %213 = arith.mulf %211, %212 : vector<8x8xf32>
    %c7 = arith.constant 7 : index
    %214 = memref.load %arg9[%c7] : memref<50xf32, #tpu.memory_space<smem>>
    %215 = vector.broadcast %214 : f32 to vector<8x8xf32>
    %216 = arith.mulf %215, %39 : vector<8x8xf32>
    %217 = arith.addf %213, %216 : vector<8x8xf32>
    %c7_65 = arith.constant 7 : index
    %218 = memref.load %arg10[%c7_65] : memref<50xf32, #tpu.memory_space<smem>>
    %219 = vector.broadcast %218 : f32 to vector<8x8xf32>
    %220 = arith.mulf %219, %32 : vector<8x8xf32>
    %221 = arith.addf %217, %220 : vector<8x8xf32>
    %c7_66 = arith.constant 7 : index
    %c0_67 = arith.constant 0 : index
    %222 = vector.load %arg22[%c7_66, %c0_67] : memref<50x8xf32, #tpu.memory_space<vmem>>, vector<1x8xf32>
    %223 = vector.broadcast %222 : vector<1x8xf32> to vector<8x8xf32>
    %224 = arith.addf %221, %223 : vector<8x8xf32>
    %225 = arith.mulf %14, %224 : vector<8x8xf32>
    %cst_68 = arith.constant 0.000000e+00 : f32
    %226 = vector.broadcast %cst_68 : f32 to vector<8x8xf32>
    %227 = arith.cmpf oge, %225, %226 : vector<8x8xf32>
    %cst_69 = arith.constant 5.000000e-02 : f32
    %228 = vector.broadcast %cst_69 : f32 to vector<8x8xf32>
    %229 = arith.mulf %228, %225 : vector<8x8xf32>
    %230 = arith.select %227, %225, %229 : vector<8x8xi1>, vector<8x8xf32>
    %231 = arith.mulf %14, %230 : vector<8x8xf32>
    %cst_70 = arith.constant dense<0.000000e+00> : vector<8xf32>
    %232 = vector.multi_reduction <add>, %231, %cst_70 [1] : vector<8x8xf32> to vector<8xf32>
    %233 = vector.shape_cast %232 : vector<8xf32> to vector<8x1xf32>
    %234 = vector.extract_strided_slice %41 {offsets = [0, 8], sizes = [8, 1], strides = [1, 1]} : vector<8x50xf32> to vector<8x1xf32>
    %235 = vector.broadcast %234 : vector<8x1xf32> to vector<8x8xf32>
    %236 = vector.broadcast %15 : vector<1x8xf32> to vector<8x8xf32>
    %237 = arith.mulf %235, %236 : vector<8x8xf32>
    %c8 = arith.constant 8 : index
    %238 = memref.load %arg9[%c8] : memref<50xf32, #tpu.memory_space<smem>>
    %239 = vector.broadcast %238 : f32 to vector<8x8xf32>
    %240 = arith.mulf %239, %39 : vector<8x8xf32>
    %241 = arith.addf %237, %240 : vector<8x8xf32>
    %c8_71 = arith.constant 8 : index
    %242 = memref.load %arg10[%c8_71] : memref<50xf32, #tpu.memory_space<smem>>
    %243 = vector.broadcast %242 : f32 to vector<8x8xf32>
    %244 = arith.mulf %243, %32 : vector<8x8xf32>
    %245 = arith.addf %241, %244 : vector<8x8xf32>
    %c8_72 = arith.constant 8 : index
    %c0_73 = arith.constant 0 : index
    %246 = vector.load %arg22[%c8_72, %c0_73] : memref<50x8xf32, #tpu.memory_space<vmem>>, vector<1x8xf32>
    %247 = vector.broadcast %246 : vector<1x8xf32> to vector<8x8xf32>
    %248 = arith.addf %245, %247 : vector<8x8xf32>
    %249 = arith.mulf %14, %248 : vector<8x8xf32>
    %cst_74 = arith.constant 0.000000e+00 : f32
    %250 = vector.broadcast %cst_74 : f32 to vector<8x8xf32>
    %251 = arith.cmpf oge, %249, %250 : vector<8x8xf32>
    %cst_75 = arith.constant 5.000000e-02 : f32
    %252 = vector.broadcast %cst_75 : f32 to vector<8x8xf32>
    %253 = arith.mulf %252, %249 : vector<8x8xf32>
    %254 = arith.select %251, %249, %253 : vector<8x8xi1>, vector<8x8xf32>
    %255 = arith.mulf %14, %254 : vector<8x8xf32>
    %cst_76 = arith.constant dense<0.000000e+00> : vector<8xf32>
    %256 = vector.multi_reduction <add>, %255, %cst_76 [1] : vector<8x8xf32> to vector<8xf32>
    %257 = vector.shape_cast %256 : vector<8xf32> to vector<8x1xf32>
    %258 = vector.extract_strided_slice %41 {offsets = [0, 9], sizes = [8, 1], strides = [1, 1]} : vector<8x50xf32> to vector<8x1xf32>
    %259 = vector.broadcast %258 : vector<8x1xf32> to vector<8x8xf32>
    %260 = vector.broadcast %15 : vector<1x8xf32> to vector<8x8xf32>
    %261 = arith.mulf %259, %260 : vector<8x8xf32>
    %c9 = arith.constant 9 : index
    %262 = memref.load %arg9[%c9] : memref<50xf32, #tpu.memory_space<smem>>
    %263 = vector.broadcast %262 : f32 to vector<8x8xf32>
    %264 = arith.mulf %263, %39 : vector<8x8xf32>
    %265 = arith.addf %261, %264 : vector<8x8xf32>
    %c9_77 = arith.constant 9 : index
    %266 = memref.load %arg10[%c9_77] : memref<50xf32, #tpu.memory_space<smem>>
    %267 = vector.broadcast %266 : f32 to vector<8x8xf32>
    %268 = arith.mulf %267, %32 : vector<8x8xf32>
    %269 = arith.addf %265, %268 : vector<8x8xf32>
    %c9_78 = arith.constant 9 : index
    %c0_79 = arith.constant 0 : index
    %270 = vector.load %arg22[%c9_78, %c0_79] : memref<50x8xf32, #tpu.memory_space<vmem>>, vector<1x8xf32>
    %271 = vector.broadcast %270 : vector<1x8xf32> to vector<8x8xf32>
    %272 = arith.addf %269, %271 : vector<8x8xf32>
    %273 = arith.mulf %14, %272 : vector<8x8xf32>
    %cst_80 = arith.constant 0.000000e+00 : f32
    %274 = vector.broadcast %cst_80 : f32 to vector<8x8xf32>
    %275 = arith.cmpf oge, %273, %274 : vector<8x8xf32>
    %cst_81 = arith.constant 5.000000e-02 : f32
    %276 = vector.broadcast %cst_81 : f32 to vector<8x8xf32>
    %277 = arith.mulf %276, %273 : vector<8x8xf32>
    %278 = arith.select %275, %273, %277 : vector<8x8xi1>, vector<8x8xf32>
    %279 = arith.mulf %14, %278 : vector<8x8xf32>
    %cst_82 = arith.constant dense<0.000000e+00> : vector<8xf32>
    %280 = vector.multi_reduction <add>, %279, %cst_82 [1] : vector<8x8xf32> to vector<8xf32>
    %281 = vector.shape_cast %280 : vector<8xf32> to vector<8x1xf32>
    %282 = vector.extract_strided_slice %41 {offsets = [0, 10], sizes = [8, 1], strides = [1, 1]} : vector<8x50xf32> to vector<8x1xf32>
    %283 = vector.broadcast %282 : vector<8x1xf32> to vector<8x8xf32>
    %284 = vector.broadcast %15 : vector<1x8xf32> to vector<8x8xf32>
    %285 = arith.mulf %283, %284 : vector<8x8xf32>
    %c10 = arith.constant 10 : index
    %286 = memref.load %arg9[%c10] : memref<50xf32, #tpu.memory_space<smem>>
    %287 = vector.broadcast %286 : f32 to vector<8x8xf32>
    %288 = arith.mulf %287, %39 : vector<8x8xf32>
    %289 = arith.addf %285, %288 : vector<8x8xf32>
    %c10_83 = arith.constant 10 : index
    %290 = memref.load %arg10[%c10_83] : memref<50xf32, #tpu.memory_space<smem>>
    %291 = vector.broadcast %290 : f32 to vector<8x8xf32>
    %292 = arith.mulf %291, %32 : vector<8x8xf32>
    %293 = arith.addf %289, %292 : vector<8x8xf32>
    %c10_84 = arith.constant 10 : index
    %c0_85 = arith.constant 0 : index
    %294 = vector.load %arg22[%c10_84, %c0_85] : memref<50x8xf32, #tpu.memory_space<vmem>>, vector<1x8xf32>
    %295 = vector.broadcast %294 : vector<1x8xf32> to vector<8x8xf32>
    %296 = arith.addf %293, %295 : vector<8x8xf32>
    %297 = arith.mulf %14, %296 : vector<8x8xf32>
    %cst_86 = arith.constant 0.000000e+00 : f32
    %298 = vector.broadcast %cst_86 : f32 to vector<8x8xf32>
    %299 = arith.cmpf oge, %297, %298 : vector<8x8xf32>
    %cst_87 = arith.constant 5.000000e-02 : f32
    %300 = vector.broadcast %cst_87 : f32 to vector<8x8xf32>
    %301 = arith.mulf %300, %297 : vector<8x8xf32>
    %302 = arith.select %299, %297, %301 : vector<8x8xi1>, vector<8x8xf32>
    %303 = arith.mulf %14, %302 : vector<8x8xf32>
    %cst_88 = arith.constant dense<0.000000e+00> : vector<8xf32>
    %304 = vector.multi_reduction <add>, %303, %cst_88 [1] : vector<8x8xf32> to vector<8xf32>
    %305 = vector.shape_cast %304 : vector<8xf32> to vector<8x1xf32>
    %306 = vector.extract_strided_slice %41 {offsets = [0, 11], sizes = [8, 1], strides = [1, 1]} : vector<8x50xf32> to vector<8x1xf32>
    %307 = vector.broadcast %306 : vector<8x1xf32> to vector<8x8xf32>
    %308 = vector.broadcast %15 : vector<1x8xf32> to vector<8x8xf32>
    %309 = arith.mulf %307, %308 : vector<8x8xf32>
    %c11 = arith.constant 11 : index
    %310 = memref.load %arg9[%c11] : memref<50xf32, #tpu.memory_space<smem>>
    %311 = vector.broadcast %310 : f32 to vector<8x8xf32>
    %312 = arith.mulf %311, %39 : vector<8x8xf32>
    %313 = arith.addf %309, %312 : vector<8x8xf32>
    %c11_89 = arith.constant 11 : index
    %314 = memref.load %arg10[%c11_89] : memref<50xf32, #tpu.memory_space<smem>>
    %315 = vector.broadcast %314 : f32 to vector<8x8xf32>
    %316 = arith.mulf %315, %32 : vector<8x8xf32>
    %317 = arith.addf %313, %316 : vector<8x8xf32>
    %c11_90 = arith.constant 11 : index
    %c0_91 = arith.constant 0 : index
    %318 = vector.load %arg22[%c11_90, %c0_91] : memref<50x8xf32, #tpu.memory_space<vmem>>, vector<1x8xf32>
    %319 = vector.broadcast %318 : vector<1x8xf32> to vector<8x8xf32>
    %320 = arith.addf %317, %319 : vector<8x8xf32>
    %321 = arith.mulf %14, %320 : vector<8x8xf32>
    %cst_92 = arith.constant 0.000000e+00 : f32
    %322 = vector.broadcast %cst_92 : f32 to vector<8x8xf32>
    %323 = arith.cmpf oge, %321, %322 : vector<8x8xf32>
    %cst_93 = arith.constant 5.000000e-02 : f32
    %324 = vector.broadcast %cst_93 : f32 to vector<8x8xf32>
    %325 = arith.mulf %324, %321 : vector<8x8xf32>
    %326 = arith.select %323, %321, %325 : vector<8x8xi1>, vector<8x8xf32>
    %327 = arith.mulf %14, %326 : vector<8x8xf32>
    %cst_94 = arith.constant dense<0.000000e+00> : vector<8xf32>
    %328 = vector.multi_reduction <add>, %327, %cst_94 [1] : vector<8x8xf32> to vector<8xf32>
    %329 = vector.shape_cast %328 : vector<8xf32> to vector<8x1xf32>
    %330 = vector.extract_strided_slice %41 {offsets = [0, 12], sizes = [8, 1], strides = [1, 1]} : vector<8x50xf32> to vector<8x1xf32>
    %331 = vector.broadcast %330 : vector<8x1xf32> to vector<8x8xf32>
    %332 = vector.broadcast %15 : vector<1x8xf32> to vector<8x8xf32>
    %333 = arith.mulf %331, %332 : vector<8x8xf32>
    %c12 = arith.constant 12 : index
    %334 = memref.load %arg9[%c12] : memref<50xf32, #tpu.memory_space<smem>>
    %335 = vector.broadcast %334 : f32 to vector<8x8xf32>
    %336 = arith.mulf %335, %39 : vector<8x8xf32>
    %337 = arith.addf %333, %336 : vector<8x8xf32>
    %c12_95 = arith.constant 12 : index
    %338 = memref.load %arg10[%c12_95] : memref<50xf32, #tpu.memory_space<smem>>
    %339 = vector.broadcast %338 : f32 to vector<8x8xf32>
    %340 = arith.mulf %339, %32 : vector<8x8xf32>
    %341 = arith.addf %337, %340 : vector<8x8xf32>
    %c12_96 = arith.constant 12 : index
    %c0_97 = arith.constant 0 : index
    %342 = vector.load %arg22[%c12_96, %c0_97] : memref<50x8xf32, #tpu.memory_space<vmem>>, vector<1x8xf32>
    %343 = vector.broadcast %342 : vector<1x8xf32> to vector<8x8xf32>
    %344 = arith.addf %341, %343 : vector<8x8xf32>
    %345 = arith.mulf %14, %344 : vector<8x8xf32>
    %cst_98 = arith.constant 0.000000e+00 : f32
    %346 = vector.broadcast %cst_98 : f32 to vector<8x8xf32>
    %347 = arith.cmpf oge, %345, %346 : vector<8x8xf32>
    %cst_99 = arith.constant 5.000000e-02 : f32
    %348 = vector.broadcast %cst_99 : f32 to vector<8x8xf32>
    %349 = arith.mulf %348, %345 : vector<8x8xf32>
    %350 = arith.select %347, %345, %349 : vector<8x8xi1>, vector<8x8xf32>
    %351 = arith.mulf %14, %350 : vector<8x8xf32>
    %cst_100 = arith.constant dense<0.000000e+00> : vector<8xf32>
    %352 = vector.multi_reduction <add>, %351, %cst_100 [1] : vector<8x8xf32> to vector<8xf32>
    %353 = vector.shape_cast %352 : vector<8xf32> to vector<8x1xf32>
    %354 = vector.extract_strided_slice %41 {offsets = [0, 13], sizes = [8, 1], strides = [1, 1]} : vector<8x50xf32> to vector<8x1xf32>
    %355 = vector.broadcast %354 : vector<8x1xf32> to vector<8x8xf32>
    %356 = vector.broadcast %15 : vector<1x8xf32> to vector<8x8xf32>
    %357 = arith.mulf %355, %356 : vector<8x8xf32>
    %c13 = arith.constant 13 : index
    %358 = memref.load %arg9[%c13] : memref<50xf32, #tpu.memory_space<smem>>
    %359 = vector.broadcast %358 : f32 to vector<8x8xf32>
    %360 = arith.mulf %359, %39 : vector<8x8xf32>
    %361 = arith.addf %357, %360 : vector<8x8xf32>
    %c13_101 = arith.constant 13 : index
    %362 = memref.load %arg10[%c13_101] : memref<50xf32, #tpu.memory_space<smem>>
    %363 = vector.broadcast %362 : f32 to vector<8x8xf32>
    %364 = arith.mulf %363, %32 : vector<8x8xf32>
    %365 = arith.addf %361, %364 : vector<8x8xf32>
    %c13_102 = arith.constant 13 : index
    %c0_103 = arith.constant 0 : index
    %366 = vector.load %arg22[%c13_102, %c0_103] : memref<50x8xf32, #tpu.memory_space<vmem>>, vector<1x8xf32>
    %367 = vector.broadcast %366 : vector<1x8xf32> to vector<8x8xf32>
    %368 = arith.addf %365, %367 : vector<8x8xf32>
    %369 = arith.mulf %14, %368 : vector<8x8xf32>
    %cst_104 = arith.constant 0.000000e+00 : f32
    %370 = vector.broadcast %cst_104 : f32 to vector<8x8xf32>
    %371 = arith.cmpf oge, %369, %370 : vector<8x8xf32>
    %cst_105 = arith.constant 5.000000e-02 : f32
    %372 = vector.broadcast %cst_105 : f32 to vector<8x8xf32>
    %373 = arith.mulf %372, %369 : vector<8x8xf32>
    %374 = arith.select %371, %369, %373 : vector<8x8xi1>, vector<8x8xf32>
    %375 = arith.mulf %14, %374 : vector<8x8xf32>
    %cst_106 = arith.constant dense<0.000000e+00> : vector<8xf32>
    %376 = vector.multi_reduction <add>, %375, %cst_106 [1] : vector<8x8xf32> to vector<8xf32>
    %377 = vector.shape_cast %376 : vector<8xf32> to vector<8x1xf32>
    %378 = vector.extract_strided_slice %41 {offsets = [0, 14], sizes = [8, 1], strides = [1, 1]} : vector<8x50xf32> to vector<8x1xf32>
    %379 = vector.broadcast %378 : vector<8x1xf32> to vector<8x8xf32>
    %380 = vector.broadcast %15 : vector<1x8xf32> to vector<8x8xf32>
    %381 = arith.mulf %379, %380 : vector<8x8xf32>
    %c14 = arith.constant 14 : index
    %382 = memref.load %arg9[%c14] : memref<50xf32, #tpu.memory_space<smem>>
    %383 = vector.broadcast %382 : f32 to vector<8x8xf32>
    %384 = arith.mulf %383, %39 : vector<8x8xf32>
    %385 = arith.addf %381, %384 : vector<8x8xf32>
    %c14_107 = arith.constant 14 : index
    %386 = memref.load %arg10[%c14_107] : memref<50xf32, #tpu.memory_space<smem>>
    %387 = vector.broadcast %386 : f32 to vector<8x8xf32>
    %388 = arith.mulf %387, %32 : vector<8x8xf32>
    %389 = arith.addf %385, %388 : vector<8x8xf32>
    %c14_108 = arith.constant 14 : index
    %c0_109 = arith.constant 0 : index
    %390 = vector.load %arg22[%c14_108, %c0_109] : memref<50x8xf32, #tpu.memory_space<vmem>>, vector<1x8xf32>
    %391 = vector.broadcast %390 : vector<1x8xf32> to vector<8x8xf32>
    %392 = arith.addf %389, %391 : vector<8x8xf32>
    %393 = arith.mulf %14, %392 : vector<8x8xf32>
    %cst_110 = arith.constant 0.000000e+00 : f32
    %394 = vector.broadcast %cst_110 : f32 to vector<8x8xf32>
    %395 = arith.cmpf oge, %393, %394 : vector<8x8xf32>
    %cst_111 = arith.constant 5.000000e-02 : f32
    %396 = vector.broadcast %cst_111 : f32 to vector<8x8xf32>
    %397 = arith.mulf %396, %393 : vector<8x8xf32>
    %398 = arith.select %395, %393, %397 : vector<8x8xi1>, vector<8x8xf32>
    %399 = arith.mulf %14, %398 : vector<8x8xf32>
    %cst_112 = arith.constant dense<0.000000e+00> : vector<8xf32>
    %400 = vector.multi_reduction <add>, %399, %cst_112 [1] : vector<8x8xf32> to vector<8xf32>
    %401 = vector.shape_cast %400 : vector<8xf32> to vector<8x1xf32>
    %402 = vector.extract_strided_slice %41 {offsets = [0, 15], sizes = [8, 1], strides = [1, 1]} : vector<8x50xf32> to vector<8x1xf32>
    %403 = vector.broadcast %402 : vector<8x1xf32> to vector<8x8xf32>
    %404 = vector.broadcast %15 : vector<1x8xf32> to vector<8x8xf32>
    %405 = arith.mulf %403, %404 : vector<8x8xf32>
    %c15 = arith.constant 15 : index
    %406 = memref.load %arg9[%c15] : memref<50xf32, #tpu.memory_space<smem>>
    %407 = vector.broadcast %406 : f32 to vector<8x8xf32>
    %408 = arith.mulf %407, %39 : vector<8x8xf32>
    %409 = arith.addf %405, %408 : vector<8x8xf32>
    %c15_113 = arith.constant 15 : index
    %410 = memref.load %arg10[%c15_113] : memref<50xf32, #tpu.memory_space<smem>>
    %411 = vector.broadcast %410 : f32 to vector<8x8xf32>
    %412 = arith.mulf %411, %32 : vector<8x8xf32>
    %413 = arith.addf %409, %412 : vector<8x8xf32>
    %c15_114 = arith.constant 15 : index
    %c0_115 = arith.constant 0 : index
    %414 = vector.load %arg22[%c15_114, %c0_115] : memref<50x8xf32, #tpu.memory_space<vmem>>, vector<1x8xf32>
    %415 = vector.broadcast %414 : vector<1x8xf32> to vector<8x8xf32>
    %416 = arith.addf %413, %415 : vector<8x8xf32>
    %417 = arith.mulf %14, %416 : vector<8x8xf32>
    %cst_116 = arith.constant 0.000000e+00 : f32
    %418 = vector.broadcast %cst_116 : f32 to vector<8x8xf32>
    %419 = arith.cmpf oge, %417, %418 : vector<8x8xf32>
    %cst_117 = arith.constant 5.000000e-02 : f32
    %420 = vector.broadcast %cst_117 : f32 to vector<8x8xf32>
    %421 = arith.mulf %420, %417 : vector<8x8xf32>
    %422 = arith.select %419, %417, %421 : vector<8x8xi1>, vector<8x8xf32>
    %423 = arith.mulf %14, %422 : vector<8x8xf32>
    %cst_118 = arith.constant dense<0.000000e+00> : vector<8xf32>
    %424 = vector.multi_reduction <add>, %423, %cst_118 [1] : vector<8x8xf32> to vector<8xf32>
    %425 = vector.shape_cast %424 : vector<8xf32> to vector<8x1xf32>
    %426 = vector.extract_strided_slice %41 {offsets = [0, 16], sizes = [8, 1], strides = [1, 1]} : vector<8x50xf32> to vector<8x1xf32>
    %427 = vector.broadcast %426 : vector<8x1xf32> to vector<8x8xf32>
    %428 = vector.broadcast %15 : vector<1x8xf32> to vector<8x8xf32>
    %429 = arith.mulf %427, %428 : vector<8x8xf32>
    %c16 = arith.constant 16 : index
    %430 = memref.load %arg9[%c16] : memref<50xf32, #tpu.memory_space<smem>>
    %431 = vector.broadcast %430 : f32 to vector<8x8xf32>
    %432 = arith.mulf %431, %39 : vector<8x8xf32>
    %433 = arith.addf %429, %432 : vector<8x8xf32>
    %c16_119 = arith.constant 16 : index
    %434 = memref.load %arg10[%c16_119] : memref<50xf32, #tpu.memory_space<smem>>
    %435 = vector.broadcast %434 : f32 to vector<8x8xf32>
    %436 = arith.mulf %435, %32 : vector<8x8xf32>
    %437 = arith.addf %433, %436 : vector<8x8xf32>
    %c16_120 = arith.constant 16 : index
    %c0_121 = arith.constant 0 : index
    %438 = vector.load %arg22[%c16_120, %c0_121] : memref<50x8xf32, #tpu.memory_space<vmem>>, vector<1x8xf32>
    %439 = vector.broadcast %438 : vector<1x8xf32> to vector<8x8xf32>
    %440 = arith.addf %437, %439 : vector<8x8xf32>
    %441 = arith.mulf %14, %440 : vector<8x8xf32>
    %cst_122 = arith.constant 0.000000e+00 : f32
    %442 = vector.broadcast %cst_122 : f32 to vector<8x8xf32>
    %443 = arith.cmpf oge, %441, %442 : vector<8x8xf32>
    %cst_123 = arith.constant 5.000000e-02 : f32
    %444 = vector.broadcast %cst_123 : f32 to vector<8x8xf32>
    %445 = arith.mulf %444, %441 : vector<8x8xf32>
    %446 = arith.select %443, %441, %445 : vector<8x8xi1>, vector<8x8xf32>
    %447 = arith.mulf %14, %446 : vector<8x8xf32>
    %cst_124 = arith.constant dense<0.000000e+00> : vector<8xf32>
    %448 = vector.multi_reduction <add>, %447, %cst_124 [1] : vector<8x8xf32> to vector<8xf32>
    %449 = vector.shape_cast %448 : vector<8xf32> to vector<8x1xf32>
    %450 = vector.extract_strided_slice %41 {offsets = [0, 17], sizes = [8, 1], strides = [1, 1]} : vector<8x50xf32> to vector<8x1xf32>
    %451 = vector.broadcast %450 : vector<8x1xf32> to vector<8x8xf32>
    %452 = vector.broadcast %15 : vector<1x8xf32> to vector<8x8xf32>
    %453 = arith.mulf %451, %452 : vector<8x8xf32>
    %c17 = arith.constant 17 : index
    %454 = memref.load %arg9[%c17] : memref<50xf32, #tpu.memory_space<smem>>
    %455 = vector.broadcast %454 : f32 to vector<8x8xf32>
    %456 = arith.mulf %455, %39 : vector<8x8xf32>
    %457 = arith.addf %453, %456 : vector<8x8xf32>
    %c17_125 = arith.constant 17 : index
    %458 = memref.load %arg10[%c17_125] : memref<50xf32, #tpu.memory_space<smem>>
    %459 = vector.broadcast %458 : f32 to vector<8x8xf32>
    %460 = arith.mulf %459, %32 : vector<8x8xf32>
    %461 = arith.addf %457, %460 : vector<8x8xf32>
    %c17_126 = arith.constant 17 : index
    %c0_127 = arith.constant 0 : index
    %462 = vector.load %arg22[%c17_126, %c0_127] : memref<50x8xf32, #tpu.memory_space<vmem>>, vector<1x8xf32>
    %463 = vector.broadcast %462 : vector<1x8xf32> to vector<8x8xf32>
    %464 = arith.addf %461, %463 : vector<8x8xf32>
    %465 = arith.mulf %14, %464 : vector<8x8xf32>
    %cst_128 = arith.constant 0.000000e+00 : f32
    %466 = vector.broadcast %cst_128 : f32 to vector<8x8xf32>
    %467 = arith.cmpf oge, %465, %466 : vector<8x8xf32>
    %cst_129 = arith.constant 5.000000e-02 : f32
    %468 = vector.broadcast %cst_129 : f32 to vector<8x8xf32>
    %469 = arith.mulf %468, %465 : vector<8x8xf32>
    %470 = arith.select %467, %465, %469 : vector<8x8xi1>, vector<8x8xf32>
    %471 = arith.mulf %14, %470 : vector<8x8xf32>
    %cst_130 = arith.constant dense<0.000000e+00> : vector<8xf32>
    %472 = vector.multi_reduction <add>, %471, %cst_130 [1] : vector<8x8xf32> to vector<8xf32>
    %473 = vector.shape_cast %472 : vector<8xf32> to vector<8x1xf32>
    %474 = vector.extract_strided_slice %41 {offsets = [0, 18], sizes = [8, 1], strides = [1, 1]} : vector<8x50xf32> to vector<8x1xf32>
    %475 = vector.broadcast %474 : vector<8x1xf32> to vector<8x8xf32>
    %476 = vector.broadcast %15 : vector<1x8xf32> to vector<8x8xf32>
    %477 = arith.mulf %475, %476 : vector<8x8xf32>
    %c18 = arith.constant 18 : index
    %478 = memref.load %arg9[%c18] : memref<50xf32, #tpu.memory_space<smem>>
    %479 = vector.broadcast %478 : f32 to vector<8x8xf32>
    %480 = arith.mulf %479, %39 : vector<8x8xf32>
    %481 = arith.addf %477, %480 : vector<8x8xf32>
    %c18_131 = arith.constant 18 : index
    %482 = memref.load %arg10[%c18_131] : memref<50xf32, #tpu.memory_space<smem>>
    %483 = vector.broadcast %482 : f32 to vector<8x8xf32>
    %484 = arith.mulf %483, %32 : vector<8x8xf32>
    %485 = arith.addf %481, %484 : vector<8x8xf32>
    %c18_132 = arith.constant 18 : index
    %c0_133 = arith.constant 0 : index
    %486 = vector.load %arg22[%c18_132, %c0_133] : memref<50x8xf32, #tpu.memory_space<vmem>>, vector<1x8xf32>
    %487 = vector.broadcast %486 : vector<1x8xf32> to vector<8x8xf32>
    %488 = arith.addf %485, %487 : vector<8x8xf32>
    %489 = arith.mulf %14, %488 : vector<8x8xf32>
    %cst_134 = arith.constant 0.000000e+00 : f32
    %490 = vector.broadcast %cst_134 : f32 to vector<8x8xf32>
    %491 = arith.cmpf oge, %489, %490 : vector<8x8xf32>
    %cst_135 = arith.constant 5.000000e-02 : f32
    %492 = vector.broadcast %cst_135 : f32 to vector<8x8xf32>
    %493 = arith.mulf %492, %489 : vector<8x8xf32>
    %494 = arith.select %491, %489, %493 : vector<8x8xi1>, vector<8x8xf32>
    %495 = arith.mulf %14, %494 : vector<8x8xf32>
    %cst_136 = arith.constant dense<0.000000e+00> : vector<8xf32>
    %496 = vector.multi_reduction <add>, %495, %cst_136 [1] : vector<8x8xf32> to vector<8xf32>
    %497 = vector.shape_cast %496 : vector<8xf32> to vector<8x1xf32>
    %498 = vector.extract_strided_slice %41 {offsets = [0, 19], sizes = [8, 1], strides = [1, 1]} : vector<8x50xf32> to vector<8x1xf32>
    %499 = vector.broadcast %498 : vector<8x1xf32> to vector<8x8xf32>
    %500 = vector.broadcast %15 : vector<1x8xf32> to vector<8x8xf32>
    %501 = arith.mulf %499, %500 : vector<8x8xf32>
    %c19 = arith.constant 19 : index
    %502 = memref.load %arg9[%c19] : memref<50xf32, #tpu.memory_space<smem>>
    %503 = vector.broadcast %502 : f32 to vector<8x8xf32>
    %504 = arith.mulf %503, %39 : vector<8x8xf32>
    %505 = arith.addf %501, %504 : vector<8x8xf32>
    %c19_137 = arith.constant 19 : index
    %506 = memref.load %arg10[%c19_137] : memref<50xf32, #tpu.memory_space<smem>>
    %507 = vector.broadcast %506 : f32 to vector<8x8xf32>
    %508 = arith.mulf %507, %32 : vector<8x8xf32>
    %509 = arith.addf %505, %508 : vector<8x8xf32>
    %c19_138 = arith.constant 19 : index
    %c0_139 = arith.constant 0 : index
    %510 = vector.load %arg22[%c19_138, %c0_139] : memref<50x8xf32, #tpu.memory_space<vmem>>, vector<1x8xf32>
    %511 = vector.broadcast %510 : vector<1x8xf32> to vector<8x8xf32>
    %512 = arith.addf %509, %511 : vector<8x8xf32>
    %513 = arith.mulf %14, %512 : vector<8x8xf32>
    %cst_140 = arith.constant 0.000000e+00 : f32
    %514 = vector.broadcast %cst_140 : f32 to vector<8x8xf32>
    %515 = arith.cmpf oge, %513, %514 : vector<8x8xf32>
    %cst_141 = arith.constant 5.000000e-02 : f32
    %516 = vector.broadcast %cst_141 : f32 to vector<8x8xf32>
    %517 = arith.mulf %516, %513 : vector<8x8xf32>
    %518 = arith.select %515, %513, %517 : vector<8x8xi1>, vector<8x8xf32>
    %519 = arith.mulf %14, %518 : vector<8x8xf32>
    %cst_142 = arith.constant dense<0.000000e+00> : vector<8xf32>
    %520 = vector.multi_reduction <add>, %519, %cst_142 [1] : vector<8x8xf32> to vector<8xf32>
    %521 = vector.shape_cast %520 : vector<8xf32> to vector<8x1xf32>
    %522 = vector.extract_strided_slice %41 {offsets = [0, 20], sizes = [8, 1], strides = [1, 1]} : vector<8x50xf32> to vector<8x1xf32>
    %523 = vector.broadcast %522 : vector<8x1xf32> to vector<8x8xf32>
    %524 = vector.broadcast %15 : vector<1x8xf32> to vector<8x8xf32>
    %525 = arith.mulf %523, %524 : vector<8x8xf32>
    %c20 = arith.constant 20 : index
    %526 = memref.load %arg9[%c20] : memref<50xf32, #tpu.memory_space<smem>>
    %527 = vector.broadcast %526 : f32 to vector<8x8xf32>
    %528 = arith.mulf %527, %39 : vector<8x8xf32>
    %529 = arith.addf %525, %528 : vector<8x8xf32>
    %c20_143 = arith.constant 20 : index
    %530 = memref.load %arg10[%c20_143] : memref<50xf32, #tpu.memory_space<smem>>
    %531 = vector.broadcast %530 : f32 to vector<8x8xf32>
    %532 = arith.mulf %531, %32 : vector<8x8xf32>
    %533 = arith.addf %529, %532 : vector<8x8xf32>
    %c20_144 = arith.constant 20 : index
    %c0_145 = arith.constant 0 : index
    %534 = vector.load %arg22[%c20_144, %c0_145] : memref<50x8xf32, #tpu.memory_space<vmem>>, vector<1x8xf32>
    %535 = vector.broadcast %534 : vector<1x8xf32> to vector<8x8xf32>
    %536 = arith.addf %533, %535 : vector<8x8xf32>
    %537 = arith.mulf %14, %536 : vector<8x8xf32>
    %cst_146 = arith.constant 0.000000e+00 : f32
    %538 = vector.broadcast %cst_146 : f32 to vector<8x8xf32>
    %539 = arith.cmpf oge, %537, %538 : vector<8x8xf32>
    %cst_147 = arith.constant 5.000000e-02 : f32
    %540 = vector.broadcast %cst_147 : f32 to vector<8x8xf32>
    %541 = arith.mulf %540, %537 : vector<8x8xf32>
    %542 = arith.select %539, %537, %541 : vector<8x8xi1>, vector<8x8xf32>
    %543 = arith.mulf %14, %542 : vector<8x8xf32>
    %cst_148 = arith.constant dense<0.000000e+00> : vector<8xf32>
    %544 = vector.multi_reduction <add>, %543, %cst_148 [1] : vector<8x8xf32> to vector<8xf32>
    %545 = vector.shape_cast %544 : vector<8xf32> to vector<8x1xf32>
    %546 = vector.extract_strided_slice %41 {offsets = [0, 21], sizes = [8, 1], strides = [1, 1]} : vector<8x50xf32> to vector<8x1xf32>
    %547 = vector.broadcast %546 : vector<8x1xf32> to vector<8x8xf32>
    %548 = vector.broadcast %15 : vector<1x8xf32> to vector<8x8xf32>
    %549 = arith.mulf %547, %548 : vector<8x8xf32>
    %c21 = arith.constant 21 : index
    %550 = memref.load %arg9[%c21] : memref<50xf32, #tpu.memory_space<smem>>
    %551 = vector.broadcast %550 : f32 to vector<8x8xf32>
    %552 = arith.mulf %551, %39 : vector<8x8xf32>
    %553 = arith.addf %549, %552 : vector<8x8xf32>
    %c21_149 = arith.constant 21 : index
    %554 = memref.load %arg10[%c21_149] : memref<50xf32, #tpu.memory_space<smem>>
    %555 = vector.broadcast %554 : f32 to vector<8x8xf32>
    %556 = arith.mulf %555, %32 : vector<8x8xf32>
    %557 = arith.addf %553, %556 : vector<8x8xf32>
    %c21_150 = arith.constant 21 : index
    %c0_151 = arith.constant 0 : index
    %558 = vector.load %arg22[%c21_150, %c0_151] : memref<50x8xf32, #tpu.memory_space<vmem>>, vector<1x8xf32>
    %559 = vector.broadcast %558 : vector<1x8xf32> to vector<8x8xf32>
    %560 = arith.addf %557, %559 : vector<8x8xf32>
    %561 = arith.mulf %14, %560 : vector<8x8xf32>
    %cst_152 = arith.constant 0.000000e+00 : f32
    %562 = vector.broadcast %cst_152 : f32 to vector<8x8xf32>
    %563 = arith.cmpf oge, %561, %562 : vector<8x8xf32>
    %cst_153 = arith.constant 5.000000e-02 : f32
    %564 = vector.broadcast %cst_153 : f32 to vector<8x8xf32>
    %565 = arith.mulf %564, %561 : vector<8x8xf32>
    %566 = arith.select %563, %561, %565 : vector<8x8xi1>, vector<8x8xf32>
    %567 = arith.mulf %14, %566 : vector<8x8xf32>
    %cst_154 = arith.constant dense<0.000000e+00> : vector<8xf32>
    %568 = vector.multi_reduction <add>, %567, %cst_154 [1] : vector<8x8xf32> to vector<8xf32>
    %569 = vector.shape_cast %568 : vector<8xf32> to vector<8x1xf32>
    %570 = vector.extract_strided_slice %41 {offsets = [0, 22], sizes = [8, 1], strides = [1, 1]} : vector<8x50xf32> to vector<8x1xf32>
    %571 = vector.broadcast %570 : vector<8x1xf32> to vector<8x8xf32>
    %572 = vector.broadcast %15 : vector<1x8xf32> to vector<8x8xf32>
    %573 = arith.mulf %571, %572 : vector<8x8xf32>
    %c22 = arith.constant 22 : index
    %574 = memref.load %arg9[%c22] : memref<50xf32, #tpu.memory_space<smem>>
    %575 = vector.broadcast %574 : f32 to vector<8x8xf32>
    %576 = arith.mulf %575, %39 : vector<8x8xf32>
    %577 = arith.addf %573, %576 : vector<8x8xf32>
    %c22_155 = arith.constant 22 : index
    %578 = memref.load %arg10[%c22_155] : memref<50xf32, #tpu.memory_space<smem>>
    %579 = vector.broadcast %578 : f32 to vector<8x8xf32>
    %580 = arith.mulf %579, %32 : vector<8x8xf32>
    %581 = arith.addf %577, %580 : vector<8x8xf32>
    %c22_156 = arith.constant 22 : index
    %c0_157 = arith.constant 0 : index
    %582 = vector.load %arg22[%c22_156, %c0_157] : memref<50x8xf32, #tpu.memory_space<vmem>>, vector<1x8xf32>
    %583 = vector.broadcast %582 : vector<1x8xf32> to vector<8x8xf32>
    %584 = arith.addf %581, %583 : vector<8x8xf32>
    %585 = arith.mulf %14, %584 : vector<8x8xf32>
    %cst_158 = arith.constant 0.000000e+00 : f32
    %586 = vector.broadcast %cst_158 : f32 to vector<8x8xf32>
    %587 = arith.cmpf oge, %585, %586 : vector<8x8xf32>
    %cst_159 = arith.constant 5.000000e-02 : f32
    %588 = vector.broadcast %cst_159 : f32 to vector<8x8xf32>
    %589 = arith.mulf %588, %585 : vector<8x8xf32>
    %590 = arith.select %587, %585, %589 : vector<8x8xi1>, vector<8x8xf32>
    %591 = arith.mulf %14, %590 : vector<8x8xf32>
    %cst_160 = arith.constant dense<0.000000e+00> : vector<8xf32>
    %592 = vector.multi_reduction <add>, %591, %cst_160 [1] : vector<8x8xf32> to vector<8xf32>
    %593 = vector.shape_cast %592 : vector<8xf32> to vector<8x1xf32>
    %594 = vector.extract_strided_slice %41 {offsets = [0, 23], sizes = [8, 1], strides = [1, 1]} : vector<8x50xf32> to vector<8x1xf32>
    %595 = vector.broadcast %594 : vector<8x1xf32> to vector<8x8xf32>
    %596 = vector.broadcast %15 : vector<1x8xf32> to vector<8x8xf32>
    %597 = arith.mulf %595, %596 : vector<8x8xf32>
    %c23 = arith.constant 23 : index
    %598 = memref.load %arg9[%c23] : memref<50xf32, #tpu.memory_space<smem>>
    %599 = vector.broadcast %598 : f32 to vector<8x8xf32>
    %600 = arith.mulf %599, %39 : vector<8x8xf32>
    %601 = arith.addf %597, %600 : vector<8x8xf32>
    %c23_161 = arith.constant 23 : index
    %602 = memref.load %arg10[%c23_161] : memref<50xf32, #tpu.memory_space<smem>>
    %603 = vector.broadcast %602 : f32 to vector<8x8xf32>
    %604 = arith.mulf %603, %32 : vector<8x8xf32>
    %605 = arith.addf %601, %604 : vector<8x8xf32>
    %c23_162 = arith.constant 23 : index
    %c0_163 = arith.constant 0 : index
    %606 = vector.load %arg22[%c23_162, %c0_163] : memref<50x8xf32, #tpu.memory_space<vmem>>, vector<1x8xf32>
    %607 = vector.broadcast %606 : vector<1x8xf32> to vector<8x8xf32>
    %608 = arith.addf %605, %607 : vector<8x8xf32>
    %609 = arith.mulf %14, %608 : vector<8x8xf32>
    %cst_164 = arith.constant 0.000000e+00 : f32
    %610 = vector.broadcast %cst_164 : f32 to vector<8x8xf32>
    %611 = arith.cmpf oge, %609, %610 : vector<8x8xf32>
    %cst_165 = arith.constant 5.000000e-02 : f32
    %612 = vector.broadcast %cst_165 : f32 to vector<8x8xf32>
    %613 = arith.mulf %612, %609 : vector<8x8xf32>
    %614 = arith.select %611, %609, %613 : vector<8x8xi1>, vector<8x8xf32>
    %615 = arith.mulf %14, %614 : vector<8x8xf32>
    %cst_166 = arith.constant dense<0.000000e+00> : vector<8xf32>
    %616 = vector.multi_reduction <add>, %615, %cst_166 [1] : vector<8x8xf32> to vector<8xf32>
    %617 = vector.shape_cast %616 : vector<8xf32> to vector<8x1xf32>
    %618 = vector.extract_strided_slice %41 {offsets = [0, 24], sizes = [8, 1], strides = [1, 1]} : vector<8x50xf32> to vector<8x1xf32>
    %619 = vector.broadcast %618 : vector<8x1xf32> to vector<8x8xf32>
    %620 = vector.broadcast %15 : vector<1x8xf32> to vector<8x8xf32>
    %621 = arith.mulf %619, %620 : vector<8x8xf32>
    %c24 = arith.constant 24 : index
    %622 = memref.load %arg9[%c24] : memref<50xf32, #tpu.memory_space<smem>>
    %623 = vector.broadcast %622 : f32 to vector<8x8xf32>
    %624 = arith.mulf %623, %39 : vector<8x8xf32>
    %625 = arith.addf %621, %624 : vector<8x8xf32>
    %c24_167 = arith.constant 24 : index
    %626 = memref.load %arg10[%c24_167] : memref<50xf32, #tpu.memory_space<smem>>
    %627 = vector.broadcast %626 : f32 to vector<8x8xf32>
    %628 = arith.mulf %627, %32 : vector<8x8xf32>
    %629 = arith.addf %625, %628 : vector<8x8xf32>
    %c24_168 = arith.constant 24 : index
    %c0_169 = arith.constant 0 : index
    %630 = vector.load %arg22[%c24_168, %c0_169] : memref<50x8xf32, #tpu.memory_space<vmem>>, vector<1x8xf32>
    %631 = vector.broadcast %630 : vector<1x8xf32> to vector<8x8xf32>
    %632 = arith.addf %629, %631 : vector<8x8xf32>
    %633 = arith.mulf %14, %632 : vector<8x8xf32>
    %cst_170 = arith.constant 0.000000e+00 : f32
    %634 = vector.broadcast %cst_170 : f32 to vector<8x8xf32>
    %635 = arith.cmpf oge, %633, %634 : vector<8x8xf32>
    %cst_171 = arith.constant 5.000000e-02 : f32
    %636 = vector.broadcast %cst_171 : f32 to vector<8x8xf32>
    %637 = arith.mulf %636, %633 : vector<8x8xf32>
    %638 = arith.select %635, %633, %637 : vector<8x8xi1>, vector<8x8xf32>
    %639 = arith.mulf %14, %638 : vector<8x8xf32>
    %cst_172 = arith.constant dense<0.000000e+00> : vector<8xf32>
    %640 = vector.multi_reduction <add>, %639, %cst_172 [1] : vector<8x8xf32> to vector<8xf32>
    %641 = vector.shape_cast %640 : vector<8xf32> to vector<8x1xf32>
    %642 = vector.extract_strided_slice %41 {offsets = [0, 25], sizes = [8, 1], strides = [1, 1]} : vector<8x50xf32> to vector<8x1xf32>
    %643 = vector.broadcast %642 : vector<8x1xf32> to vector<8x8xf32>
    %644 = vector.broadcast %15 : vector<1x8xf32> to vector<8x8xf32>
    %645 = arith.mulf %643, %644 : vector<8x8xf32>
    %c25 = arith.constant 25 : index
    %646 = memref.load %arg9[%c25] : memref<50xf32, #tpu.memory_space<smem>>
    %647 = vector.broadcast %646 : f32 to vector<8x8xf32>
    %648 = arith.mulf %647, %39 : vector<8x8xf32>
    %649 = arith.addf %645, %648 : vector<8x8xf32>
    %c25_173 = arith.constant 25 : index
    %650 = memref.load %arg10[%c25_173] : memref<50xf32, #tpu.memory_space<smem>>
    %651 = vector.broadcast %650 : f32 to vector<8x8xf32>
    %652 = arith.mulf %651, %32 : vector<8x8xf32>
    %653 = arith.addf %649, %652 : vector<8x8xf32>
    %c25_174 = arith.constant 25 : index
    %c0_175 = arith.constant 0 : index
    %654 = vector.load %arg22[%c25_174, %c0_175] : memref<50x8xf32, #tpu.memory_space<vmem>>, vector<1x8xf32>
    %655 = vector.broadcast %654 : vector<1x8xf32> to vector<8x8xf32>
    %656 = arith.addf %653, %655 : vector<8x8xf32>
    %657 = arith.mulf %14, %656 : vector<8x8xf32>
    %cst_176 = arith.constant 0.000000e+00 : f32
    %658 = vector.broadcast %cst_176 : f32 to vector<8x8xf32>
    %659 = arith.cmpf oge, %657, %658 : vector<8x8xf32>
    %cst_177 = arith.constant 5.000000e-02 : f32
    %660 = vector.broadcast %cst_177 : f32 to vector<8x8xf32>
    %661 = arith.mulf %660, %657 : vector<8x8xf32>
    %662 = arith.select %659, %657, %661 : vector<8x8xi1>, vector<8x8xf32>
    %663 = arith.mulf %14, %662 : vector<8x8xf32>
    %cst_178 = arith.constant dense<0.000000e+00> : vector<8xf32>
    %664 = vector.multi_reduction <add>, %663, %cst_178 [1] : vector<8x8xf32> to vector<8xf32>
    %665 = vector.shape_cast %664 : vector<8xf32> to vector<8x1xf32>
    %666 = vector.extract_strided_slice %41 {offsets = [0, 26], sizes = [8, 1], strides = [1, 1]} : vector<8x50xf32> to vector<8x1xf32>
    %667 = vector.broadcast %666 : vector<8x1xf32> to vector<8x8xf32>
    %668 = vector.broadcast %15 : vector<1x8xf32> to vector<8x8xf32>
    %669 = arith.mulf %667, %668 : vector<8x8xf32>
    %c26 = arith.constant 26 : index
    %670 = memref.load %arg9[%c26] : memref<50xf32, #tpu.memory_space<smem>>
    %671 = vector.broadcast %670 : f32 to vector<8x8xf32>
    %672 = arith.mulf %671, %39 : vector<8x8xf32>
    %673 = arith.addf %669, %672 : vector<8x8xf32>
    %c26_179 = arith.constant 26 : index
    %674 = memref.load %arg10[%c26_179] : memref<50xf32, #tpu.memory_space<smem>>
    %675 = vector.broadcast %674 : f32 to vector<8x8xf32>
    %676 = arith.mulf %675, %32 : vector<8x8xf32>
    %677 = arith.addf %673, %676 : vector<8x8xf32>
    %c26_180 = arith.constant 26 : index
    %c0_181 = arith.constant 0 : index
    %678 = vector.load %arg22[%c26_180, %c0_181] : memref<50x8xf32, #tpu.memory_space<vmem>>, vector<1x8xf32>
    %679 = vector.broadcast %678 : vector<1x8xf32> to vector<8x8xf32>
    %680 = arith.addf %677, %679 : vector<8x8xf32>
    %681 = arith.mulf %14, %680 : vector<8x8xf32>
    %cst_182 = arith.constant 0.000000e+00 : f32
    %682 = vector.broadcast %cst_182 : f32 to vector<8x8xf32>
    %683 = arith.cmpf oge, %681, %682 : vector<8x8xf32>
    %cst_183 = arith.constant 5.000000e-02 : f32
    %684 = vector.broadcast %cst_183 : f32 to vector<8x8xf32>
    %685 = arith.mulf %684, %681 : vector<8x8xf32>
    %686 = arith.select %683, %681, %685 : vector<8x8xi1>, vector<8x8xf32>
    %687 = arith.mulf %14, %686 : vector<8x8xf32>
    %cst_184 = arith.constant dense<0.000000e+00> : vector<8xf32>
    %688 = vector.multi_reduction <add>, %687, %cst_184 [1] : vector<8x8xf32> to vector<8xf32>
    %689 = vector.shape_cast %688 : vector<8xf32> to vector<8x1xf32>
    %690 = vector.extract_strided_slice %41 {offsets = [0, 27], sizes = [8, 1], strides = [1, 1]} : vector<8x50xf32> to vector<8x1xf32>
    %691 = vector.broadcast %690 : vector<8x1xf32> to vector<8x8xf32>
    %692 = vector.broadcast %15 : vector<1x8xf32> to vector<8x8xf32>
    %693 = arith.mulf %691, %692 : vector<8x8xf32>
    %c27 = arith.constant 27 : index
    %694 = memref.load %arg9[%c27] : memref<50xf32, #tpu.memory_space<smem>>
    %695 = vector.broadcast %694 : f32 to vector<8x8xf32>
    %696 = arith.mulf %695, %39 : vector<8x8xf32>
    %697 = arith.addf %693, %696 : vector<8x8xf32>
    %c27_185 = arith.constant 27 : index
    %698 = memref.load %arg10[%c27_185] : memref<50xf32, #tpu.memory_space<smem>>
    %699 = vector.broadcast %698 : f32 to vector<8x8xf32>
    %700 = arith.mulf %699, %32 : vector<8x8xf32>
    %701 = arith.addf %697, %700 : vector<8x8xf32>
    %c27_186 = arith.constant 27 : index
    %c0_187 = arith.constant 0 : index
    %702 = vector.load %arg22[%c27_186, %c0_187] : memref<50x8xf32, #tpu.memory_space<vmem>>, vector<1x8xf32>
    %703 = vector.broadcast %702 : vector<1x8xf32> to vector<8x8xf32>
    %704 = arith.addf %701, %703 : vector<8x8xf32>
    %705 = arith.mulf %14, %704 : vector<8x8xf32>
    %cst_188 = arith.constant 0.000000e+00 : f32
    %706 = vector.broadcast %cst_188 : f32 to vector<8x8xf32>
    %707 = arith.cmpf oge, %705, %706 : vector<8x8xf32>
    %cst_189 = arith.constant 5.000000e-02 : f32
    %708 = vector.broadcast %cst_189 : f32 to vector<8x8xf32>
    %709 = arith.mulf %708, %705 : vector<8x8xf32>
    %710 = arith.select %707, %705, %709 : vector<8x8xi1>, vector<8x8xf32>
    %711 = arith.mulf %14, %710 : vector<8x8xf32>
    %cst_190 = arith.constant dense<0.000000e+00> : vector<8xf32>
    %712 = vector.multi_reduction <add>, %711, %cst_190 [1] : vector<8x8xf32> to vector<8xf32>
    %713 = vector.shape_cast %712 : vector<8xf32> to vector<8x1xf32>
    %714 = vector.extract_strided_slice %41 {offsets = [0, 28], sizes = [8, 1], strides = [1, 1]} : vector<8x50xf32> to vector<8x1xf32>
    %715 = vector.broadcast %714 : vector<8x1xf32> to vector<8x8xf32>
    %716 = vector.broadcast %15 : vector<1x8xf32> to vector<8x8xf32>
    %717 = arith.mulf %715, %716 : vector<8x8xf32>
    %c28 = arith.constant 28 : index
    %718 = memref.load %arg9[%c28] : memref<50xf32, #tpu.memory_space<smem>>
    %719 = vector.broadcast %718 : f32 to vector<8x8xf32>
    %720 = arith.mulf %719, %39 : vector<8x8xf32>
    %721 = arith.addf %717, %720 : vector<8x8xf32>
    %c28_191 = arith.constant 28 : index
    %722 = memref.load %arg10[%c28_191] : memref<50xf32, #tpu.memory_space<smem>>
    %723 = vector.broadcast %722 : f32 to vector<8x8xf32>
    %724 = arith.mulf %723, %32 : vector<8x8xf32>
    %725 = arith.addf %721, %724 : vector<8x8xf32>
    %c28_192 = arith.constant 28 : index
    %c0_193 = arith.constant 0 : index
    %726 = vector.load %arg22[%c28_192, %c0_193] : memref<50x8xf32, #tpu.memory_space<vmem>>, vector<1x8xf32>
    %727 = vector.broadcast %726 : vector<1x8xf32> to vector<8x8xf32>
    %728 = arith.addf %725, %727 : vector<8x8xf32>
    %729 = arith.mulf %14, %728 : vector<8x8xf32>
    %cst_194 = arith.constant 0.000000e+00 : f32
    %730 = vector.broadcast %cst_194 : f32 to vector<8x8xf32>
    %731 = arith.cmpf oge, %729, %730 : vector<8x8xf32>
    %cst_195 = arith.constant 5.000000e-02 : f32
    %732 = vector.broadcast %cst_195 : f32 to vector<8x8xf32>
    %733 = arith.mulf %732, %729 : vector<8x8xf32>
    %734 = arith.select %731, %729, %733 : vector<8x8xi1>, vector<8x8xf32>
    %735 = arith.mulf %14, %734 : vector<8x8xf32>
    %cst_196 = arith.constant dense<0.000000e+00> : vector<8xf32>
    %736 = vector.multi_reduction <add>, %735, %cst_196 [1] : vector<8x8xf32> to vector<8xf32>
    %737 = vector.shape_cast %736 : vector<8xf32> to vector<8x1xf32>
    %738 = vector.extract_strided_slice %41 {offsets = [0, 29], sizes = [8, 1], strides = [1, 1]} : vector<8x50xf32> to vector<8x1xf32>
    %739 = vector.broadcast %738 : vector<8x1xf32> to vector<8x8xf32>
    %740 = vector.broadcast %15 : vector<1x8xf32> to vector<8x8xf32>
    %741 = arith.mulf %739, %740 : vector<8x8xf32>
    %c29 = arith.constant 29 : index
    %742 = memref.load %arg9[%c29] : memref<50xf32, #tpu.memory_space<smem>>
    %743 = vector.broadcast %742 : f32 to vector<8x8xf32>
    %744 = arith.mulf %743, %39 : vector<8x8xf32>
    %745 = arith.addf %741, %744 : vector<8x8xf32>
    %c29_197 = arith.constant 29 : index
    %746 = memref.load %arg10[%c29_197] : memref<50xf32, #tpu.memory_space<smem>>
    %747 = vector.broadcast %746 : f32 to vector<8x8xf32>
    %748 = arith.mulf %747, %32 : vector<8x8xf32>
    %749 = arith.addf %745, %748 : vector<8x8xf32>
    %c29_198 = arith.constant 29 : index
    %c0_199 = arith.constant 0 : index
    %750 = vector.load %arg22[%c29_198, %c0_199] : memref<50x8xf32, #tpu.memory_space<vmem>>, vector<1x8xf32>
    %751 = vector.broadcast %750 : vector<1x8xf32> to vector<8x8xf32>
    %752 = arith.addf %749, %751 : vector<8x8xf32>
    %753 = arith.mulf %14, %752 : vector<8x8xf32>
    %cst_200 = arith.constant 0.000000e+00 : f32
    %754 = vector.broadcast %cst_200 : f32 to vector<8x8xf32>
    %755 = arith.cmpf oge, %753, %754 : vector<8x8xf32>
    %cst_201 = arith.constant 5.000000e-02 : f32
    %756 = vector.broadcast %cst_201 : f32 to vector<8x8xf32>
    %757 = arith.mulf %756, %753 : vector<8x8xf32>
    %758 = arith.select %755, %753, %757 : vector<8x8xi1>, vector<8x8xf32>
    %759 = arith.mulf %14, %758 : vector<8x8xf32>
    %cst_202 = arith.constant dense<0.000000e+00> : vector<8xf32>
    %760 = vector.multi_reduction <add>, %759, %cst_202 [1] : vector<8x8xf32> to vector<8xf32>
    %761 = vector.shape_cast %760 : vector<8xf32> to vector<8x1xf32>
    %762 = vector.extract_strided_slice %41 {offsets = [0, 30], sizes = [8, 1], strides = [1, 1]} : vector<8x50xf32> to vector<8x1xf32>
    %763 = vector.broadcast %762 : vector<8x1xf32> to vector<8x8xf32>
    %764 = vector.broadcast %15 : vector<1x8xf32> to vector<8x8xf32>
    %765 = arith.mulf %763, %764 : vector<8x8xf32>
    %c30 = arith.constant 30 : index
    %766 = memref.load %arg9[%c30] : memref<50xf32, #tpu.memory_space<smem>>
    %767 = vector.broadcast %766 : f32 to vector<8x8xf32>
    %768 = arith.mulf %767, %39 : vector<8x8xf32>
    %769 = arith.addf %765, %768 : vector<8x8xf32>
    %c30_203 = arith.constant 30 : index
    %770 = memref.load %arg10[%c30_203] : memref<50xf32, #tpu.memory_space<smem>>
    %771 = vector.broadcast %770 : f32 to vector<8x8xf32>
    %772 = arith.mulf %771, %32 : vector<8x8xf32>
    %773 = arith.addf %769, %772 : vector<8x8xf32>
    %c30_204 = arith.constant 30 : index
    %c0_205 = arith.constant 0 : index
    %774 = vector.load %arg22[%c30_204, %c0_205] : memref<50x8xf32, #tpu.memory_space<vmem>>, vector<1x8xf32>
    %775 = vector.broadcast %774 : vector<1x8xf32> to vector<8x8xf32>
    %776 = arith.addf %773, %775 : vector<8x8xf32>
    %777 = arith.mulf %14, %776 : vector<8x8xf32>
    %cst_206 = arith.constant 0.000000e+00 : f32
    %778 = vector.broadcast %cst_206 : f32 to vector<8x8xf32>
    %779 = arith.cmpf oge, %777, %778 : vector<8x8xf32>
    %cst_207 = arith.constant 5.000000e-02 : f32
    %780 = vector.broadcast %cst_207 : f32 to vector<8x8xf32>
    %781 = arith.mulf %780, %777 : vector<8x8xf32>
    %782 = arith.select %779, %777, %781 : vector<8x8xi1>, vector<8x8xf32>
    %783 = arith.mulf %14, %782 : vector<8x8xf32>
    %cst_208 = arith.constant dense<0.000000e+00> : vector<8xf32>
    %784 = vector.multi_reduction <add>, %783, %cst_208 [1] : vector<8x8xf32> to vector<8xf32>
    %785 = vector.shape_cast %784 : vector<8xf32> to vector<8x1xf32>
    %786 = vector.extract_strided_slice %41 {offsets = [0, 31], sizes = [8, 1], strides = [1, 1]} : vector<8x50xf32> to vector<8x1xf32>
    %787 = vector.broadcast %786 : vector<8x1xf32> to vector<8x8xf32>
    %788 = vector.broadcast %15 : vector<1x8xf32> to vector<8x8xf32>
    %789 = arith.mulf %787, %788 : vector<8x8xf32>
    %c31 = arith.constant 31 : index
    %790 = memref.load %arg9[%c31] : memref<50xf32, #tpu.memory_space<smem>>
    %791 = vector.broadcast %790 : f32 to vector<8x8xf32>
    %792 = arith.mulf %791, %39 : vector<8x8xf32>
    %793 = arith.addf %789, %792 : vector<8x8xf32>
    %c31_209 = arith.constant 31 : index
    %794 = memref.load %arg10[%c31_209] : memref<50xf32, #tpu.memory_space<smem>>
    %795 = vector.broadcast %794 : f32 to vector<8x8xf32>
    %796 = arith.mulf %795, %32 : vector<8x8xf32>
    %797 = arith.addf %793, %796 : vector<8x8xf32>
    %c31_210 = arith.constant 31 : index
    %c0_211 = arith.constant 0 : index
    %798 = vector.load %arg22[%c31_210, %c0_211] : memref<50x8xf32, #tpu.memory_space<vmem>>, vector<1x8xf32>
    %799 = vector.broadcast %798 : vector<1x8xf32> to vector<8x8xf32>
    %800 = arith.addf %797, %799 : vector<8x8xf32>
    %801 = arith.mulf %14, %800 : vector<8x8xf32>
    %cst_212 = arith.constant 0.000000e+00 : f32
    %802 = vector.broadcast %cst_212 : f32 to vector<8x8xf32>
    %803 = arith.cmpf oge, %801, %802 : vector<8x8xf32>
    %cst_213 = arith.constant 5.000000e-02 : f32
    %804 = vector.broadcast %cst_213 : f32 to vector<8x8xf32>
    %805 = arith.mulf %804, %801 : vector<8x8xf32>
    %806 = arith.select %803, %801, %805 : vector<8x8xi1>, vector<8x8xf32>
    %807 = arith.mulf %14, %806 : vector<8x8xf32>
    %cst_214 = arith.constant dense<0.000000e+00> : vector<8xf32>
    %808 = vector.multi_reduction <add>, %807, %cst_214 [1] : vector<8x8xf32> to vector<8xf32>
    %809 = vector.shape_cast %808 : vector<8xf32> to vector<8x1xf32>
    %810 = vector.extract_strided_slice %41 {offsets = [0, 32], sizes = [8, 1], strides = [1, 1]} : vector<8x50xf32> to vector<8x1xf32>
    %811 = vector.broadcast %810 : vector<8x1xf32> to vector<8x8xf32>
    %812 = vector.broadcast %15 : vector<1x8xf32> to vector<8x8xf32>
    %813 = arith.mulf %811, %812 : vector<8x8xf32>
    %c32 = arith.constant 32 : index
    %814 = memref.load %arg9[%c32] : memref<50xf32, #tpu.memory_space<smem>>
    %815 = vector.broadcast %814 : f32 to vector<8x8xf32>
    %816 = arith.mulf %815, %39 : vector<8x8xf32>
    %817 = arith.addf %813, %816 : vector<8x8xf32>
    %c32_215 = arith.constant 32 : index
    %818 = memref.load %arg10[%c32_215] : memref<50xf32, #tpu.memory_space<smem>>
    %819 = vector.broadcast %818 : f32 to vector<8x8xf32>
    %820 = arith.mulf %819, %32 : vector<8x8xf32>
    %821 = arith.addf %817, %820 : vector<8x8xf32>
    %c32_216 = arith.constant 32 : index
    %c0_217 = arith.constant 0 : index
    %822 = vector.load %arg22[%c32_216, %c0_217] : memref<50x8xf32, #tpu.memory_space<vmem>>, vector<1x8xf32>
    %823 = vector.broadcast %822 : vector<1x8xf32> to vector<8x8xf32>
    %824 = arith.addf %821, %823 : vector<8x8xf32>
    %825 = arith.mulf %14, %824 : vector<8x8xf32>
    %cst_218 = arith.constant 0.000000e+00 : f32
    %826 = vector.broadcast %cst_218 : f32 to vector<8x8xf32>
    %827 = arith.cmpf oge, %825, %826 : vector<8x8xf32>
    %cst_219 = arith.constant 5.000000e-02 : f32
    %828 = vector.broadcast %cst_219 : f32 to vector<8x8xf32>
    %829 = arith.mulf %828, %825 : vector<8x8xf32>
    %830 = arith.select %827, %825, %829 : vector<8x8xi1>, vector<8x8xf32>
    %831 = arith.mulf %14, %830 : vector<8x8xf32>
    %cst_220 = arith.constant dense<0.000000e+00> : vector<8xf32>
    %832 = vector.multi_reduction <add>, %831, %cst_220 [1] : vector<8x8xf32> to vector<8xf32>
    %833 = vector.shape_cast %832 : vector<8xf32> to vector<8x1xf32>
    %834 = vector.extract_strided_slice %41 {offsets = [0, 33], sizes = [8, 1], strides = [1, 1]} : vector<8x50xf32> to vector<8x1xf32>
    %835 = vector.broadcast %834 : vector<8x1xf32> to vector<8x8xf32>
    %836 = vector.broadcast %15 : vector<1x8xf32> to vector<8x8xf32>
    %837 = arith.mulf %835, %836 : vector<8x8xf32>
    %c33 = arith.constant 33 : index
    %838 = memref.load %arg9[%c33] : memref<50xf32, #tpu.memory_space<smem>>
    %839 = vector.broadcast %838 : f32 to vector<8x8xf32>
    %840 = arith.mulf %839, %39 : vector<8x8xf32>
    %841 = arith.addf %837, %840 : vector<8x8xf32>
    %c33_221 = arith.constant 33 : index
    %842 = memref.load %arg10[%c33_221] : memref<50xf32, #tpu.memory_space<smem>>
    %843 = vector.broadcast %842 : f32 to vector<8x8xf32>
    %844 = arith.mulf %843, %32 : vector<8x8xf32>
    %845 = arith.addf %841, %844 : vector<8x8xf32>
    %c33_222 = arith.constant 33 : index
    %c0_223 = arith.constant 0 : index
    %846 = vector.load %arg22[%c33_222, %c0_223] : memref<50x8xf32, #tpu.memory_space<vmem>>, vector<1x8xf32>
    %847 = vector.broadcast %846 : vector<1x8xf32> to vector<8x8xf32>
    %848 = arith.addf %845, %847 : vector<8x8xf32>
    %849 = arith.mulf %14, %848 : vector<8x8xf32>
    %cst_224 = arith.constant 0.000000e+00 : f32
    %850 = vector.broadcast %cst_224 : f32 to vector<8x8xf32>
    %851 = arith.cmpf oge, %849, %850 : vector<8x8xf32>
    %cst_225 = arith.constant 5.000000e-02 : f32
    %852 = vector.broadcast %cst_225 : f32 to vector<8x8xf32>
    %853 = arith.mulf %852, %849 : vector<8x8xf32>
    %854 = arith.select %851, %849, %853 : vector<8x8xi1>, vector<8x8xf32>
    %855 = arith.mulf %14, %854 : vector<8x8xf32>
    %cst_226 = arith.constant dense<0.000000e+00> : vector<8xf32>
    %856 = vector.multi_reduction <add>, %855, %cst_226 [1] : vector<8x8xf32> to vector<8xf32>
    %857 = vector.shape_cast %856 : vector<8xf32> to vector<8x1xf32>
    %858 = vector.extract_strided_slice %41 {offsets = [0, 34], sizes = [8, 1], strides = [1, 1]} : vector<8x50xf32> to vector<8x1xf32>
    %859 = vector.broadcast %858 : vector<8x1xf32> to vector<8x8xf32>
    %860 = vector.broadcast %15 : vector<1x8xf32> to vector<8x8xf32>
    %861 = arith.mulf %859, %860 : vector<8x8xf32>
    %c34 = arith.constant 34 : index
    %862 = memref.load %arg9[%c34] : memref<50xf32, #tpu.memory_space<smem>>
    %863 = vector.broadcast %862 : f32 to vector<8x8xf32>
    %864 = arith.mulf %863, %39 : vector<8x8xf32>
    %865 = arith.addf %861, %864 : vector<8x8xf32>
    %c34_227 = arith.constant 34 : index
    %866 = memref.load %arg10[%c34_227] : memref<50xf32, #tpu.memory_space<smem>>
    %867 = vector.broadcast %866 : f32 to vector<8x8xf32>
    %868 = arith.mulf %867, %32 : vector<8x8xf32>
    %869 = arith.addf %865, %868 : vector<8x8xf32>
    %c34_228 = arith.constant 34 : index
    %c0_229 = arith.constant 0 : index
    %870 = vector.load %arg22[%c34_228, %c0_229] : memref<50x8xf32, #tpu.memory_space<vmem>>, vector<1x8xf32>
    %871 = vector.broadcast %870 : vector<1x8xf32> to vector<8x8xf32>
    %872 = arith.addf %869, %871 : vector<8x8xf32>
    %873 = arith.mulf %14, %872 : vector<8x8xf32>
    %cst_230 = arith.constant 0.000000e+00 : f32
    %874 = vector.broadcast %cst_230 : f32 to vector<8x8xf32>
    %875 = arith.cmpf oge, %873, %874 : vector<8x8xf32>
    %cst_231 = arith.constant 5.000000e-02 : f32
    %876 = vector.broadcast %cst_231 : f32 to vector<8x8xf32>
    %877 = arith.mulf %876, %873 : vector<8x8xf32>
    %878 = arith.select %875, %873, %877 : vector<8x8xi1>, vector<8x8xf32>
    %879 = arith.mulf %14, %878 : vector<8x8xf32>
    %cst_232 = arith.constant dense<0.000000e+00> : vector<8xf32>
    %880 = vector.multi_reduction <add>, %879, %cst_232 [1] : vector<8x8xf32> to vector<8xf32>
    %881 = vector.shape_cast %880 : vector<8xf32> to vector<8x1xf32>
    %882 = vector.extract_strided_slice %41 {offsets = [0, 35], sizes = [8, 1], strides = [1, 1]} : vector<8x50xf32> to vector<8x1xf32>
    %883 = vector.broadcast %882 : vector<8x1xf32> to vector<8x8xf32>
    %884 = vector.broadcast %15 : vector<1x8xf32> to vector<8x8xf32>
    %885 = arith.mulf %883, %884 : vector<8x8xf32>
    %c35 = arith.constant 35 : index
    %886 = memref.load %arg9[%c35] : memref<50xf32, #tpu.memory_space<smem>>
    %887 = vector.broadcast %886 : f32 to vector<8x8xf32>
    %888 = arith.mulf %887, %39 : vector<8x8xf32>
    %889 = arith.addf %885, %888 : vector<8x8xf32>
    %c35_233 = arith.constant 35 : index
    %890 = memref.load %arg10[%c35_233] : memref<50xf32, #tpu.memory_space<smem>>
    %891 = vector.broadcast %890 : f32 to vector<8x8xf32>
    %892 = arith.mulf %891, %32 : vector<8x8xf32>
    %893 = arith.addf %889, %892 : vector<8x8xf32>
    %c35_234 = arith.constant 35 : index
    %c0_235 = arith.constant 0 : index
    %894 = vector.load %arg22[%c35_234, %c0_235] : memref<50x8xf32, #tpu.memory_space<vmem>>, vector<1x8xf32>
    %895 = vector.broadcast %894 : vector<1x8xf32> to vector<8x8xf32>
    %896 = arith.addf %893, %895 : vector<8x8xf32>
    %897 = arith.mulf %14, %896 : vector<8x8xf32>
    %cst_236 = arith.constant 0.000000e+00 : f32
    %898 = vector.broadcast %cst_236 : f32 to vector<8x8xf32>
    %899 = arith.cmpf oge, %897, %898 : vector<8x8xf32>
    %cst_237 = arith.constant 5.000000e-02 : f32
    %900 = vector.broadcast %cst_237 : f32 to vector<8x8xf32>
    %901 = arith.mulf %900, %897 : vector<8x8xf32>
    %902 = arith.select %899, %897, %901 : vector<8x8xi1>, vector<8x8xf32>
    %903 = arith.mulf %14, %902 : vector<8x8xf32>
    %cst_238 = arith.constant dense<0.000000e+00> : vector<8xf32>
    %904 = vector.multi_reduction <add>, %903, %cst_238 [1] : vector<8x8xf32> to vector<8xf32>
    %905 = vector.shape_cast %904 : vector<8xf32> to vector<8x1xf32>
    %906 = vector.extract_strided_slice %41 {offsets = [0, 36], sizes = [8, 1], strides = [1, 1]} : vector<8x50xf32> to vector<8x1xf32>
    %907 = vector.broadcast %906 : vector<8x1xf32> to vector<8x8xf32>
    %908 = vector.broadcast %15 : vector<1x8xf32> to vector<8x8xf32>
    %909 = arith.mulf %907, %908 : vector<8x8xf32>
    %c36 = arith.constant 36 : index
    %910 = memref.load %arg9[%c36] : memref<50xf32, #tpu.memory_space<smem>>
    %911 = vector.broadcast %910 : f32 to vector<8x8xf32>
    %912 = arith.mulf %911, %39 : vector<8x8xf32>
    %913 = arith.addf %909, %912 : vector<8x8xf32>
    %c36_239 = arith.constant 36 : index
    %914 = memref.load %arg10[%c36_239] : memref<50xf32, #tpu.memory_space<smem>>
    %915 = vector.broadcast %914 : f32 to vector<8x8xf32>
    %916 = arith.mulf %915, %32 : vector<8x8xf32>
    %917 = arith.addf %913, %916 : vector<8x8xf32>
    %c36_240 = arith.constant 36 : index
    %c0_241 = arith.constant 0 : index
    %918 = vector.load %arg22[%c36_240, %c0_241] : memref<50x8xf32, #tpu.memory_space<vmem>>, vector<1x8xf32>
    %919 = vector.broadcast %918 : vector<1x8xf32> to vector<8x8xf32>
    %920 = arith.addf %917, %919 : vector<8x8xf32>
    %921 = arith.mulf %14, %920 : vector<8x8xf32>
    %cst_242 = arith.constant 0.000000e+00 : f32
    %922 = vector.broadcast %cst_242 : f32 to vector<8x8xf32>
    %923 = arith.cmpf oge, %921, %922 : vector<8x8xf32>
    %cst_243 = arith.constant 5.000000e-02 : f32
    %924 = vector.broadcast %cst_243 : f32 to vector<8x8xf32>
    %925 = arith.mulf %924, %921 : vector<8x8xf32>
    %926 = arith.select %923, %921, %925 : vector<8x8xi1>, vector<8x8xf32>
    %927 = arith.mulf %14, %926 : vector<8x8xf32>
    %cst_244 = arith.constant dense<0.000000e+00> : vector<8xf32>
    %928 = vector.multi_reduction <add>, %927, %cst_244 [1] : vector<8x8xf32> to vector<8xf32>
    %929 = vector.shape_cast %928 : vector<8xf32> to vector<8x1xf32>
    %930 = vector.extract_strided_slice %41 {offsets = [0, 37], sizes = [8, 1], strides = [1, 1]} : vector<8x50xf32> to vector<8x1xf32>
    %931 = vector.broadcast %930 : vector<8x1xf32> to vector<8x8xf32>
    %932 = vector.broadcast %15 : vector<1x8xf32> to vector<8x8xf32>
    %933 = arith.mulf %931, %932 : vector<8x8xf32>
    %c37 = arith.constant 37 : index
    %934 = memref.load %arg9[%c37] : memref<50xf32, #tpu.memory_space<smem>>
    %935 = vector.broadcast %934 : f32 to vector<8x8xf32>
    %936 = arith.mulf %935, %39 : vector<8x8xf32>
    %937 = arith.addf %933, %936 : vector<8x8xf32>
    %c37_245 = arith.constant 37 : index
    %938 = memref.load %arg10[%c37_245] : memref<50xf32, #tpu.memory_space<smem>>
    %939 = vector.broadcast %938 : f32 to vector<8x8xf32>
    %940 = arith.mulf %939, %32 : vector<8x8xf32>
    %941 = arith.addf %937, %940 : vector<8x8xf32>
    %c37_246 = arith.constant 37 : index
    %c0_247 = arith.constant 0 : index
    %942 = vector.load %arg22[%c37_246, %c0_247] : memref<50x8xf32, #tpu.memory_space<vmem>>, vector<1x8xf32>
    %943 = vector.broadcast %942 : vector<1x8xf32> to vector<8x8xf32>
    %944 = arith.addf %941, %943 : vector<8x8xf32>
    %945 = arith.mulf %14, %944 : vector<8x8xf32>
    %cst_248 = arith.constant 0.000000e+00 : f32
    %946 = vector.broadcast %cst_248 : f32 to vector<8x8xf32>
    %947 = arith.cmpf oge, %945, %946 : vector<8x8xf32>
    %cst_249 = arith.constant 5.000000e-02 : f32
    %948 = vector.broadcast %cst_249 : f32 to vector<8x8xf32>
    %949 = arith.mulf %948, %945 : vector<8x8xf32>
    %950 = arith.select %947, %945, %949 : vector<8x8xi1>, vector<8x8xf32>
    %951 = arith.mulf %14, %950 : vector<8x8xf32>
    %cst_250 = arith.constant dense<0.000000e+00> : vector<8xf32>
    %952 = vector.multi_reduction <add>, %951, %cst_250 [1] : vector<8x8xf32> to vector<8xf32>
    %953 = vector.shape_cast %952 : vector<8xf32> to vector<8x1xf32>
    %954 = vector.extract_strided_slice %41 {offsets = [0, 38], sizes = [8, 1], strides = [1, 1]} : vector<8x50xf32> to vector<8x1xf32>
    %955 = vector.broadcast %954 : vector<8x1xf32> to vector<8x8xf32>
    %956 = vector.broadcast %15 : vector<1x8xf32> to vector<8x8xf32>
    %957 = arith.mulf %955, %956 : vector<8x8xf32>
    %c38 = arith.constant 38 : index
    %958 = memref.load %arg9[%c38] : memref<50xf32, #tpu.memory_space<smem>>
    %959 = vector.broadcast %958 : f32 to vector<8x8xf32>
    %960 = arith.mulf %959, %39 : vector<8x8xf32>
    %961 = arith.addf %957, %960 : vector<8x8xf32>
    %c38_251 = arith.constant 38 : index
    %962 = memref.load %arg10[%c38_251] : memref<50xf32, #tpu.memory_space<smem>>
    %963 = vector.broadcast %962 : f32 to vector<8x8xf32>
    %964 = arith.mulf %963, %32 : vector<8x8xf32>
    %965 = arith.addf %961, %964 : vector<8x8xf32>
    %c38_252 = arith.constant 38 : index
    %c0_253 = arith.constant 0 : index
    %966 = vector.load %arg22[%c38_252, %c0_253] : memref<50x8xf32, #tpu.memory_space<vmem>>, vector<1x8xf32>
    %967 = vector.broadcast %966 : vector<1x8xf32> to vector<8x8xf32>
    %968 = arith.addf %965, %967 : vector<8x8xf32>
    %969 = arith.mulf %14, %968 : vector<8x8xf32>
    %cst_254 = arith.constant 0.000000e+00 : f32
    %970 = vector.broadcast %cst_254 : f32 to vector<8x8xf32>
    %971 = arith.cmpf oge, %969, %970 : vector<8x8xf32>
    %cst_255 = arith.constant 5.000000e-02 : f32
    %972 = vector.broadcast %cst_255 : f32 to vector<8x8xf32>
    %973 = arith.mulf %972, %969 : vector<8x8xf32>
    %974 = arith.select %971, %969, %973 : vector<8x8xi1>, vector<8x8xf32>
    %975 = arith.mulf %14, %974 : vector<8x8xf32>
    %cst_256 = arith.constant dense<0.000000e+00> : vector<8xf32>
    %976 = vector.multi_reduction <add>, %975, %cst_256 [1] : vector<8x8xf32> to vector<8xf32>
    %977 = vector.shape_cast %976 : vector<8xf32> to vector<8x1xf32>
    %978 = vector.extract_strided_slice %41 {offsets = [0, 39], sizes = [8, 1], strides = [1, 1]} : vector<8x50xf32> to vector<8x1xf32>
    %979 = vector.broadcast %978 : vector<8x1xf32> to vector<8x8xf32>
    %980 = vector.broadcast %15 : vector<1x8xf32> to vector<8x8xf32>
    %981 = arith.mulf %979, %980 : vector<8x8xf32>
    %c39 = arith.constant 39 : index
    %982 = memref.load %arg9[%c39] : memref<50xf32, #tpu.memory_space<smem>>
    %983 = vector.broadcast %982 : f32 to vector<8x8xf32>
    %984 = arith.mulf %983, %39 : vector<8x8xf32>
    %985 = arith.addf %981, %984 : vector<8x8xf32>
    %c39_257 = arith.constant 39 : index
    %986 = memref.load %arg10[%c39_257] : memref<50xf32, #tpu.memory_space<smem>>
    %987 = vector.broadcast %986 : f32 to vector<8x8xf32>
    %988 = arith.mulf %987, %32 : vector<8x8xf32>
    %989 = arith.addf %985, %988 : vector<8x8xf32>
    %c39_258 = arith.constant 39 : index
    %c0_259 = arith.constant 0 : index
    %990 = vector.load %arg22[%c39_258, %c0_259] : memref<50x8xf32, #tpu.memory_space<vmem>>, vector<1x8xf32>
    %991 = vector.broadcast %990 : vector<1x8xf32> to vector<8x8xf32>
    %992 = arith.addf %989, %991 : vector<8x8xf32>
    %993 = arith.mulf %14, %992 : vector<8x8xf32>
    %cst_260 = arith.constant 0.000000e+00 : f32
    %994 = vector.broadcast %cst_260 : f32 to vector<8x8xf32>
    %995 = arith.cmpf oge, %993, %994 : vector<8x8xf32>
    %cst_261 = arith.constant 5.000000e-02 : f32
    %996 = vector.broadcast %cst_261 : f32 to vector<8x8xf32>
    %997 = arith.mulf %996, %993 : vector<8x8xf32>
    %998 = arith.select %995, %993, %997 : vector<8x8xi1>, vector<8x8xf32>
    %999 = arith.mulf %14, %998 : vector<8x8xf32>
    %cst_262 = arith.constant dense<0.000000e+00> : vector<8xf32>
    %1000 = vector.multi_reduction <add>, %999, %cst_262 [1] : vector<8x8xf32> to vector<8xf32>
    %1001 = vector.shape_cast %1000 : vector<8xf32> to vector<8x1xf32>
    %1002 = vector.extract_strided_slice %41 {offsets = [0, 40], sizes = [8, 1], strides = [1, 1]} : vector<8x50xf32> to vector<8x1xf32>
    %1003 = vector.broadcast %1002 : vector<8x1xf32> to vector<8x8xf32>
    %1004 = vector.broadcast %15 : vector<1x8xf32> to vector<8x8xf32>
    %1005 = arith.mulf %1003, %1004 : vector<8x8xf32>
    %c40 = arith.constant 40 : index
    %1006 = memref.load %arg9[%c40] : memref<50xf32, #tpu.memory_space<smem>>
    %1007 = vector.broadcast %1006 : f32 to vector<8x8xf32>
    %1008 = arith.mulf %1007, %39 : vector<8x8xf32>
    %1009 = arith.addf %1005, %1008 : vector<8x8xf32>
    %c40_263 = arith.constant 40 : index
    %1010 = memref.load %arg10[%c40_263] : memref<50xf32, #tpu.memory_space<smem>>
    %1011 = vector.broadcast %1010 : f32 to vector<8x8xf32>
    %1012 = arith.mulf %1011, %32 : vector<8x8xf32>
    %1013 = arith.addf %1009, %1012 : vector<8x8xf32>
    %c40_264 = arith.constant 40 : index
    %c0_265 = arith.constant 0 : index
    %1014 = vector.load %arg22[%c40_264, %c0_265] : memref<50x8xf32, #tpu.memory_space<vmem>>, vector<1x8xf32>
    %1015 = vector.broadcast %1014 : vector<1x8xf32> to vector<8x8xf32>
    %1016 = arith.addf %1013, %1015 : vector<8x8xf32>
    %1017 = arith.mulf %14, %1016 : vector<8x8xf32>
    %cst_266 = arith.constant 0.000000e+00 : f32
    %1018 = vector.broadcast %cst_266 : f32 to vector<8x8xf32>
    %1019 = arith.cmpf oge, %1017, %1018 : vector<8x8xf32>
    %cst_267 = arith.constant 5.000000e-02 : f32
    %1020 = vector.broadcast %cst_267 : f32 to vector<8x8xf32>
    %1021 = arith.mulf %1020, %1017 : vector<8x8xf32>
    %1022 = arith.select %1019, %1017, %1021 : vector<8x8xi1>, vector<8x8xf32>
    %1023 = arith.mulf %14, %1022 : vector<8x8xf32>
    %cst_268 = arith.constant dense<0.000000e+00> : vector<8xf32>
    %1024 = vector.multi_reduction <add>, %1023, %cst_268 [1] : vector<8x8xf32> to vector<8xf32>
    %1025 = vector.shape_cast %1024 : vector<8xf32> to vector<8x1xf32>
    %1026 = vector.extract_strided_slice %41 {offsets = [0, 41], sizes = [8, 1], strides = [1, 1]} : vector<8x50xf32> to vector<8x1xf32>
    %1027 = vector.broadcast %1026 : vector<8x1xf32> to vector<8x8xf32>
    %1028 = vector.broadcast %15 : vector<1x8xf32> to vector<8x8xf32>
    %1029 = arith.mulf %1027, %1028 : vector<8x8xf32>
    %c41 = arith.constant 41 : index
    %1030 = memref.load %arg9[%c41] : memref<50xf32, #tpu.memory_space<smem>>
    %1031 = vector.broadcast %1030 : f32 to vector<8x8xf32>
    %1032 = arith.mulf %1031, %39 : vector<8x8xf32>
    %1033 = arith.addf %1029, %1032 : vector<8x8xf32>
    %c41_269 = arith.constant 41 : index
    %1034 = memref.load %arg10[%c41_269] : memref<50xf32, #tpu.memory_space<smem>>
    %1035 = vector.broadcast %1034 : f32 to vector<8x8xf32>
    %1036 = arith.mulf %1035, %32 : vector<8x8xf32>
    %1037 = arith.addf %1033, %1036 : vector<8x8xf32>
    %c41_270 = arith.constant 41 : index
    %c0_271 = arith.constant 0 : index
    %1038 = vector.load %arg22[%c41_270, %c0_271] : memref<50x8xf32, #tpu.memory_space<vmem>>, vector<1x8xf32>
    %1039 = vector.broadcast %1038 : vector<1x8xf32> to vector<8x8xf32>
    %1040 = arith.addf %1037, %1039 : vector<8x8xf32>
    %1041 = arith.mulf %14, %1040 : vector<8x8xf32>
    %cst_272 = arith.constant 0.000000e+00 : f32
    %1042 = vector.broadcast %cst_272 : f32 to vector<8x8xf32>
    %1043 = arith.cmpf oge, %1041, %1042 : vector<8x8xf32>
    %cst_273 = arith.constant 5.000000e-02 : f32
    %1044 = vector.broadcast %cst_273 : f32 to vector<8x8xf32>
    %1045 = arith.mulf %1044, %1041 : vector<8x8xf32>
    %1046 = arith.select %1043, %1041, %1045 : vector<8x8xi1>, vector<8x8xf32>
    %1047 = arith.mulf %14, %1046 : vector<8x8xf32>
    %cst_274 = arith.constant dense<0.000000e+00> : vector<8xf32>
    %1048 = vector.multi_reduction <add>, %1047, %cst_274 [1] : vector<8x8xf32> to vector<8xf32>
    %1049 = vector.shape_cast %1048 : vector<8xf32> to vector<8x1xf32>
    %1050 = vector.extract_strided_slice %41 {offsets = [0, 42], sizes = [8, 1], strides = [1, 1]} : vector<8x50xf32> to vector<8x1xf32>
    %1051 = vector.broadcast %1050 : vector<8x1xf32> to vector<8x8xf32>
    %1052 = vector.broadcast %15 : vector<1x8xf32> to vector<8x8xf32>
    %1053 = arith.mulf %1051, %1052 : vector<8x8xf32>
    %c42 = arith.constant 42 : index
    %1054 = memref.load %arg9[%c42] : memref<50xf32, #tpu.memory_space<smem>>
    %1055 = vector.broadcast %1054 : f32 to vector<8x8xf32>
    %1056 = arith.mulf %1055, %39 : vector<8x8xf32>
    %1057 = arith.addf %1053, %1056 : vector<8x8xf32>
    %c42_275 = arith.constant 42 : index
    %1058 = memref.load %arg10[%c42_275] : memref<50xf32, #tpu.memory_space<smem>>
    %1059 = vector.broadcast %1058 : f32 to vector<8x8xf32>
    %1060 = arith.mulf %1059, %32 : vector<8x8xf32>
    %1061 = arith.addf %1057, %1060 : vector<8x8xf32>
    %c42_276 = arith.constant 42 : index
    %c0_277 = arith.constant 0 : index
    %1062 = vector.load %arg22[%c42_276, %c0_277] : memref<50x8xf32, #tpu.memory_space<vmem>>, vector<1x8xf32>
    %1063 = vector.broadcast %1062 : vector<1x8xf32> to vector<8x8xf32>
    %1064 = arith.addf %1061, %1063 : vector<8x8xf32>
    %1065 = arith.mulf %14, %1064 : vector<8x8xf32>
    %cst_278 = arith.constant 0.000000e+00 : f32
    %1066 = vector.broadcast %cst_278 : f32 to vector<8x8xf32>
    %1067 = arith.cmpf oge, %1065, %1066 : vector<8x8xf32>
    %cst_279 = arith.constant 5.000000e-02 : f32
    %1068 = vector.broadcast %cst_279 : f32 to vector<8x8xf32>
    %1069 = arith.mulf %1068, %1065 : vector<8x8xf32>
    %1070 = arith.select %1067, %1065, %1069 : vector<8x8xi1>, vector<8x8xf32>
    %1071 = arith.mulf %14, %1070 : vector<8x8xf32>
    %cst_280 = arith.constant dense<0.000000e+00> : vector<8xf32>
    %1072 = vector.multi_reduction <add>, %1071, %cst_280 [1] : vector<8x8xf32> to vector<8xf32>
    %1073 = vector.shape_cast %1072 : vector<8xf32> to vector<8x1xf32>
    %1074 = vector.extract_strided_slice %41 {offsets = [0, 43], sizes = [8, 1], strides = [1, 1]} : vector<8x50xf32> to vector<8x1xf32>
    %1075 = vector.broadcast %1074 : vector<8x1xf32> to vector<8x8xf32>
    %1076 = vector.broadcast %15 : vector<1x8xf32> to vector<8x8xf32>
    %1077 = arith.mulf %1075, %1076 : vector<8x8xf32>
    %c43 = arith.constant 43 : index
    %1078 = memref.load %arg9[%c43] : memref<50xf32, #tpu.memory_space<smem>>
    %1079 = vector.broadcast %1078 : f32 to vector<8x8xf32>
    %1080 = arith.mulf %1079, %39 : vector<8x8xf32>
    %1081 = arith.addf %1077, %1080 : vector<8x8xf32>
    %c43_281 = arith.constant 43 : index
    %1082 = memref.load %arg10[%c43_281] : memref<50xf32, #tpu.memory_space<smem>>
    %1083 = vector.broadcast %1082 : f32 to vector<8x8xf32>
    %1084 = arith.mulf %1083, %32 : vector<8x8xf32>
    %1085 = arith.addf %1081, %1084 : vector<8x8xf32>
    %c43_282 = arith.constant 43 : index
    %c0_283 = arith.constant 0 : index
    %1086 = vector.load %arg22[%c43_282, %c0_283] : memref<50x8xf32, #tpu.memory_space<vmem>>, vector<1x8xf32>
    %1087 = vector.broadcast %1086 : vector<1x8xf32> to vector<8x8xf32>
    %1088 = arith.addf %1085, %1087 : vector<8x8xf32>
    %1089 = arith.mulf %14, %1088 : vector<8x8xf32>
    %cst_284 = arith.constant 0.000000e+00 : f32
    %1090 = vector.broadcast %cst_284 : f32 to vector<8x8xf32>
    %1091 = arith.cmpf oge, %1089, %1090 : vector<8x8xf32>
    %cst_285 = arith.constant 5.000000e-02 : f32
    %1092 = vector.broadcast %cst_285 : f32 to vector<8x8xf32>
    %1093 = arith.mulf %1092, %1089 : vector<8x8xf32>
    %1094 = arith.select %1091, %1089, %1093 : vector<8x8xi1>, vector<8x8xf32>
    %1095 = arith.mulf %14, %1094 : vector<8x8xf32>
    %cst_286 = arith.constant dense<0.000000e+00> : vector<8xf32>
    %1096 = vector.multi_reduction <add>, %1095, %cst_286 [1] : vector<8x8xf32> to vector<8xf32>
    %1097 = vector.shape_cast %1096 : vector<8xf32> to vector<8x1xf32>
    %1098 = vector.extract_strided_slice %41 {offsets = [0, 44], sizes = [8, 1], strides = [1, 1]} : vector<8x50xf32> to vector<8x1xf32>
    %1099 = vector.broadcast %1098 : vector<8x1xf32> to vector<8x8xf32>
    %1100 = vector.broadcast %15 : vector<1x8xf32> to vector<8x8xf32>
    %1101 = arith.mulf %1099, %1100 : vector<8x8xf32>
    %c44 = arith.constant 44 : index
    %1102 = memref.load %arg9[%c44] : memref<50xf32, #tpu.memory_space<smem>>
    %1103 = vector.broadcast %1102 : f32 to vector<8x8xf32>
    %1104 = arith.mulf %1103, %39 : vector<8x8xf32>
    %1105 = arith.addf %1101, %1104 : vector<8x8xf32>
    %c44_287 = arith.constant 44 : index
    %1106 = memref.load %arg10[%c44_287] : memref<50xf32, #tpu.memory_space<smem>>
    %1107 = vector.broadcast %1106 : f32 to vector<8x8xf32>
    %1108 = arith.mulf %1107, %32 : vector<8x8xf32>
    %1109 = arith.addf %1105, %1108 : vector<8x8xf32>
    %c44_288 = arith.constant 44 : index
    %c0_289 = arith.constant 0 : index
    %1110 = vector.load %arg22[%c44_288, %c0_289] : memref<50x8xf32, #tpu.memory_space<vmem>>, vector<1x8xf32>
    %1111 = vector.broadcast %1110 : vector<1x8xf32> to vector<8x8xf32>
    %1112 = arith.addf %1109, %1111 : vector<8x8xf32>
    %1113 = arith.mulf %14, %1112 : vector<8x8xf32>
    %cst_290 = arith.constant 0.000000e+00 : f32
    %1114 = vector.broadcast %cst_290 : f32 to vector<8x8xf32>
    %1115 = arith.cmpf oge, %1113, %1114 : vector<8x8xf32>
    %cst_291 = arith.constant 5.000000e-02 : f32
    %1116 = vector.broadcast %cst_291 : f32 to vector<8x8xf32>
    %1117 = arith.mulf %1116, %1113 : vector<8x8xf32>
    %1118 = arith.select %1115, %1113, %1117 : vector<8x8xi1>, vector<8x8xf32>
    %1119 = arith.mulf %14, %1118 : vector<8x8xf32>
    %cst_292 = arith.constant dense<0.000000e+00> : vector<8xf32>
    %1120 = vector.multi_reduction <add>, %1119, %cst_292 [1] : vector<8x8xf32> to vector<8xf32>
    %1121 = vector.shape_cast %1120 : vector<8xf32> to vector<8x1xf32>
    %1122 = vector.extract_strided_slice %41 {offsets = [0, 45], sizes = [8, 1], strides = [1, 1]} : vector<8x50xf32> to vector<8x1xf32>
    %1123 = vector.broadcast %1122 : vector<8x1xf32> to vector<8x8xf32>
    %1124 = vector.broadcast %15 : vector<1x8xf32> to vector<8x8xf32>
    %1125 = arith.mulf %1123, %1124 : vector<8x8xf32>
    %c45 = arith.constant 45 : index
    %1126 = memref.load %arg9[%c45] : memref<50xf32, #tpu.memory_space<smem>>
    %1127 = vector.broadcast %1126 : f32 to vector<8x8xf32>
    %1128 = arith.mulf %1127, %39 : vector<8x8xf32>
    %1129 = arith.addf %1125, %1128 : vector<8x8xf32>
    %c45_293 = arith.constant 45 : index
    %1130 = memref.load %arg10[%c45_293] : memref<50xf32, #tpu.memory_space<smem>>
    %1131 = vector.broadcast %1130 : f32 to vector<8x8xf32>
    %1132 = arith.mulf %1131, %32 : vector<8x8xf32>
    %1133 = arith.addf %1129, %1132 : vector<8x8xf32>
    %c45_294 = arith.constant 45 : index
    %c0_295 = arith.constant 0 : index
    %1134 = vector.load %arg22[%c45_294, %c0_295] : memref<50x8xf32, #tpu.memory_space<vmem>>, vector<1x8xf32>
    %1135 = vector.broadcast %1134 : vector<1x8xf32> to vector<8x8xf32>
    %1136 = arith.addf %1133, %1135 : vector<8x8xf32>
    %1137 = arith.mulf %14, %1136 : vector<8x8xf32>
    %cst_296 = arith.constant 0.000000e+00 : f32
    %1138 = vector.broadcast %cst_296 : f32 to vector<8x8xf32>
    %1139 = arith.cmpf oge, %1137, %1138 : vector<8x8xf32>
    %cst_297 = arith.constant 5.000000e-02 : f32
    %1140 = vector.broadcast %cst_297 : f32 to vector<8x8xf32>
    %1141 = arith.mulf %1140, %1137 : vector<8x8xf32>
    %1142 = arith.select %1139, %1137, %1141 : vector<8x8xi1>, vector<8x8xf32>
    %1143 = arith.mulf %14, %1142 : vector<8x8xf32>
    %cst_298 = arith.constant dense<0.000000e+00> : vector<8xf32>
    %1144 = vector.multi_reduction <add>, %1143, %cst_298 [1] : vector<8x8xf32> to vector<8xf32>
    %1145 = vector.shape_cast %1144 : vector<8xf32> to vector<8x1xf32>
    %1146 = vector.extract_strided_slice %41 {offsets = [0, 46], sizes = [8, 1], strides = [1, 1]} : vector<8x50xf32> to vector<8x1xf32>
    %1147 = vector.broadcast %1146 : vector<8x1xf32> to vector<8x8xf32>
    %1148 = vector.broadcast %15 : vector<1x8xf32> to vector<8x8xf32>
    %1149 = arith.mulf %1147, %1148 : vector<8x8xf32>
    %c46 = arith.constant 46 : index
    %1150 = memref.load %arg9[%c46] : memref<50xf32, #tpu.memory_space<smem>>
    %1151 = vector.broadcast %1150 : f32 to vector<8x8xf32>
    %1152 = arith.mulf %1151, %39 : vector<8x8xf32>
    %1153 = arith.addf %1149, %1152 : vector<8x8xf32>
    %c46_299 = arith.constant 46 : index
    %1154 = memref.load %arg10[%c46_299] : memref<50xf32, #tpu.memory_space<smem>>
    %1155 = vector.broadcast %1154 : f32 to vector<8x8xf32>
    %1156 = arith.mulf %1155, %32 : vector<8x8xf32>
    %1157 = arith.addf %1153, %1156 : vector<8x8xf32>
    %c46_300 = arith.constant 46 : index
    %c0_301 = arith.constant 0 : index
    %1158 = vector.load %arg22[%c46_300, %c0_301] : memref<50x8xf32, #tpu.memory_space<vmem>>, vector<1x8xf32>
    %1159 = vector.broadcast %1158 : vector<1x8xf32> to vector<8x8xf32>
    %1160 = arith.addf %1157, %1159 : vector<8x8xf32>
    %1161 = arith.mulf %14, %1160 : vector<8x8xf32>
    %cst_302 = arith.constant 0.000000e+00 : f32
    %1162 = vector.broadcast %cst_302 : f32 to vector<8x8xf32>
    %1163 = arith.cmpf oge, %1161, %1162 : vector<8x8xf32>
    %cst_303 = arith.constant 5.000000e-02 : f32
    %1164 = vector.broadcast %cst_303 : f32 to vector<8x8xf32>
    %1165 = arith.mulf %1164, %1161 : vector<8x8xf32>
    %1166 = arith.select %1163, %1161, %1165 : vector<8x8xi1>, vector<8x8xf32>
    %1167 = arith.mulf %14, %1166 : vector<8x8xf32>
    %cst_304 = arith.constant dense<0.000000e+00> : vector<8xf32>
    %1168 = vector.multi_reduction <add>, %1167, %cst_304 [1] : vector<8x8xf32> to vector<8xf32>
    %1169 = vector.shape_cast %1168 : vector<8xf32> to vector<8x1xf32>
    %1170 = vector.extract_strided_slice %41 {offsets = [0, 47], sizes = [8, 1], strides = [1, 1]} : vector<8x50xf32> to vector<8x1xf32>
    %1171 = vector.broadcast %1170 : vector<8x1xf32> to vector<8x8xf32>
    %1172 = vector.broadcast %15 : vector<1x8xf32> to vector<8x8xf32>
    %1173 = arith.mulf %1171, %1172 : vector<8x8xf32>
    %c47 = arith.constant 47 : index
    %1174 = memref.load %arg9[%c47] : memref<50xf32, #tpu.memory_space<smem>>
    %1175 = vector.broadcast %1174 : f32 to vector<8x8xf32>
    %1176 = arith.mulf %1175, %39 : vector<8x8xf32>
    %1177 = arith.addf %1173, %1176 : vector<8x8xf32>
    %c47_305 = arith.constant 47 : index
    %1178 = memref.load %arg10[%c47_305] : memref<50xf32, #tpu.memory_space<smem>>
    %1179 = vector.broadcast %1178 : f32 to vector<8x8xf32>
    %1180 = arith.mulf %1179, %32 : vector<8x8xf32>
    %1181 = arith.addf %1177, %1180 : vector<8x8xf32>
    %c47_306 = arith.constant 47 : index
    %c0_307 = arith.constant 0 : index
    %1182 = vector.load %arg22[%c47_306, %c0_307] : memref<50x8xf32, #tpu.memory_space<vmem>>, vector<1x8xf32>
    %1183 = vector.broadcast %1182 : vector<1x8xf32> to vector<8x8xf32>
    %1184 = arith.addf %1181, %1183 : vector<8x8xf32>
    %1185 = arith.mulf %14, %1184 : vector<8x8xf32>
    %cst_308 = arith.constant 0.000000e+00 : f32
    %1186 = vector.broadcast %cst_308 : f32 to vector<8x8xf32>
    %1187 = arith.cmpf oge, %1185, %1186 : vector<8x8xf32>
    %cst_309 = arith.constant 5.000000e-02 : f32
    %1188 = vector.broadcast %cst_309 : f32 to vector<8x8xf32>
    %1189 = arith.mulf %1188, %1185 : vector<8x8xf32>
    %1190 = arith.select %1187, %1185, %1189 : vector<8x8xi1>, vector<8x8xf32>
    %1191 = arith.mulf %14, %1190 : vector<8x8xf32>
    %cst_310 = arith.constant dense<0.000000e+00> : vector<8xf32>
    %1192 = vector.multi_reduction <add>, %1191, %cst_310 [1] : vector<8x8xf32> to vector<8xf32>
    %1193 = vector.shape_cast %1192 : vector<8xf32> to vector<8x1xf32>
    %1194 = vector.extract_strided_slice %41 {offsets = [0, 48], sizes = [8, 1], strides = [1, 1]} : vector<8x50xf32> to vector<8x1xf32>
    %1195 = vector.broadcast %1194 : vector<8x1xf32> to vector<8x8xf32>
    %1196 = vector.broadcast %15 : vector<1x8xf32> to vector<8x8xf32>
    %1197 = arith.mulf %1195, %1196 : vector<8x8xf32>
    %c48 = arith.constant 48 : index
    %1198 = memref.load %arg9[%c48] : memref<50xf32, #tpu.memory_space<smem>>
    %1199 = vector.broadcast %1198 : f32 to vector<8x8xf32>
    %1200 = arith.mulf %1199, %39 : vector<8x8xf32>
    %1201 = arith.addf %1197, %1200 : vector<8x8xf32>
    %c48_311 = arith.constant 48 : index
    %1202 = memref.load %arg10[%c48_311] : memref<50xf32, #tpu.memory_space<smem>>
    %1203 = vector.broadcast %1202 : f32 to vector<8x8xf32>
    %1204 = arith.mulf %1203, %32 : vector<8x8xf32>
    %1205 = arith.addf %1201, %1204 : vector<8x8xf32>
    %c48_312 = arith.constant 48 : index
    %c0_313 = arith.constant 0 : index
    %1206 = vector.load %arg22[%c48_312, %c0_313] : memref<50x8xf32, #tpu.memory_space<vmem>>, vector<1x8xf32>
    %1207 = vector.broadcast %1206 : vector<1x8xf32> to vector<8x8xf32>
    %1208 = arith.addf %1205, %1207 : vector<8x8xf32>
    %1209 = arith.mulf %14, %1208 : vector<8x8xf32>
    %cst_314 = arith.constant 0.000000e+00 : f32
    %1210 = vector.broadcast %cst_314 : f32 to vector<8x8xf32>
    %1211 = arith.cmpf oge, %1209, %1210 : vector<8x8xf32>
    %cst_315 = arith.constant 5.000000e-02 : f32
    %1212 = vector.broadcast %cst_315 : f32 to vector<8x8xf32>
    %1213 = arith.mulf %1212, %1209 : vector<8x8xf32>
    %1214 = arith.select %1211, %1209, %1213 : vector<8x8xi1>, vector<8x8xf32>
    %1215 = arith.mulf %14, %1214 : vector<8x8xf32>
    %cst_316 = arith.constant dense<0.000000e+00> : vector<8xf32>
    %1216 = vector.multi_reduction <add>, %1215, %cst_316 [1] : vector<8x8xf32> to vector<8xf32>
    %1217 = vector.shape_cast %1216 : vector<8xf32> to vector<8x1xf32>
    %1218 = vector.extract_strided_slice %41 {offsets = [0, 49], sizes = [8, 1], strides = [1, 1]} : vector<8x50xf32> to vector<8x1xf32>
    %1219 = vector.broadcast %1218 : vector<8x1xf32> to vector<8x8xf32>
    %1220 = vector.broadcast %15 : vector<1x8xf32> to vector<8x8xf32>
    %1221 = arith.mulf %1219, %1220 : vector<8x8xf32>
    %c49 = arith.constant 49 : index
    %1222 = memref.load %arg9[%c49] : memref<50xf32, #tpu.memory_space<smem>>
    %1223 = vector.broadcast %1222 : f32 to vector<8x8xf32>
    %1224 = arith.mulf %1223, %39 : vector<8x8xf32>
    %1225 = arith.addf %1221, %1224 : vector<8x8xf32>
    %c49_317 = arith.constant 49 : index
    %1226 = memref.load %arg10[%c49_317] : memref<50xf32, #tpu.memory_space<smem>>
    %1227 = vector.broadcast %1226 : f32 to vector<8x8xf32>
    %1228 = arith.mulf %1227, %32 : vector<8x8xf32>
    %1229 = arith.addf %1225, %1228 : vector<8x8xf32>
    %c49_318 = arith.constant 49 : index
    %c0_319 = arith.constant 0 : index
    %1230 = vector.load %arg22[%c49_318, %c0_319] : memref<50x8xf32, #tpu.memory_space<vmem>>, vector<1x8xf32>
    %1231 = vector.broadcast %1230 : vector<1x8xf32> to vector<8x8xf32>
    %1232 = arith.addf %1229, %1231 : vector<8x8xf32>
    %1233 = arith.mulf %14, %1232 : vector<8x8xf32>
    %cst_320 = arith.constant 0.000000e+00 : f32
    %1234 = vector.broadcast %cst_320 : f32 to vector<8x8xf32>
    %1235 = arith.cmpf oge, %1233, %1234 : vector<8x8xf32>
    %cst_321 = arith.constant 5.000000e-02 : f32
    %1236 = vector.broadcast %cst_321 : f32 to vector<8x8xf32>
    %1237 = arith.mulf %1236, %1233 : vector<8x8xf32>
    %1238 = arith.select %1235, %1233, %1237 : vector<8x8xi1>, vector<8x8xf32>
    %1239 = arith.mulf %14, %1238 : vector<8x8xf32>
    %cst_322 = arith.constant dense<0.000000e+00> : vector<8xf32>
    %1240 = vector.multi_reduction <add>, %1239, %cst_322 [1] : vector<8x8xf32> to vector<8xf32>
    %1241 = vector.shape_cast %1240 : vector<8xf32> to vector<8x1xf32>
    %1242 = tpu.concatenate %65, %89, %113, %137, %161, %185, %209, %233, %257, %281, %305, %329, %353, %377, %401, %425 in 1 : vector<8x1xf32>, vector<8x1xf32>, vector<8x1xf32>, vector<8x1xf32>, vector<8x1xf32>, vector<8x1xf32>, vector<8x1xf32>, vector<8x1xf32>, vector<8x1xf32>, vector<8x1xf32>, vector<8x1xf32>, vector<8x1xf32>, vector<8x1xf32>, vector<8x1xf32>, vector<8x1xf32>, vector<8x1xf32> -> vector<8x16xf32>
    %1243 = tpu.concatenate %449, %473, %497, %521, %545, %569, %593, %617, %641, %665, %689, %713, %737, %761, %785, %809 in 1 : vector<8x1xf32>, vector<8x1xf32>, vector<8x1xf32>, vector<8x1xf32>, vector<8x1xf32>, vector<8x1xf32>, vector<8x1xf32>, vector<8x1xf32>, vector<8x1xf32>, vector<8x1xf32>, vector<8x1xf32>, vector<8x1xf32>, vector<8x1xf32>, vector<8x1xf32>, vector<8x1xf32>, vector<8x1xf32> -> vector<8x16xf32>
    %1244 = tpu.concatenate %833, %857, %881, %905, %929, %953, %977, %1001, %1025, %1049, %1073, %1097, %1121, %1145, %1169, %1193 in 1 : vector<8x1xf32>, vector<8x1xf32>, vector<8x1xf32>, vector<8x1xf32>, vector<8x1xf32>, vector<8x1xf32>, vector<8x1xf32>, vector<8x1xf32>, vector<8x1xf32>, vector<8x1xf32>, vector<8x1xf32>, vector<8x1xf32>, vector<8x1xf32>, vector<8x1xf32>, vector<8x1xf32>, vector<8x1xf32> -> vector<8x16xf32>
    %1245 = tpu.concatenate %1217, %1241 in 1 : vector<8x1xf32>, vector<8x1xf32> -> vector<8x2xf32>
    %1246 = tpu.concatenate %1242, %1243, %1244, %1245 in 1 : vector<8x16xf32>, vector<8x16xf32>, vector<8x16xf32>, vector<8x2xf32> -> vector<8x50xf32>
    %1247 = arith.index_cast %4 : i32 to index
    %c0_323 = arith.constant 0 : index
    %1248 = vector.load %arg24[%1247, %c0_323] : memref<8x50xf32, #tpu.memory_space<vmem>>, vector<8x50xf32>
    %1249 = vector.broadcast %34 : vector<8x1xf32> to vector<8x50xf32>
    %1250 = arith.mulf %1249, %1248 : vector<8x50xf32>
    %1251 = arith.index_cast %4 : i32 to index
    %c0_324 = arith.constant 0 : index
    %1252 = vector.load %arg26[%1251, %c0_324] : memref<8x50xf32, #tpu.memory_space<vmem>>, vector<8x50xf32>
    %1253 = arith.addf %1250, %1252 : vector<8x50xf32>
    %c0_325 = arith.constant 0 : index
    %c0_326 = arith.constant 0 : index
    %1254 = vector.load %arg13[%c0_325, %c0_326] : memref<1x50xf32, #tpu.memory_space<vmem>>, vector<1x50xf32>
    %1255 = vector.broadcast %37 : vector<8x1xf32> to vector<8x50xf32>
    %1256 = vector.broadcast %1254 : vector<1x50xf32> to vector<8x50xf32>
    %1257 = arith.mulf %1255, %1256 : vector<8x50xf32>
    %1258 = arith.addf %1253, %1257 : vector<8x50xf32>
    %c0_327 = arith.constant 0 : index
    %c0_328 = arith.constant 0 : index
    %1259 = vector.load %arg14[%c0_327, %c0_328] : memref<50x50xf32, #tpu.memory_space<vmem>>, vector<50x50xf32>
    %cst_329 = arith.constant dense<0.000000e+00> : vector<8x50xf32>
    %1260 = tpu.matmul %1246, %1259, %cst_329 {dimension_numbers = #tpu.dot_dimension_numbers<[1], [0], [0], [1], [0, 0, 1, 1], [], []>} : vector<8x50xf32>, vector<50x50xf32>, vector<8x50xf32> -> vector<8x50xf32>
    %1261 = arith.addf %1258, %1260 : vector<8x50xf32>
    %c0_330 = arith.constant 0 : index
    %c0_331 = arith.constant 0 : index
    %1262 = vector.load %arg15[%c0_330, %c0_331] : memref<1x50xf32, #tpu.memory_space<vmem>>, vector<1x50xf32>
    %1263 = vector.broadcast %34 : vector<8x1xf32> to vector<8x50xf32>
    %1264 = vector.broadcast %1262 : vector<1x50xf32> to vector<8x50xf32>
    %1265 = arith.mulf %1263, %1264 : vector<8x50xf32>
    %1266 = arith.addf %1261, %1265 : vector<8x50xf32>
    %cst_332 = arith.constant 0.000000e+00 : f32
    %1267 = vector.broadcast %cst_332 : f32 to vector<8x50xf32>
    %1268 = arith.cmpf oge, %1266, %1267 : vector<8x50xf32>
    %cst_333 = arith.constant 5.000000e-02 : f32
    %1269 = vector.broadcast %cst_333 : f32 to vector<8x50xf32>
    %1270 = arith.mulf %1269, %1266 : vector<8x50xf32>
    %1271 = arith.select %1268, %1266, %1270 : vector<8x50xi1>, vector<8x50xf32>
    %1272 = arith.index_cast %4 : i32 to index
    %c0_334 = arith.constant 0 : index
    %1273 = vector.load %arg25[%1272, %c0_334] : memref<8x128xf32, #tpu.memory_space<vmem>>, vector<8x128xf32>
    %c0_335 = arith.constant 0 : index
    %c0_336 = arith.constant 0 : index
    %1274 = vector.load %arg17[%c0_335, %c0_336] : memref<50x128xf32, #tpu.memory_space<vmem>>, vector<50x128xf32>
    %cst_337 = arith.constant dense<0.000000e+00> : vector<8x128xf32>
    %1275 = tpu.matmul %1271, %1274, %cst_337 {dimension_numbers = #tpu.dot_dimension_numbers<[1], [0], [0], [1], [0, 0, 1, 1], [], []>} : vector<8x50xf32>, vector<50x128xf32>, vector<8x128xf32> -> vector<8x128xf32>
    %1276 = arith.addf %1273, %1275 : vector<8x128xf32>
    %c0_338 = arith.constant 0 : index
    %c0_339 = arith.constant 0 : index
    %1277 = vector.load %arg18[%c0_338, %c0_339] : memref<1x128xf32, #tpu.memory_space<vmem>>, vector<1x128xf32>
    %1278 = vector.broadcast %1277 : vector<1x128xf32> to vector<8x128xf32>
    %1279 = arith.addf %1276, %1278 : vector<8x128xf32>
    %cst_340 = arith.constant 0.000000e+00 : f32
    %1280 = vector.broadcast %cst_340 : f32 to vector<8x128xf32>
    %1281 = arith.cmpf oge, %1279, %1280 : vector<8x128xf32>
    %cst_341 = arith.constant 5.000000e-02 : f32
    %1282 = vector.broadcast %cst_341 : f32 to vector<8x128xf32>
    %1283 = arith.mulf %1282, %1279 : vector<8x128xf32>
    %1284 = arith.select %1281, %1279, %1283 : vector<8x128xi1>, vector<8x128xf32>
    %c0_342 = arith.constant 0 : index
    %c0_343 = arith.constant 0 : index
    %c0_344 = arith.constant 0 : index
    %1285 = vector.load %arg19[%c0_342, %c0_343, %c0_344] : memref<1x8x128xf32, #tpu.memory_space<vmem>>, vector<1x8x128xf32>
    %1286 = vector.shape_cast %1285 : vector<1x8x128xf32> to vector<8x128xf32>
    %1287 = vector.shape_cast %1284 : vector<8x128xf32> to vector<1x8x128xf32>
    tpu.vector_store %arg19[%c0_342, %c0_343, %c0_344], %1287 {strides = array<i32>} : memref<1x8x128xf32, #tpu.memory_space<vmem>>, vector<1x8x128xf32>,
    return
  }
  func.func @transform_0(%arg0: i32, %arg1: i32) -> (i32, i32, i32) {
    %c0_i32 = arith.constant 0 : i32
    %c0_i32_0 = arith.constant 0 : i32
    %c0_i32_1 = arith.constant 0 : i32
    return %arg0, %c0_i32, %c0_i32_0 : i32, i32, i32
  }
  func.func @transform_1(%arg0: i32, %arg1: i32) -> (i32, i32, i32) {
    %c0_i32 = arith.constant 0 : i32
    %c0_i32_0 = arith.constant 0 : i32
    %c0_i32_1 = arith.constant 0 : i32
    return %arg0, %c0_i32, %c0_i32_0 : i32, i32, i32
  }
  func.func @transform_2(%arg0: i32, %arg1: i32) -> (i32, i32) {
    %c0_i32 = arith.constant 0 : i32
    %c0_i32_0 = arith.constant 0 : i32
    %c0_i32_1 = arith.constant 0 : i32
    return %c0_i32, %c0_i32_0 : i32, i32
  }
  func.func @transform_3(%arg0: i32, %arg1: i32) -> (i32, i32) {
    %c0_i32 = arith.constant 0 : i32
    %c0_i32_0 = arith.constant 0 : i32
    %c0_i32_1 = arith.constant 0 : i32
    return %c0_i32, %c0_i32_0 : i32, i32
  }
  func.func @transform_4(%arg0: i32, %arg1: i32) -> (i32, i32) {
    %c0_i32 = arith.constant 0 : i32
    %c0_i32_0 = arith.constant 0 : i32
    %c0_i32_1 = arith.constant 0 : i32
    return %c0_i32, %c0_i32_0 : i32, i32
  }
  func.func @transform_5(%arg0: i32, %arg1: i32) -> (i32, i32) {
    %c0_i32 = arith.constant 0 : i32
    %c0_i32_0 = arith.constant 0 : i32
    %c0_i32_1 = arith.constant 0 : i32
    return %c0_i32, %c0_i32_0 : i32, i32
  }
  func.func @transform_6(%arg0: i32, %arg1: i32) -> (i32, i32) {
    %c0_i32 = arith.constant 0 : i32
    %c0_i32_0 = arith.constant 0 : i32
    %c0_i32_1 = arith.constant 0 : i32
    return %c0_i32, %c0_i32_0 : i32, i32
  }
  func.func @transform_7(%arg0: i32, %arg1: i32) -> i32 {
    %c0_i32 = arith.constant 0 : i32
    %c0_i32_0 = arith.constant 0 : i32
    return %c0_i32 : i32
  }
  func.func @transform_8(%arg0: i32, %arg1: i32) -> i32 {
    %c0_i32 = arith.constant 0 : i32
    %c0_i32_0 = arith.constant 0 : i32
    return %c0_i32 : i32
  }
  func.func @transform_9(%arg0: i32, %arg1: i32) -> (i32, i32) {
    %c0_i32 = arith.constant 0 : i32
    %c0_i32_0 = arith.constant 0 : i32
    %c0_i32_1 = arith.constant 0 : i32
    return %c0_i32, %c0_i32_0 : i32, i32
  }
  func.func @transform_10(%arg0: i32, %arg1: i32) -> (i32, i32) {
    %c0_i32 = arith.constant 0 : i32
    %c0_i32_0 = arith.constant 0 : i32
    %c0_i32_1 = arith.constant 0 : i32
    return %c0_i32, %c0_i32_0 : i32, i32
  }
  func.func @transform_11(%arg0: i32, %arg1: i32) -> (i32, i32) {
    %c0_i32 = arith.constant 0 : i32
    %c0_i32_0 = arith.constant 0 : i32
    %c0_i32_1 = arith.constant 0 : i32
    return %c0_i32, %c0_i32_0 : i32, i32
  }
  func.func @transform_12(%arg0: i32, %arg1: i32) -> (i32, i32) {
    %c0_i32 = arith.constant 0 : i32
    %c0_i32_0 = arith.constant 0 : i32
    %c0_i32_1 = arith.constant 0 : i32
    return %c0_i32, %c0_i32_0 : i32, i32
  }
  func.func @transform_13(%arg0: i32, %arg1: i32) -> (i32, i32) {
    %c0_i32 = arith.constant 0 : i32
    %c0_i32_0 = arith.constant 0 : i32
    %c0_i32_1 = arith.constant 0 : i32
    return %c0_i32, %c0_i32_0 : i32, i32
  }
  func.func @transform_14(%arg0: i32, %arg1: i32) -> (i32, i32) {
    %c0_i32 = arith.constant 0 : i32
    %c0_i32_0 = arith.constant 0 : i32
    %c0_i32_1 = arith.constant 0 : i32
    return %c0_i32, %c0_i32_0 : i32, i32
  }
  func.func @transform_15(%arg0: i32, %arg1: i32) -> (i32, i32) {
    %c0_i32 = arith.constant 0 : i32
    %c0_i32_0 = arith.constant 0 : i32
    %c0_i32_1 = arith.constant 0 : i32
    return %c0_i32, %c0_i32_0 : i32, i32
  }
  func.func @transform_16(%arg0: i32, %arg1: i32) -> (i32, i32) {
    %c0_i32 = arith.constant 0 : i32
    %c0_i32_0 = arith.constant 0 : i32
    %c0_i32_1 = arith.constant 0 : i32
    return %c0_i32, %c0_i32_0 : i32, i32
  }
  func.func @transform_17(%arg0: i32, %arg1: i32) -> (i32, i32, i32) {
    %c0_i32 = arith.constant 0 : i32
    %c0_i32_0 = arith.constant 0 : i32
    return %arg0, %arg1, %c0_i32 : i32, i32, i32
  }
}

</mosaic_0001>

<llo_original>
// kernel: spatial_graph_conv.1
$region0: #{spatial_graph_conv.1}
  #allocation0 [shape = 'u32[]', space=smem, size = 0x4, offset = 0x4, fixed_abs, tag = 'smem constant byte address 0x4 - core index']
  #allocation1 [shape = 'u32[144,128]{1,0:T(1,128)}', space=vmem, size = 0x12000, scoped, tag = 'internal scratch']
  #allocation2 [shape = 'f32[1,8]{1,0:T(1,128)}', space=vmem, size = 0x200, scoped, tag = 'scratch operand']
  #allocation3 [shape = 'f32[1,8]{1,0:T(1,128)}', space=vmem, size = 0x200, scoped, tag = 'scratch operand']
  #allocation4 [shape = 'f32[50,8]{1,0:T(8,128)}', space=vmem, size = 0x7000, scoped, tag = 'scratch operand']
  #allocation5 [shape = 'f32[8,50]{1,0:T(8,128)}', space=vmem, size = 0x1000, scoped, tag = 'scratch operand']
  #allocation6 [shape = 'f32[8,50]{1,0:T(8,128)}', space=vmem, size = 0x1000, scoped, tag = 'scratch operand']
  #allocation7 [shape = 'f32[8,128]{1,0:T(8,128)}', space=vmem, size = 0x1000, scoped, tag = 'scratch operand']
  #allocation8 [shape = 'f32[8,50]{1,0:T(8,128)}', space=vmem, size = 0x1000, scoped, tag = 'scratch operand']
  %s0 = inlined_call_operand.vmem [shape: f32[2,8,4], index: 0, kind: input, shape index: {}]
  %s1 = inlined_call_operand.vmem [shape: f32[2,8,8], index: 1, kind: input, shape index: {}]
  %s2 = inlined_call_operand.vmem [shape: f32[4,50], index: 2, kind: input, shape index: {}]
  %s3 = inlined_call_operand.vmem [shape: f32[50,4], index: 3, kind: input, shape index: {}]
  %s4 = inlined_call_operand.vmem [shape: f32[50,4], index: 4, kind: input, shape index: {}]
  %s5 = inlined_call_operand.vmem [shape: f32[50,1], index: 5, kind: input, shape index: {}]
  %s6 = inlined_call_operand.vmem [shape: f32[50,1], index: 6, kind: input, shape index: {}]
  %s7 = inlined_call_operand.vmem [shape: f32[50], index: 7, kind: input, shape index: {}]
  %s8 = inlined_call_operand.vmem [shape: f32[50], index: 8, kind: input, shape index: {}]
  %s9 = inlined_call_operand.vmem [shape: f32[4,50], index: 9, kind: input, shape index: {}]
  %s10 = inlined_call_operand.vmem [shape: f32[4,50], index: 10, kind: input, shape index: {}]
  %s11 = inlined_call_operand.vmem [shape: f32[1,50], index: 11, kind: input, shape index: {}]
  %s12 = inlined_call_operand.vmem [shape: f32[50,50], index: 12, kind: input, shape index: {}]
  %s13 = inlined_call_operand.vmem [shape: f32[1,50], index: 13, kind: input, shape index: {}]
  %s14 = inlined_call_operand.vmem [shape: f32[4,128], index: 14, kind: input, shape index: {}]
  %s15 = inlined_call_operand.vmem [shape: f32[50,128], index: 15, kind: input, shape index: {}]
  %s16 = inlined_call_operand.vmem [shape: f32[1,128], index: 16, kind: input, shape index: {}]
  %s17 = inlined_call_operand.hbm [shape: f32[2,8,128], index: 17, kind: output, shape index: {}]
  %s18 = sld [smem:[#allocation0]]
  $region113: #{spatial_graph_conv.1} parent=0
    _
  %s20 = ssub.s32 1, %s18
  %s21 = scalar_select 0, %s20, %s18
  $region1: #{spatial_graph_conv.1} parent=0
    #allocation9 [shape = 'u8[512]{0}', space=smem, size = 0x200, scoped, tag = 'input window, operand 7, single buffered']
    #allocation10 [shape = 's32[2]{0}', space=sflag, size = 0x8, scoped, tag = 'scoped memory for spatial_graph_conv.1']
    #allocation11 [shape = 's32[2]{0}', space=sflag, size = 0x8, scoped, tag = 'scoped memory for spatial_graph_conv.1']
    #allocation12 [shape = 'u8[512]{0}', space=smem, size = 0x200, scoped, tag = 'input window, operand 8, single buffered']
    #allocation13 [shape = 's32[1]{0}', space=sflag, size = 0x4, scoped, tag = 'scoped memory for spatial_graph_conv.1']
    #allocation14 [shape = 'u8[8192]{0}', space=vmem, size = 0x2000, scoped, tag = 'output window, operand 0']
    %22 = vsyncpa [#allocation11], 0
    %23 = vsyncpa [#allocation13], 0
    %24 = vsyncpa [#allocation10], 0
    %s25 = scalar_lea.sflag [#allocation10], 1
    %26 = vsyncpa %s25, 0
    loop: start=0, step=1, limit=4
    $region2: #{spatial_graph_conv.1} parent=1 // loop_pre_header
      _
    $region3: #{spatial_graph_conv.1} parent=1 // loop_header
      %s28 = sphi 0, %s32
      %p29 = scmp.ge.s32.totalorder %s28, 4
      %s35 = sphi 0, %s47
      %s36 = sphi 0, %s43
      %s37 = sphi 0, %s35
      %s38 = sphi 0, %s36
      %s39 = sphi 0, %s37
      %s40 = sphi 0, %s38
      %s50 = sphi 0, %s52
      %s53 = sphi 0, %s50
      %s54 = sphi 0, %s53
      %s70 = sphi 0, %s54
      %s76 = sphi 0, %s78
      %s79 = sphi 0, %s76
      %s80 = sphi 0, %s79
      %s96 = sphi 0, %s80
      %s100 = sphi 0, %s100
      %s102 = sphi 0, %s100
      %s103 = sphi 0, %s102
      %s117 = sphi 0, %s103
      %s121 = sphi 0, %s121
      %s123 = sphi 0, %s121
      %s124 = sphi 0, %s123
      %s138 = sphi 0, %s124
      %s142 = sphi 0, %s142
      %s144 = sphi 0, %s142
      %s145 = sphi 0, %s144
      %s159 = sphi 0, %s145
      %s163 = sphi 0, %s163
      %s165 = sphi 0, %s163
      %s166 = sphi 0, %s165
      %s180 = sphi 0, %s166
      %s184 = sphi 0, %s184
      %s186 = sphi 0, %s184
      %s187 = sphi 0, %s186
      %s201 = sphi 0, %s187
      %s205 = sphi 0, %s205
      %s207 = sphi 0, %s205
      %s208 = sphi 0, %s207
      %s222 = sphi 0, %s208
      %s226 = sphi 0, %s226
      %s228 = sphi 0, %s226
      %s229 = sphi 0, %s228
      %s243 = sphi 0, %s229
      %s247 = sphi 0, %s247
      %s249 = sphi 0, %s247
      %s250 = sphi 0, %s249
      %s264 = sphi 0, %s250
      %s268 = sphi 0, %s268
      %s270 = sphi 0, %s268
      %s271 = sphi 0, %s270
      %s285 = sphi 0, %s271
      %s289 = sphi 0, %s289
      %s291 = sphi 0, %s289
      %s292 = sphi 0, %s291
      %s306 = sphi 0, %s292
      %s310 = sphi 0, %s310
      %s312 = sphi 0, %s310
      %s313 = sphi 0, %s312
      %s327 = sphi 0, %s313
      %s331 = sphi 0, %s331
      %s333 = sphi 0, %s331
      %s334 = sphi 0, %s333
      %s348 = sphi 0, %s334
      %s352 = sphi 0, %s352
      %s354 = sphi 0, %s352
      %s355 = sphi 0, %s354
      %s369 = sphi 0, %s355
      %s373 = sphi 0, %s373
      %s375 = sphi 0, %s373
      %s376 = sphi 0, %s375
      %s390 = sphi 0, %s376
      %s394 = sphi 0, %s394
      %s396 = sphi 0, %s394
      %s397 = sphi 0, %s396
      %s411 = sphi 0, %s397
      %s419 = sphi 0, %s421
      %s422 = sphi 0, %s419
      %s423 = sphi 0, %s422
      %s439 = sphi 0, %s423
    $region4: #{spatial_graph_conv.1} parent=1 // loop_header_branch
      %31 = sbr.rel (%p29) target = $region8
    $region5: #{spatial_graph_conv.1} parent=1 // loop_body
      %s33 = ssub.s32 %s28, 1
      %s34 = ssub.s32 %s28, 2
      %s41 = sadd.s32 1, %s36
      %p42 = scmp.ge.s32.totalorder %s41, 1
      %s43 = scalar_select %p42, 0, %s41
      %s44 = sadd.s32 1, %s35
      %s45 = scalar_select %p42, %s44, %s35
      %p46 = scmp.ge.s32.totalorder %s45, 2
      %s47 = scalar_select %p46, 0, %s45
      %s48 = ssub.s32 %s35, %s47
      %p49 = scmp.eq.s32.totalorder %s48, 0
      %s51 = sadd.s32 %s50, 1
      %s52 = scalar_select %p49, %s50, %s51
      %p55 = pneg %p49
      %p56 = scmp.eq.s32.totalorder %s28, 1
      %p57 = por %p55, %p56
      %p58 = scmp.ne.s32.totalorder %s50, %s53
      %p59 = scmp.eq.s32.totalorder %s28, 0
      %p60 = por %p58, %p59
      %p61 = scmp.ne.s32.totalorder %s50, %s53
      %p62 = scmp.eq.s32.totalorder %s33, 1
      %p63 = por %p61, %p62
      %p64 = scmp.ne.s32.totalorder %s53, %s54
      %p65 = scmp.eq.s32.totalorder %s33, 0
      %p66 = por %p64, %p65
      %p67 = scmp.ne.s32.totalorder %s53, %s54
      %p68 = scmp.eq.s32.totalorder %s34, 1
      %p69 = por %p67, %p68
      %p71 = scmp.ne.s32.totalorder %s54, %s70
      %p72 = scmp.eq.s32.totalorder %s34, 0
      %p73 = por %p71, %p72
      %s74 = ssub.s32 %s35, %s47
      %p75 = scmp.eq.s32.totalorder %s74, 0
      %s77 = sadd.s32 %s76, 1
      %s78 = scalar_select %p75, %s76, %s77
      %p81 = pneg %p75
      %p82 = scmp.eq.s32.totalorder %s28, 1
      %p83 = por %p81, %p82
      %p84 = scmp.ne.s32.totalorder %s76, %s79
      %p85 = scmp.eq.s32.totalorder %s28, 0
      %p86 = por %p84, %p85
      %p87 = scmp.ne.s32.totalorder %s76, %s79
      %p88 = scmp.eq.s32.totalorder %s33, 1
      %p89 = por %p87, %p88
      %p90 = scmp.ne.s32.totalorder %s79, %s80
      %p91 = scmp.eq.s32.totalorder %s33, 0
      %p92 = por %p90, %p91
      %p93 = scmp.ne.s32.totalorder %s79, %s80
      %p94 = scmp.eq.s32.totalorder %s34, 1
      %p95 = por %p93, %p94
      %p97 = scmp.ne.s32.totalorder %s80, %s96
      %p98 = scmp.eq.s32.totalorder %s34, 0
      %p99 = por %p97, %p98
      %s101 = sadd.s32 %s100, 1
      %p104 = scmp.eq.s32.totalorder %s28, 1
      %p105 = scmp.ne.s32.totalorder %s100, %s102
      %p106 = scmp.eq.s32.totalorder %s28, 0
      %p107 = por %p105, %p106
      %p108 = scmp.ne.s32.totalorder %s100, %s102
      %p109 = scmp.eq.s32.totalorder %s33, 1
      %p110 = por %p108, %p109
      %p111 = scmp.ne.s32.totalorder %s102, %s103
      %p112 = scmp.eq.s32.totalorder %s33, 0
      %p113 = por %p111, %p112
      %p114 = scmp.ne.s32.totalorder %s102, %s103
      %p115 = scmp.eq.s32.totalorder %s34, 1
      %p116 = por %p114, %p115
      %p118 = scmp.ne.s32.totalorder %s103, %s117
      %p119 = scmp.eq.s32.totalorder %s34, 0
      %p120 = por %p118, %p119
      %s122 = sadd.s32 %s121, 1
      %p125 = scmp.eq.s32.totalorder %s28, 1
      %p126 = scmp.ne.s32.totalorder %s121, %s123
      %p127 = scmp.eq.s32.totalorder %s28, 0
      %p128 = por %p126, %p127
      %p129 = scmp.ne.s32.totalorder %s121, %s123
      %p130 = scmp.eq.s32.totalorder %s33, 1
      %p131 = por %p129, %p130
      %p132 = scmp.ne.s32.totalorder %s123, %s124
      %p133 = scmp.eq.s32.totalorder %s33, 0
      %p134 = por %p132, %p133
      %p135 = scmp.ne.s32.totalorder %s123, %s124
      %p136 = scmp.eq.s32.totalorder %s34, 1
      %p137 = por %p135, %p136
      %p139 = scmp.ne.s32.totalorder %s124, %s138
      %p140 = scmp.eq.s32.totalorder %s34, 0
      %p141 = por %p139, %p140
      %s143 = sadd.s32 %s142, 1
      %p146 = scmp.eq.s32.totalorder %s28, 1
      %p147 = scmp.ne.s32.totalorder %s142, %s144
      %p148 = scmp.eq.s32.totalorder %s28, 0
      %p149 = por %p147, %p148
      %p150 = scmp.ne.s32.totalorder %s142, %s144
      %p151 = scmp.eq.s32.totalorder %s33, 1
      %p152 = por %p150, %p151
      %p153 = scmp.ne.s32.totalorder %s144, %s145
      %p154 = scmp.eq.s32.totalorder %s33, 0
      %p155 = por %p153, %p154
      %p156 = scmp.ne.s32.totalorder %s144, %s145
      %p157 = scmp.eq.s32.totalorder %s34, 1
      %p158 = por %p156, %p157
      %p160 = scmp.ne.s32.totalorder %s145, %s159
      %p161 = scmp.eq.s32.totalorder %s34, 0
      %p162 = por %p160, %p161
      %s164 = sadd.s32 %s163, 1
      %p167 = scmp.eq.s32.totalorder %s28, 1
      %p168 = scmp.ne.s32.totalorder %s163, %s165
      %p169 = scmp.eq.s32.totalorder %s28, 0
      %p170 = por %p168, %p169
      %p171 = scmp.ne.s32.totalorder %s163, %s165
      %p172 = scmp.eq.s32.totalorder %s33, 1
      %p173 = por %p171, %p172
      %p174 = scmp.ne.s32.totalorder %s165, %s166
      %p175 = scmp.eq.s32.totalorder %s33, 0
      %p176 = por %p174, %p175
      %p177 = scmp.ne.s32.totalorder %s165, %s166
      %p178 = scmp.eq.s32.totalorder %s34, 1
      %p179 = por %p177, %p178
      %p181 = scmp.ne.s32.totalorder %s166, %s180
      %p182 = scmp.eq.s32.totalorder %s34, 0
      %p183 = por %p181, %p182
      %s185 = sadd.s32 %s184, 1
      %p188 = scmp.eq.s32.totalorder %s28, 1
      %p189 = scmp.ne.s32.totalorder %s184, %s186
      %p190 = scmp.eq.s32.totalorder %s28, 0
      %p191 = por %p189, %p190
      %p192 = scmp.ne.s32.totalorder %s184, %s186
      %p193 = scmp.eq.s32.totalorder %s33, 1
      %p194 = por %p192, %p193
      %p195 = scmp.ne.s32.totalorder %s186, %s187
      %p196 = scmp.eq.s32.totalorder %s33, 0
      %p197 = por %p195, %p196
      %p198 = scmp.ne.s32.totalorder %s186, %s187
      %p199 = scmp.eq.s32.totalorder %s34, 1
      %p200 = por %p198, %p199
      %p202 = scmp.ne.s32.totalorder %s187, %s201
      %p203 = scmp.eq.s32.totalorder %s34, 0
      %p204 = por %p202, %p203
      %s206 = sadd.s32 %s205, 1
      %p209 = scmp.eq.s32.totalorder %s28, 1
      %p210 = scmp.ne.s32.totalorder %s205, %s207
      %p211 = scmp.eq.s32.totalorder %s28, 0
      %p212 = por %p210, %p211
      %p213 = scmp.ne.s32.totalorder %s205, %s207
      %p214 = scmp.eq.s32.totalorder %s33, 1
      %p215 = por %p213, %p214
      %p216 = scmp.ne.s32.totalorder %s207, %s208
      %p217 = scmp.eq.s32.totalorder %s33, 0
      %p218 = por %p216, %p217
      %p219 = scmp.ne.s32.totalorder %s207, %s208
      %p220 = scmp.eq.s32.totalorder %s34, 1
      %p221 = por %p219, %p220
      %p223 = scmp.ne.s32.totalorder %s208, %s222
      %p224 = scmp.eq.s32.totalorder %s34, 0
      %p225 = por %p223, %p224
      %s227 = sadd.s32 %s226, 1
      %p230 = scmp.eq.s32.totalorder %s28, 1
      %p231 = scmp.ne.s32.totalorder %s226, %s228
      %p232 = scmp.eq.s32.totalorder %s28, 0
      %p233 = por %p231, %p232
      %p234 = scmp.ne.s32.totalorder %s226, %s228
      %p235 = scmp.eq.s32.totalorder %s33, 1
      %p236 = por %p234, %p235
      %p237 = scmp.ne.s32.totalorder %s228, %s229
      %p238 = scmp.eq.s32.totalorder %s33, 0
      %p239 = por %p237, %p238
      %p240 = scmp.ne.s32.totalorder %s228, %s229
      %p241 = scmp.eq.s32.totalorder %s34, 1
      %p242 = por %p240, %p241
      %p244 = scmp.ne.s32.totalorder %s229, %s243
      %p245 = scmp.eq.s32.totalorder %s34, 0
      %p246 = por %p244, %p245
      %s248 = sadd.s32 %s247, 1
      %p251 = scmp.eq.s32.totalorder %s28, 1
      %p252 = scmp.ne.s32.totalorder %s247, %s249
      %p253 = scmp.eq.s32.totalorder %s28, 0
      %p254 = por %p252, %p253
      %p255 = scmp.ne.s32.totalorder %s247, %s249
      %p256 = scmp.eq.s32.totalorder %s33, 1
      %p257 = por %p255, %p256
      %p258 = scmp.ne.s32.totalorder %s249, %s250
      %p259 = scmp.eq.s32.totalorder %s33, 0
      %p260 = por %p258, %p259
      %p261 = scmp.ne.s32.totalorder %s249, %s250
      %p262 = scmp.eq.s32.totalorder %s34, 1
      %p263 = por %p261, %p262
      %p265 = scmp.ne.s32.totalorder %s250, %s264
      %p266 = scmp.eq.s32.totalorder %s34, 0
      %p267 = por %p265, %p266
      %s269 = sadd.s32 %s268, 1
      %p272 = scmp.eq.s32.totalorder %s28, 1
      %p273 = scmp.ne.s32.totalorder %s268, %s270
      %p274 = scmp.eq.s32.totalorder %s28, 0
      %p275 = por %p273, %p274
      %p276 = scmp.ne.s32.totalorder %s268, %s270
      %p277 = scmp.eq.s32.totalorder %s33, 1
      %p278 = por %p276, %p277
      %p279 = scmp.ne.s32.totalorder %s270, %s271
      %p280 = scmp.eq.s32.totalorder %s33, 0
      %p281 = por %p279, %p280
      %p282 = scmp.ne.s32.totalorder %s270, %s271
      %p283 = scmp.eq.s32.totalorder %s34, 1
      %p284 = por %p282, %p283
      %p286 = scmp.ne.s32.totalorder %s271, %s285
      %p287 = scmp.eq.s32.totalorder %s34, 0
      %p288 = por %p286, %p287
      %s290 = sadd.s32 %s289, 1
      %p293 = scmp.eq.s32.totalorder %s28, 1
      %p294 = scmp.ne.s32.totalorder %s289, %s291
      %p295 = scmp.eq.s32.totalorder %s28, 0
      %p296 = por %p294, %p295
      %p297 = scmp.ne.s32.totalorder %s289, %s291
      %p298 = scmp.eq.s32.totalorder %s33, 1
      %p299 = por %p297, %p298
      %p300 = scmp.ne.s32.totalorder %s291, %s292
      %p301 = scmp.eq.s32.totalorder %s33, 0
      %p302 = por %p300, %p301
      %p303 = scmp.ne.s32.totalorder %s291, %s292
      %p304 = scmp.eq.s32.totalorder %s34, 1
      %p305 = por %p303, %p304
      %p307 = scmp.ne.s32.totalorder %s292, %s306
      %p308 = scmp.eq.s32.totalorder %s34, 0
      %p309 = por %p307, %p308
      %s311 = sadd.s32 %s310, 1
      %p314 = scmp.eq.s32.totalorder %s28, 1
      %p315 = scmp.ne.s32.totalorder %s310, %s312
      %p316 = scmp.eq.s32.totalorder %s28, 0
      %p317 = por %p315, %p316
      %p318 = scmp.ne.s32.totalorder %s310, %s312
      %p319 = scmp.eq.s32.totalorder %s33, 1
      %p320 = por %p318, %p319
      %p321 = scmp.ne.s32.totalorder %s312, %s313
      %p322 = scmp.eq.s32.totalorder %s33, 0
      %p323 = por %p321, %p322
      %p324 = scmp.ne.s32.totalorder %s312, %s313
      %p325 = scmp.eq.s32.totalorder %s34, 1
      %p326 = por %p324, %p325
      %p328 = scmp.ne.s32.totalorder %s313, %s327
      %p329 = scmp.eq.s32.totalorder %s34, 0
      %p330 = por %p328, %p329
      %s332 = sadd.s32 %s331, 1
      %p335 = scmp.eq.s32.totalorder %s28, 1
      %p336 = scmp.ne.s32.totalorder %s331, %s333
      %p337 = scmp.eq.s32.totalorder %s28, 0
      %p338 = por %p336, %p337
      %p339 = scmp.ne.s32.totalorder %s331, %s333
      %p340 = scmp.eq.s32.totalorder %s33, 1
      %p341 = por %p339, %p340
      %p342 = scmp.ne.s32.totalorder %s333, %s334
      %p343 = scmp.eq.s32.totalorder %s33, 0
      %p344 = por %p342, %p343
      %p345 = scmp.ne.s32.totalorder %s333, %s334
      %p346 = scmp.eq.s32.totalorder %s34, 1
      %p347 = por %p345, %p346
      %p349 = scmp.ne.s32.totalorder %s334, %s348
      %p350 = scmp.eq.s32.totalorder %s34, 0
      %p351 = por %p349, %p350
      %s353 = sadd.s32 %s352, 1
      %p356 = scmp.eq.s32.totalorder %s28, 1
      %p357 = scmp.ne.s32.totalorder %s352, %s354
      %p358 = scmp.eq.s32.totalorder %s28, 0
      %p359 = por %p357, %p358
      %p360 = scmp.ne.s32.totalorder %s352, %s354
      %p361 = scmp.eq.s32.totalorder %s33, 1
      %p362 = por %p360, %p361
      %p363 = scmp.ne.s32.totalorder %s354, %s355
      %p364 = scmp.eq.s32.totalorder %s33, 0
      %p365 = por %p363, %p364
      %p366 = scmp.ne.s32.totalorder %s354, %s355
      %p367 = scmp.eq.s32.totalorder %s34, 1
      %p368 = por %p366, %p367
      %p370 = scmp.ne.s32.totalorder %s355, %s369
      %p371 = scmp.eq.s32.totalorder %s34, 0
      %p372 = por %p370, %p371
      %s374 = sadd.s32 %s373, 1
      %p377 = scmp.eq.s32.totalorder %s28, 1
      %p378 = scmp.ne.s32.totalorder %s373, %s375
      %p379 = scmp.eq.s32.totalorder %s28, 0
      %p380 = por %p378, %p379
      %p381 = scmp.ne.s32.totalorder %s373, %s375
      %p382 = scmp.eq.s32.totalorder %s33, 1
      %p383 = por %p381, %p382
      %p384 = scmp.ne.s32.totalorder %s375, %s376
      %p385 = scmp.eq.s32.totalorder %s33, 0
      %p386 = por %p384, %p385
      %p387 = scmp.ne.s32.totalorder %s375, %s376
      %p388 = scmp.eq.s32.totalorder %s34, 1
      %p389 = por %p387, %p388
      %p391 = scmp.ne.s32.totalorder %s376, %s390
      %p392 = scmp.eq.s32.totalorder %s34, 0
      %p393 = por %p391, %p392
      %s395 = sadd.s32 %s394, 1
      %p398 = scmp.eq.s32.totalorder %s28, 1
      %p399 = scmp.ne.s32.totalorder %s394, %s396
      %p400 = scmp.eq.s32.totalorder %s28, 0
      %p401 = por %p399, %p400
      %p402 = scmp.ne.s32.totalorder %s394, %s396
      %p403 = scmp.eq.s32.totalorder %s33, 1
      %p404 = por %p402, %p403
      %p405 = scmp.ne.s32.totalorder %s396, %s397
      %p406 = scmp.eq.s32.totalorder %s33, 0
      %p407 = por %p405, %p406
      %p408 = scmp.ne.s32.totalorder %s396, %s397
      %p409 = scmp.eq.s32.totalorder %s34, 1
      %p410 = por %p408, %p409
      %p412 = scmp.ne.s32.totalorder %s397, %s411
      %p413 = scmp.eq.s32.totalorder %s34, 0
      %p414 = por %p412, %p413
      %s415 = ssub.s32 %s35, %s47
      %s416 = ssub.s32 %s36, %s43
      %s417 = sor.u32 %s415, %s416
      %p418 = scmp.eq.s32.totalorder %s417, 0
      %s420 = sadd.s32 %s419, 1
      %s421 = scalar_select %p418, %s419, %s420
      %p424 = pneg %p418
      %p425 = scmp.eq.s32.totalorder %s28, 1
      %p426 = por %p424, %p425
      %p427 = scmp.ne.s32.totalorder %s419, %s422
      %p428 = scmp.eq.s32.totalorder %s28, 0
      %p429 = por %p427, %p428
      %p430 = scmp.ne.s32.totalorder %s419, %s422
      %p431 = scmp.eq.s32.totalorder %s33, 1
      %p432 = por %p430, %p431
      %p433 = scmp.ne.s32.totalorder %s422, %s423
      %p434 = scmp.eq.s32.totalorder %s33, 0
      %p435 = por %p433, %p434
      %p436 = scmp.ne.s32.totalorder %s422, %s423
      %p437 = scmp.eq.s32.totalorder %s34, 1
      %p438 = por %p436, %p437
      %p440 = scmp.ne.s32.totalorder %s423, %s439
      %p441 = scmp.eq.s32.totalorder %s34, 0
      %p442 = por %p440, %p441
      %p443 = scmp.le.s32.totalorder 1, %s28
      %p444 = scmp.lt.s32.totalorder %s28, 3
      %p445 = pnand %p443, %p444
      %p446 = pneg %p445
      // Predicated region
      $region9: #{spatial_graph_conv.1} parent=5 // pred_check
        _
      $region10: #{spatial_graph_conv.1} parent=5 // pred_check_branch
        %448 = sbr.rel (%p445) target = $region12
      $region11: #{spatial_graph_conv.1} parent=5 // pred_region
        %s449 = ssub.s32 %s28, 1
        // Predicated region
        $region13: #{spatial_graph_conv.1} parent=11 // pred_check
          %p450 = pneg %p113
        $region14: #{spatial_graph_conv.1} parent=11 // pred_check_branch
          %452 = sbr.rel (%p450) target = $region16
        $region15: #{spatial_graph_conv.1} parent=11 // pred_region
          _
        $region16: #{spatial_graph_conv.1} parent=11 // pred_fallthru
          _
        // Predicated region
        $region17: #{spatial_graph_conv.1} parent=11 // pred_check
          %p453 = pneg %p134
        $region18: #{spatial_graph_conv.1} parent=11 // pred_check_branch
          %455 = sbr.rel (%p453) target = $region20
        $region19: #{spatial_graph_conv.1} parent=11 // pred_region
          _
        $region20: #{spatial_graph_conv.1} parent=11 // pred_fallthru
          _
        // Predicated region
        $region21: #{spatial_graph_conv.1} parent=11 // pred_check
          %p456 = pneg %p155
        $region22: #{spatial_graph_conv.1} parent=11 // pred_check_branch
          %458 = sbr.rel (%p456) target = $region24
        $region23: #{spatial_graph_conv.1} parent=11 // pred_region
          _
        $region24: #{spatial_graph_conv.1} parent=11 // pred_fallthru
          _
        // Predicated region
        $region25: #{spatial_graph_conv.1} parent=11 // pred_check
          %p459 = pneg %p176
        $region26: #{spatial_graph_conv.1} parent=11 // pred_check_branch
          %461 = sbr.rel (%p459) target = $region28
        $region27: #{spatial_graph_conv.1} parent=11 // pred_region
          _
        $region28: #{spatial_graph_conv.1} parent=11 // pred_fallthru
          _
        // Predicated region
        $region29: #{spatial_graph_conv.1} parent=11 // pred_check
          %p462 = pneg %p197
        $region30: #{spatial_graph_conv.1} parent=11 // pred_check_branch
          %464 = sbr.rel (%p462) target = $region32
        $region31: #{spatial_graph_conv.1} parent=11 // pred_region
          _
        $region32: #{spatial_graph_conv.1} parent=11 // pred_fallthru
          _
        // Predicated region
        $region33: #{spatial_graph_conv.1} parent=11 // pred_check
          %p465 = pneg %p218
        $region34: #{spatial_graph_conv.1} parent=11 // pred_check_branch
          %467 = sbr.rel (%p465) target = $region36
        $region35: #{spatial_graph_conv.1} parent=11 // pred_region
          %s469 = ssub.s32 16, 16
          %470 = vsyncadd [#allocation11], %s469
          %s472 = sshll.u32 %s7, 4
          %s473 = int_to_ptr.vmem [resolvable:$true] %s472
          %475 = dma.vmem_to_smem %s473, 16, [#allocation9], [#allocation11]
        $region36: #{spatial_graph_conv.1} parent=11 // pred_fallthru
          _
        // Predicated region
        $region37: #{spatial_graph_conv.1} parent=11 // pred_check
          %p476 = pneg %p239
        $region38: #{spatial_graph_conv.1} parent=11 // pred_check_branch
          %478 = sbr.rel (%p476) target = $region40
        $region39: #{spatial_graph_conv.1} parent=11 // pred_region
          %s480 = ssub.s32 16, 16
          %481 = vsyncadd [#allocation13], %s480
          %s483 = sshll.u32 %s8, 4
          %s484 = int_to_ptr.vmem [resolvable:$true] %s483
          %486 = dma.vmem_to_smem %s484, 16, [#allocation12], [#allocation13]
        $region40: #{spatial_graph_conv.1} parent=11 // pred_fallthru
          _
        // Predicated region
        $region41: #{spatial_graph_conv.1} parent=11 // pred_check
          %p487 = pneg %p260
        $region42: #{spatial_graph_conv.1} parent=11 // pred_check_branch
          %489 = sbr.rel (%p487) target = $region44
        $region43: #{spatial_graph_conv.1} parent=11 // pred_region
          _
        $region44: #{spatial_graph_conv.1} parent=11 // pred_fallthru
          _
        // Predicated region
        $region45: #{spatial_graph_conv.1} parent=11 // pred_check
          %p490 = pneg %p281
        $region46: #{spatial_graph_conv.1} parent=11 // pred_check_branch
          %492 = sbr.rel (%p490) target = $region48
        $region47: #{spatial_graph_conv.1} parent=11 // pred_region
          _
        $region48: #{spatial_graph_conv.1} parent=11 // pred_fallthru
          _
        // Predicated region
        $region49: #{spatial_graph_conv.1} parent=11 // pred_check
          %p493 = pneg %p302
        $region50: #{spatial_graph_conv.1} parent=11 // pred_check_branch
          %495 = sbr.rel (%p493) target = $region52
        $region51: #{spatial_graph_conv.1} parent=11 // pred_region
          _
        $region52: #{spatial_graph_conv.1} parent=11 // pred_fallthru
          _
        // Predicated region
        $region53: #{spatial_graph_conv.1} parent=11 // pred_check
          %p496 = pneg %p323
        $region54: #{spatial_graph_conv.1} parent=11 // pred_check_branch
          %498 = sbr.rel (%p496) target = $region56
        $region55: #{spatial_graph_conv.1} parent=11 // pred_region
          _
        $region56: #{spatial_graph_conv.1} parent=11 // pred_fallthru
          _
        // Predicated region
        $region57: #{spatial_graph_conv.1} parent=11 // pred_check
          %p499 = pneg %p344
        $region58: #{spatial_graph_conv.1} parent=11 // pred_check_branch
          %501 = sbr.rel (%p499) target = $region60
        $region59: #{spatial_graph_conv.1} parent=11 // pred_region
          _
        $region60: #{spatial_graph_conv.1} parent=11 // pred_fallthru
          _
        // Predicated region
        $region61: #{spatial_graph_conv.1} parent=11 // pred_check
          %p502 = pneg %p365
        $region62: #{spatial_graph_conv.1} parent=11 // pred_check_branch
          %504 = sbr.rel (%p502) target = $region64
        $region63: #{spatial_graph_conv.1} parent=11 // pred_region
          _
        $region64: #{spatial_graph_conv.1} parent=11 // pred_fallthru
          _
        // Predicated region
        $region65: #{spatial_graph_conv.1} parent=11 // pred_check
          %p505 = pneg %p386
        $region66: #{spatial_graph_conv.1} parent=11 // pred_check_branch
          %507 = sbr.rel (%p505) target = $region68
        $region67: #{spatial_graph_conv.1} parent=11 // pred_region
          _
        $region68: #{spatial_graph_conv.1} parent=11 // pred_fallthru
          _
        // Predicated region
        $region69: #{spatial_graph_conv.1} parent=11 // pred_check
          %p508 = pneg %p407
        $region70: #{spatial_graph_conv.1} parent=11 // pred_check_branch
          %510 = sbr.rel (%p508) target = $region72
        $region71: #{spatial_graph_conv.1} parent=11 // pred_region
          _
        $region72: #{spatial_graph_conv.1} parent=11 // pred_fallthru
          _
      $region12: #{spatial_graph_conv.1} parent=5 // pred_fallthru
        _
      %p511 = scmp.lt.s32.totalorder %s28, 2
      // Predicated region
      $region73: #{spatial_graph_conv.1} parent=5 // pred_check
        %p512 = pneg %p511
      $region74: #{spatial_graph_conv.1} parent=5 // pred_check_branch
        %514 = sbr.rel (%p512) target = $region76
      $region75: #{spatial_graph_conv.1} parent=5 // pred_region
        // Predicated region
        $region77: #{spatial_graph_conv.1} parent=75 // pred_check
          %p515 = pneg %p60
        $region78: #{spatial_graph_conv.1} parent=75 // pred_check_branch
          %517 = sbr.rel (%p515) target = $region80
        $region79: #{spatial_graph_conv.1} parent=75 // pred_region
          %p518 = scmp.lt.s32.totalorder %s35, 1
          %s519 = scalar_select %p518, %s35, 1
          %s520 = smul.addr %s519, 8
          %s521 = scalar_lea.vmem %s0, %s520
        $region80: #{spatial_graph_conv.1} parent=75 // pred_fallthru
          _
        // Predicated region
        $region81: #{spatial_graph_conv.1} parent=75 // pred_check
          %p522 = pneg %p86
        $region82: #{spatial_graph_conv.1} parent=75 // pred_check_branch
          %524 = sbr.rel (%p522) target = $region84
        $region83: #{spatial_graph_conv.1} parent=75 // pred_region
          %p525 = scmp.lt.s32.totalorder %s35, 1
          %s526 = scalar_select %p525, %s35, 1
          %s527 = smul.addr %s526, 8
          %s528 = scalar_lea.vmem %s1, %s527
        $region84: #{spatial_graph_conv.1} parent=75 // pred_fallthru
          _
      $region76: #{spatial_graph_conv.1} parent=5 // pred_fallthru
        _
      %p529 = scmp.le.s32.totalorder 1, %s28
      %p530 = scmp.lt.s32.totalorder %s28, 3
      %p531 = pnand %p529, %p530
      %p532 = pneg %p531
      // Predicated region
      $region85: #{spatial_graph_conv.1} parent=5 // pred_check
        _
      $region86: #{spatial_graph_conv.1} parent=5 // pred_check_branch
        %534 = sbr.rel (%p531) target = $region88
      $region87: #{spatial_graph_conv.1} parent=5 // pred_region
        %s535 = ssub.s32 %s28, 1
        // Predicated region
        $region89: #{spatial_graph_conv.1} parent=87 // pred_check
          %p536 = pneg %p218
        $region90: #{spatial_graph_conv.1} parent=87 // pred_check_branch
          %538 = sbr.rel (%p536) target = $region92
        $region91: #{spatial_graph_conv.1} parent=87 // pred_region
          %539 = dma.done [#allocation11], 16
        $region92: #{spatial_graph_conv.1} parent=87 // pred_fallthru
          _
        // Predicated region
        $region93: #{spatial_graph_conv.1} parent=87 // pred_check
          %p540 = pneg %p239
        $region94: #{spatial_graph_conv.1} parent=87 // pred_check_branch
          %542 = sbr.rel (%p540) target = $region96
        $region95: #{spatial_graph_conv.1} parent=87 // pred_region
          %543 = dma.done [#allocation13], 16
        $region96: #{spatial_graph_conv.1} parent=87 // pred_fallthru
          _
        %544 = sfence
        %p545 = scmp.lt.s32.totalorder %s37, 1
        %s546 = scalar_select %p545, %s37, 1
        %s547 = smul.addr %s546, 8
        %s548 = scalar_lea.vmem %s0, %s547
        %p549 = pneg %p66
        %p550 = pneg %p63
        %p551 = scmp.lt.s32.totalorder %s37, 1
        %s552 = scalar_select %p551, %s37, 1
        %s553 = smul.addr %s552, 8
        %s554 = scalar_lea.vmem %s1, %s553
        %p555 = pneg %p92
        %p556 = pneg %p89
        %p557 = pneg %p113
        %p558 = pneg %p110
        %p559 = pneg %p134
        %p560 = pneg %p131
        %p561 = pneg %p155
        %p562 = pneg %p152
        %p563 = pneg %p176
        %p564 = pneg %p173
        %p565 = pneg %p197
        %p566 = pneg %p194
        %p567 = pneg %p218
        %p568 = pneg %p215
        %p569 = pneg %p239
        %p570 = pneg %p236
        %p571 = pneg %p260
        %p572 = pneg %p257
        %p573 = pneg %p281
        %p574 = pneg %p278
        %p575 = pneg %p302
        %p576 = pneg %p299
        %p577 = pneg %p323
        %p578 = pneg %p320
        %p579 = pneg %p344
        %p580 = pneg %p341
        %p581 = pneg %p365
        %p582 = pneg %p362
        %p583 = pneg %p386
        %p584 = pneg %p383
        %p585 = pneg %p407
        %p586 = pneg %p404
        %p587 = pneg %p435
        %p588 = pneg %p432
        %s589 = sand.u32 %s422, 1
        %s590 = scalar_lea.sflag [#allocation10], %s589
        %s591 = sand.u32 %s422, 1
        %s592 = smul.addr %s591, 8
        %s593 = scalar_lea.vmem [#allocation14], %s592
        %p594 = scmp.lt.s32.totalorder %s37, 1
        %s595 = scalar_select %p594, %s37, 1
        %s596 = smul.addr %s595, 8
        %s597 = scalar_lea.vmem %s0, %s596
        %p598 = scmp.lt.s32.totalorder %s37, 1
        %s599 = scalar_select %p598, %s37, 1
        %s600 = smul.addr %s599, 8
        %s601 = scalar_lea.vmem %s1, %s600
        %p602 = scmp.eq.s32.totalorder %s38, 0
        // Predicated region
        $region97: #{spatial_graph_conv.1} parent=87 // pred_check
          %p603 = pneg %p602
        $region98: #{spatial_graph_conv.1} parent=87 // pred_check_branch
          %605 = sbr.rel (%p603) target = $region100
        $region99: #{spatial_graph_conv.1} parent=87 // pred_region
          %v606 = vld [vmem:[%s597] sm:$0xff]
          %v607 = vld [vmem:[%s601] sm:$0xff]
          %vm608 = vcmask 64512
          %v610 = vsel %vm608, 1.0, 0
          %v613 = vsel %vm608, %v607, 0
          %615 = vmatprep.subr.mxu0 0.0
          %616 = vmatpush1.xpose.msra.mxu0 0.0
          %617 = vmatprep.subr.mxu0 0.0
          %618 = vmatpush1.xpose.msra.mxu0 0.0
          %619 = vmatprep.subr.mxu0 0.0
          %620 = vmatpush1.xpose.msra.mxu0 0.0
          %621 = vmatprep.subr.mxu0 0.0
          %622 = vmatpush1.xpose.msra.mxu0 0.0
          %623 = vmatprep.subr.mxu0 0.0
          %624 = vmatpush1.xpose.msra.mxu0 0.0
          %625 = vmatprep.subr.mxu0 0.0
          %626 = vmatpush1.xpose.msra.mxu0 0.0
          %627 = vmatprep.subr.mxu0 0.0
          %628 = vmatpush1.xpose.msra.mxu0 0.0
          %629 = vmatprep.subr.mxu0 0.0
          %630 = vmatpush1.xpose.msra.mxu0 0.0
          %631 = vmatprep.subr.mxu0 0.0
          %632 = vmatpush1.xpose.msra.mxu0 0.0
          %633 = vmatprep.subr.mxu0 0.0
          %634 = vmatpush1.xpose.msra.mxu0 0.0
          %635 = vmatprep.subr.mxu0 0.0
          %636 = vmatpush1.xpose.msra.mxu0 0.0
          %637 = vmatprep.subr.mxu0 0.0
          %638 = vmatpush1.xpose.msra.mxu0 0.0
          %639 = vmatprep.subr.mxu0 0.0
          %640 = vmatpush1.xpose.msra.mxu0 0.0
          %641 = vmatprep.subr.mxu0 0.0
          %642 = vmatpush1.xpose.msra.mxu0 0.0
          %643 = vmatprep.subr.mxu0 0.0
          %644 = vmatpush1.xpose.msra.mxu0 0.0
          %645 = vmatprep.subr.mxu0 0.0
          %646 = vmatpush1.xpose.msra.mxu0 %v613
          %647 = vmatprep.subr.mxu0 0.0
          %648 = vmatpush2.xpose.msra.mxu0 0.0
          %649 = vmatprep.subr.mxu0 0.0
          %650 = vmatpush2.xpose.msra.mxu0 0.0
          %651 = vmatprep.subr.mxu0 0.0
          %652 = vmatpush2.xpose.msra.mxu0 0.0
          %653 = vmatprep.subr.mxu0 0.0
          %654 = vmatpush2.xpose.msra.mxu0 0.0
          %655 = vmatprep.subr.mxu0 0.0
          %656 = vmatpush2.xpose.msra.mxu0 0.0
          %657 = vmatprep.subr.mxu0 0.0
          %658 = vmatpush2.xpose.msra.mxu0 0.0
          %659 = vmatprep.subr.mxu0 0.0
          %660 = vmatpush2.xpose.msra.mxu0 0.0
          %661 = vmatprep.subr.mxu0 0.0
          %662 = vmatpush2.xpose.msra.mxu0 0.0
          %663 = vmatprep.subr.mxu0 0.0
          %664 = vmatpush2.xpose.msra.mxu0 0.0
          %665 = vmatprep.subr.mxu0 0.0
          %666 = vmatpush2.xpose.msra.mxu0 0.0
          %667 = vmatprep.subr.mxu0 0.0
          %668 = vmatpush2.xpose.msra.mxu0 0.0
          %669 = vmatprep.subr.mxu0 0.0
          %670 = vmatpush2.xpose.msra.mxu0 0.0
          %671 = vmatprep.subr.mxu0 0.0
          %672 = vmatpush2.xpose.msra.mxu0 0.0
          %673 = vmatprep.subr.mxu0 0.0
          %674 = vmatpush2.xpose.msra.mxu0 0.0
          %675 = vmatprep.subr.mxu0 0.0
          %676 = vmatpush2.xpose.msra.mxu0 0.0
          %677 = vmatprep.subr.mxu0 0.0
          %678 = vmatpush2.xpose.msra.mxu0 0.0
          %679 = vmatprep.mubr.f32.mxu0 0.0
          %680 = vmatmul.mubr.f32.gmra.mxu0 %v610
          %v681 = vpop.f32.mrf.mxu0
          %v682 = vadd.f32 0.0, %v681
          %v683 = vpop.f32.mrf.mxu0
          %684 = vdwg.mxu0
          %v685 = vmul.f32 %v606, %v606
          %vm686 = vcmask 31744
          %v687 = vsel %vm686, 1.0, 0
          %v690 = vsel %vm686, %v685, 0
          %692 = vmatprep.subr.mxu0 0.0
          %693 = vmatpush1.xpose.msra.mxu0 0.0
          %694 = vmatprep.subr.mxu0 0.0
          %695 = vmatpush1.xpose.msra.mxu0 0.0
          %696 = vmatprep.subr.mxu0 0.0
          %697 = vmatpush1.xpose.msra.mxu0 0.0
          %698 = vmatprep.subr.mxu0 0.0
          %699 = vmatpush1.xpose.msra.mxu0 0.0
          %700 = vmatprep.subr.mxu0 0.0
          %701 = vmatpush1.xpose.msra.mxu0 0.0
          %702 = vmatprep.subr.mxu0 0.0
          %703 = vmatpush1.xpose.msra.mxu0 0.0
          %704 = vmatprep.subr.mxu0 0.0
          %705 = vmatpush1.xpose.msra.mxu0 0.0
          %706 = vmatprep.subr.mxu0 0.0
          %707 = vmatpush1.xpose.msra.mxu0 0.0
          %708 = vmatprep.subr.mxu0 0.0
          %709 = vmatpush1.xpose.msra.mxu0 0.0
          %710 = vmatprep.subr.mxu0 0.0
          %711 = vmatpush1.xpose.msra.mxu0 0.0
          %712 = vmatprep.subr.mxu0 0.0
          %713 = vmatpush1.xpose.msra.mxu0 0.0
          %714 = vmatprep.subr.mxu0 0.0
          %715 = vmatpush1.xpose.msra.mxu0 0.0
          %716 = vmatprep.subr.mxu0 0.0
          %717 = vmatpush1.xpose.msra.mxu0 0.0
          %718 = vmatprep.subr.mxu0 0.0
          %719 = vmatpush1.xpose.msra.mxu0 0.0
          %720 = vmatprep.subr.mxu0 0.0
          %721 = vmatpush1.xpose.msra.mxu0 0.0
          %722 = vmatprep.subr.mxu0 0.0
          %723 = vmatpush1.xpose.msra.mxu0 %v690
          %724 = vmatprep.subr.mxu0 0.0
          %725 = vmatpush2.xpose.msra.mxu0 0.0
          %726 = vmatprep.subr.mxu0 0.0
          %727 = vmatpush2.xpose.msra.mxu0 0.0
          %728 = vmatprep.subr.mxu0 0.0
          %729 = vmatpush2.xpose.msra.mxu0 0.0
          %730 = vmatprep.subr.mxu0 0.0
          %731 = vmatpush2.xpose.msra.mxu0 0.0
          %732 = vmatprep.subr.mxu0 0.0
          %733 = vmatpush2.xpose.msra.mxu0 0.0
          %734 = vmatprep.subr.mxu0 0.0
          %735 = vmatpush2.xpose.msra.mxu0 0.0
          %736 = vmatprep.subr.mxu0 0.0
          %737 = vmatpush2.xpose.msra.mxu0 0.0
          %738 = vmatprep.subr.mxu0 0.0
          %739 = vmatpush2.xpose.msra.mxu0 0.0
          %740 = vmatprep.subr.mxu0 0.0
          %741 = vmatpush2.xpose.msra.mxu0 0.0
          %742 = vmatprep.subr.mxu0 0.0
          %743 = vmatpush2.xpose.msra.mxu0 0.0
          %744 = vmatprep.subr.mxu0 0.0
          %745 = vmatpush2.xpose.msra.mxu0 0.0
          %746 = vmatprep.subr.mxu0 0.0
          %747 = vmatpush2.xpose.msra.mxu0 0.0
          %748 = vmatprep.subr.mxu0 0.0
          %749 = vmatpush2.xpose.msra.mxu0 0.0
          %750 = vmatprep.subr.mxu0 0.0
          %751 = vmatpush2.xpose.msra.mxu0 0.0
          %752 = vmatprep.subr.mxu0 0.0
          %753 = vmatpush2.xpose.msra.mxu0 0.0
          %754 = vmatprep.subr.mxu0 0.0
          %755 = vmatpush2.xpose.msra.mxu0 0.0
          %756 = vmatprep.mubr.f32.mxu0 0.0
          %757 = vmatmul.mubr.f32.gmra.mxu0 %v687
          %v758 = vpop.f32.mrf.mxu0
          %v759 = vadd.f32 0.0, %v758
          %v760 = vpop.f32.mrf.mxu0
          %761 = vdwg.mxu0
          %v762 = vsel %vm686, %v685, 0.0
          %763 = vadd.xlane.f32.xlu0 %v762
          %v764 = vpop.xlane.xlu0 %763
          %v766 = vsel %vm686, %v606, 0
          %768 = vmatprep.subr.mxu0 0.0
          %769 = vmatpush1.xpose.msra.mxu0 0.0
          %770 = vmatprep.subr.mxu0 0.0
          %771 = vmatpush1.xpose.msra.mxu0 0.0
          %772 = vmatprep.subr.mxu0 0.0
          %773 = vmatpush1.xpose.msra.mxu0 0.0
          %774 = vmatprep.subr.mxu0 0.0
          %775 = vmatpush1.xpose.msra.mxu0 0.0
          %776 = vmatprep.subr.mxu0 0.0
          %777 = vmatpush1.xpose.msra.mxu0 0.0
          %778 = vmatprep.subr.mxu0 0.0
          %779 = vmatpush1.xpose.msra.mxu0 0.0
          %780 = vmatprep.subr.mxu0 0.0
          %781 = vmatpush1.xpose.msra.mxu0 0.0
          %782 = vmatprep.subr.mxu0 0.0
          %783 = vmatpush1.xpose.msra.mxu0 0.0
          %784 = vmatprep.subr.mxu0 0.0
          %785 = vmatpush1.xpose.msra.mxu0 0.0
          %786 = vmatprep.subr.mxu0 0.0
          %787 = vmatpush1.xpose.msra.mxu0 0.0
          %788 = vmatprep.subr.mxu0 0.0
          %789 = vmatpush1.xpose.msra.mxu0 0.0
          %790 = vmatprep.subr.mxu0 0.0
          %791 = vmatpush1.xpose.msra.mxu0 0.0
          %792 = vmatprep.subr.mxu0 0.0
          %793 = vmatpush1.xpose.msra.mxu0 0.0
          %794 = vmatprep.subr.mxu0 0.0
          %795 = vmatpush1.xpose.msra.mxu0 0.0
          %796 = vmatprep.subr.mxu0 0.0
          %797 = vmatpush1.xpose.msra.mxu0 0.0
          %798 = vmatprep.subr.mxu0 0.0
          %799 = vmatpush1.xpose.msra.mxu0 %v766
          %800 = vmatprep.subr.mxu0 0.0
          %801 = vmatpush2.xpose.msra.mxu0 0.0
          %802 = vmatprep.subr.mxu0 0.0
          %803 = vmatpush2.xpose.msra.mxu0 0.0
          %804 = vmatprep.subr.mxu0 0.0
          %805 = vmatpush2.xpose.msra.mxu0 0.0
          %806 = vmatprep.subr.mxu0 0.0
          %807 = vmatpush2.xpose.msra.mxu0 0.0
          %808 = vmatprep.subr.mxu0 0.0
          %809 = vmatpush2.xpose.msra.mxu0 0.0
          %810 = vmatprep.subr.mxu0 0.0
          %811 = vmatpush2.xpose.msra.mxu0 0.0
          %812 = vmatprep.subr.mxu0 0.0
          %813 = vmatpush2.xpose.msra.mxu0 0.0
          %814 = vmatprep.subr.mxu0 0.0
          %815 = vmatpush2.xpose.msra.mxu0 0.0
          %816 = vmatprep.subr.mxu0 0.0
          %817 = vmatpush2.xpose.msra.mxu0 0.0
          %818 = vmatprep.subr.mxu0 0.0
          %819 = vmatpush2.xpose.msra.mxu0 0.0
          %820 = vmatprep.subr.mxu0 0.0
          %821 = vmatpush2.xpose.msra.mxu0 0.0
          %822 = vmatprep.subr.mxu0 0.0
          %823 = vmatpush2.xpose.msra.mxu0 0.0
          %824 = vmatprep.subr.mxu0 0.0
          %825 = vmatpush2.xpose.msra.mxu0 0.0
          %826 = vmatprep.subr.mxu0 0.0
          %827 = vmatpush2.xpose.msra.mxu0 0.0
          %828 = vmatprep.subr.mxu0 0.0
          %829 = vmatpush2.xpose.msra.mxu0 0.0
          %830 = vmatprep.subr.mxu0 0.0
          %831 = vmatpush2.xpose.msra.mxu0 0.0
          %832 = vmatprep.mubr.f32.mxu0 0.0
          %833 = vmatmul.mubr.f32.gmra.mxu0 %v766
          %v834 = vpop.f32.mrf.mxu0
          %v835 = vadd.f32 0.0, %v834
          %v836 = vpop.f32.mrf.mxu0
          %837 = vdwg.mxu0
          %v838 = vlaneseq
          %v839 = vshrl.u32 %v838, 7
          %v840 = vsub.s32 0, %v839
          %v841 = vrot.slane %v759, %v840
          %v842 = vadd.f32 %v764, %v841
          %v843 = vmul.f32 %v835, 2.0
          %v844 = vsub.f32 %v842, %v843
          %v845 = vmax.f32 %v844, 0.0
          %v846 = vadd.f32 %v845, 1e-10
          %v847 = vrsqrt.pop %v846
          %v848 = vmul.f32 %v846, %v847
          %vm849 = vcmp.eq.f32.partialorder %v846, inf
          %v850 = vsel %vm849, %v846, %v848
          %vm851 = vcmp.eq.f32.partialorder %v846, 0.0
          %v852 = vand.u32 %v846, 2147483648
          %v853 = vsel %vm851, %v852, %v850
          %v854 = vmul.f32 %v607, %v853
          %v856 = vsel %vm608, %v854, 0
          %858 = vmatprep.subr.mxu0 0.0
          %859 = vmatpush1.xpose.msra.mxu0 0.0
          %860 = vmatprep.subr.mxu0 0.0
          %861 = vmatpush1.xpose.msra.mxu0 0.0
          %862 = vmatprep.subr.mxu0 0.0
          %863 = vmatpush1.xpose.msra.mxu0 0.0
          %864 = vmatprep.subr.mxu0 0.0
          %865 = vmatpush1.xpose.msra.mxu0 0.0
          %866 = vmatprep.subr.mxu0 0.0
          %867 = vmatpush1.xpose.msra.mxu0 0.0
          %868 = vmatprep.subr.mxu0 0.0
          %869 = vmatpush1.xpose.msra.mxu0 0.0
          %870 = vmatprep.subr.mxu0 0.0
          %871 = vmatpush1.xpose.msra.mxu0 0.0
          %872 = vmatprep.subr.mxu0 0.0
          %873 = vmatpush1.xpose.msra.mxu0 0.0
          %874 = vmatprep.subr.mxu0 0.0
          %875 = vmatpush1.xpose.msra.mxu0 0.0
          %876 = vmatprep.subr.mxu0 0.0
          %877 = vmatpush1.xpose.msra.mxu0 0.0
          %878 = vmatprep.subr.mxu0 0.0
          %879 = vmatpush1.xpose.msra.mxu0 0.0
          %880 = vmatprep.subr.mxu0 0.0
          %881 = vmatpush1.xpose.msra.mxu0 0.0
          %882 = vmatprep.subr.mxu0 0.0
          %883 = vmatpush1.xpose.msra.mxu0 0.0
          %884 = vmatprep.subr.mxu0 0.0
          %885 = vmatpush1.xpose.msra.mxu0 0.0
          %886 = vmatprep.subr.mxu0 0.0
          %887 = vmatpush1.xpose.msra.mxu0 0.0
          %888 = vmatprep.subr.mxu0 0.0
          %889 = vmatpush1.xpose.msra.mxu0 %v856
          %890 = vmatprep.subr.mxu0 0.0
          %891 = vmatpush2.xpose.msra.mxu0 0.0
          %892 = vmatprep.subr.mxu0 0.0
          %893 = vmatpush2.xpose.msra.mxu0 0.0
          %894 = vmatprep.subr.mxu0 0.0
          %895 = vmatpush2.xpose.msra.mxu0 0.0
          %896 = vmatprep.subr.mxu0 0.0
          %897 = vmatpush2.xpose.msra.mxu0 0.0
          %898 = vmatprep.subr.mxu0 0.0
          %899 = vmatpush2.xpose.msra.mxu0 0.0
          %900 = vmatprep.subr.mxu0 0.0
          %901 = vmatpush2.xpose.msra.mxu0 0.0
          %902 = vmatprep.subr.mxu0 0.0
          %903 = vmatpush2.xpose.msra.mxu0 0.0
          %904 = vmatprep.subr.mxu0 0.0
          %905 = vmatpush2.xpose.msra.mxu0 0.0
          %906 = vmatprep.subr.mxu0 0.0
          %907 = vmatpush2.xpose.msra.mxu0 0.0
          %908 = vmatprep.subr.mxu0 0.0
          %909 = vmatpush2.xpose.msra.mxu0 0.0
          %910 = vmatprep.subr.mxu0 0.0
          %911 = vmatpush2.xpose.msra.mxu0 0.0
          %912 = vmatprep.subr.mxu0 0.0
          %913 = vmatpush2.xpose.msra.mxu0 0.0
          %914 = vmatprep.subr.mxu0 0.0
          %915 = vmatpush2.xpose.msra.mxu0 0.0
          %916 = vmatprep.subr.mxu0 0.0
          %917 = vmatpush2.xpose.msra.mxu0 0.0
          %918 = vmatprep.subr.mxu0 0.0
          %919 = vmatpush2.xpose.msra.mxu0 0.0
          %920 = vmatprep.subr.mxu0 0.0
          %921 = vmatpush2.xpose.msra.mxu0 0.0
          %922 = vmatprep.mubr.f32.mxu0 0.0
          %923 = vmatmul.mubr.f32.gmra.mxu0 %v610
          %v924 = vpop.f32.mrf.mxu0
          %v925 = vadd.f32 0.0, %v924
          %v926 = vpop.f32.mrf.mxu0
          %927 = vdwg.mxu0
          %928 = vmatprep.subr.mxu0 0.0
          %929 = vmatpush1.msra.mxu0 0.0
          %930 = vmatprep.subr.mxu0 0.0
          %931 = vmatpush1.msra.mxu0 0.0
          %932 = vmatprep.subr.mxu0 0.0
          %933 = vmatpush1.msra.mxu0 0.0
          %934 = vmatprep.subr.mxu0 0.0
          %935 = vmatpush1.msra.mxu0 0.0
          %936 = vmatprep.subr.mxu0 0.0
          %937 = vmatpush1.msra.mxu0 0.0
          %938 = vmatprep.subr.mxu0 0.0
          %939 = vmatpush1.msra.mxu0 0.0
          %940 = vmatprep.subr.mxu0 0.0
          %941 = vmatpush1.msra.mxu0 0.0
          %942 = vmatprep.subr.mxu0 0.0
          %943 = vmatpush1.msra.mxu0 0.0
          %944 = vmatprep.subr.mxu0 0.0
          %945 = vmatpush1.msra.mxu0 0.0
          %946 = vmatprep.subr.mxu0 0.0
          %947 = vmatpush1.msra.mxu0 0.0
          %948 = vmatprep.subr.mxu0 0.0
          %949 = vmatpush1.msra.mxu0 0.0
          %950 = vmatprep.subr.mxu0 0.0
          %951 = vmatpush1.msra.mxu0 0.0
          %952 = vmatprep.subr.mxu0 0.0
          %953 = vmatpush1.msra.mxu0 0.0
          %954 = vmatprep.subr.mxu0 0.0
          %955 = vmatpush1.msra.mxu0 0.0
          %956 = vmatprep.subr.mxu0 0.0
          %957 = vmatpush1.msra.mxu0 0.0
          %958 = vmatprep.subr.mxu0 0.0
          %959 = vmatpush1.msra.mxu0 %v606
          %960 = vmatprep.subr.mxu0 0.0
          %961 = vmatpush2.msra.mxu0 0.0
          %962 = vmatprep.subr.mxu0 0.0
          %963 = vmatpush2.msra.mxu0 0.0
          %964 = vmatprep.subr.mxu0 0.0
          %965 = vmatpush2.msra.mxu0 0.0
          %966 = vmatprep.subr.mxu0 0.0
          %967 = vmatpush2.msra.mxu0 0.0
          %968 = vmatprep.subr.mxu0 0.0
          %969 = vmatpush2.msra.mxu0 0.0
          %970 = vmatprep.subr.mxu0 0.0
          %971 = vmatpush2.msra.mxu0 0.0
          %972 = vmatprep.subr.mxu0 0.0
          %973 = vmatpush2.msra.mxu0 0.0
          %974 = vmatprep.subr.mxu0 0.0
          %975 = vmatpush2.msra.mxu0 0.0
          %976 = vmatprep.subr.mxu0 0.0
          %977 = vmatpush2.msra.mxu0 0.0
          %978 = vmatprep.subr.mxu0 0.0
          %979 = vmatpush2.msra.mxu0 0.0
          %980 = vmatprep.subr.mxu0 0.0
          %981 = vmatpush2.msra.mxu0 0.0
          %982 = vmatprep.subr.mxu0 0.0
          %983 = vmatpush2.msra.mxu0 0.0
          %984 = vmatprep.subr.mxu0 0.0
          %985 = vmatpush2.msra.mxu0 0.0
          %986 = vmatprep.subr.mxu0 0.0
          %987 = vmatpush2.msra.mxu0 0.0
          %988 = vmatprep.subr.mxu0 0.0
          %989 = vmatpush2.msra.mxu0 0.0
          %990 = vmatprep.subr.mxu0 0.0
          %991 = vmatpush2.msra.mxu0 0.0
          %992 = vmatprep.mubr.f32.mxu0 0.0
          %993 = vmatmul.mubr.f32.gmra.mxu0 %v613
          %v994 = vpop.f32.mrf.mxu0
          %v995 = vadd.f32 0.0, %v994
          %v996 = vpop.f32.mrf.mxu0
          %997 = vdwg.mxu0
          %v998 = vld [vmem:[%s3] sm:$0xff]
          %v999 = vld [vmem:[%s3 + $0x8] sm:$0xff]
          %v1000 = vld [vmem:[%s3 + $0x10] sm:$0xff]
          %v1001 = vld [vmem:[%s3 + $0x18] sm:$0xff]
          %v1002 = vld [vmem:[%s3 + $0x20] sm:$0xff]
          %v1003 = vld [vmem:[%s3 + $0x28] sm:$0xff]
          %v1004 = vld [vmem:[%s3 + $0x30] sm:$0x3]
          %v1005 = vld [vmem:[%s4] sm:$0xff]
          %v1006 = vld [vmem:[%s4 + $0x8] sm:$0xff]
          %v1007 = vld [vmem:[%s4 + $0x10] sm:$0xff]
          %v1008 = vld [vmem:[%s4 + $0x18] sm:$0xff]
          %v1009 = vld [vmem:[%s4 + $0x20] sm:$0xff]
          %v1010 = vld [vmem:[%s4 + $0x28] sm:$0xff]
          %v1011 = vld [vmem:[%s4 + $0x30] sm:$0x3]
          %v1013 = vsel %vm686, %v1005, 0
          %v1016 = vsel %vm686, %v1006, 0
          %v1019 = vsel %vm686, %v1007, 0
          %v1022 = vsel %vm686, %v1008, 0
          %v1025 = vsel %vm686, %v1009, 0
          %v1028 = vsel %vm686, %v1010, 0
          %v1031 = vsel %vm686, %v1011, 0
          %v1034 = vsel %vm686, %v995, 0
          %1036 = vmatprep.subr.mxu0 0.0
          %1037 = vmatpush1.xpose.msra.mxu0 0.0
          %1038 = vmatprep.subr.mxu0 0.0
          %1039 = vmatpush1.xpose.msra.mxu0 0.0
          %1040 = vmatprep.subr.mxu0 0.0
          %1041 = vmatpush1.xpose.msra.mxu0 0.0
          %1042 = vmatprep.subr.mxu0 0.0
          %1043 = vmatpush1.xpose.msra.mxu0 0.0
          %1044 = vmatprep.subr.mxu0 0.0
          %1045 = vmatpush1.xpose.msra.mxu0 0.0
          %1046 = vmatprep.subr.mxu0 0.0
          %1047 = vmatpush1.xpose.msra.mxu0 0.0
          %1048 = vmatprep.subr.mxu0 0.0
          %1049 = vmatpush1.xpose.msra.mxu0 0.0
          %1050 = vmatprep.subr.mxu0 0.0
          %1051 = vmatpush1.xpose.msra.mxu0 0.0
          %1052 = vmatprep.subr.mxu0 0.0
          %1053 = vmatpush1.xpose.msra.mxu0 0.0
          %1054 = vmatprep.subr.mxu0 0.0
          %1055 = vmatpush1.xpose.msra.mxu0 0.0
          %1056 = vmatprep.subr.mxu0 0.0
          %1057 = vmatpush1.xpose.msra.mxu0 0.0
          %1058 = vmatprep.subr.mxu0 0.0
          %1059 = vmatpush1.xpose.msra.mxu0 0.0
          %1060 = vmatprep.subr.mxu0 0.0
          %1061 = vmatpush1.xpose.msra.mxu0 0.0
          %1062 = vmatprep.subr.mxu0 0.0
          %1063 = vmatpush1.xpose.msra.mxu0 0.0
          %1064 = vmatprep.subr.mxu0 0.0
          %1065 = vmatpush1.xpose.msra.mxu0 0.0
          %1066 = vmatprep.subr.mxu0 0.0
          %1067 = vmatpush1.xpose.msra.mxu0 %v1034
          %1068 = vmatprep.subr.mxu0 0.0
          %1069 = vmatpush2.xpose.msra.mxu0 0.0
          %1070 = vmatprep.subr.mxu0 0.0
          %1071 = vmatpush2.xpose.msra.mxu0 0.0
          %1072 = vmatprep.subr.mxu0 0.0
          %1073 = vmatpush2.xpose.msra.mxu0 0.0
          %1074 = vmatprep.subr.mxu0 0.0
          %1075 = vmatpush2.xpose.msra.mxu0 0.0
          %1076 = vmatprep.subr.mxu0 0.0
          %1077 = vmatpush2.xpose.msra.mxu0 0.0
          %1078 = vmatprep.subr.mxu0 0.0
          %1079 = vmatpush2.xpose.msra.mxu0 0.0
          %1080 = vmatprep.subr.mxu0 0.0
          %1081 = vmatpush2.xpose.msra.mxu0 0.0
          %1082 = vmatprep.subr.mxu0 0.0
          %1083 = vmatpush2.xpose.msra.mxu0 0.0
          %1084 = vmatprep.subr.mxu0 0.0
          %1085 = vmatpush2.xpose.msra.mxu0 0.0
          %1086 = vmatprep.subr.mxu0 0.0
          %1087 = vmatpush2.xpose.msra.mxu0 0.0
          %1088 = vmatprep.subr.mxu0 0.0
          %1089 = vmatpush2.xpose.msra.mxu0 0.0
          %1090 = vmatprep.subr.mxu0 0.0
          %1091 = vmatpush2.xpose.msra.mxu0 0.0
          %1092 = vmatprep.subr.mxu0 0.0
          %1093 = vmatpush2.xpose.msra.mxu0 0.0
          %1094 = vmatprep.subr.mxu0 0.0
          %1095 = vmatpush2.xpose.msra.mxu0 0.0
          %1096 = vmatprep.subr.mxu0 0.0
          %1097 = vmatpush2.xpose.msra.mxu0 0.0
          %1098 = vmatprep.subr.mxu0 0.0
          %1099 = vmatpush2.xpose.msra.mxu0 0.0
          %1100 = vmatprep.mubr.f32.mxu0 0.0
          %1101 = vmatmul.mubr.f32.gmra.mxu0 %v1013
          %v1102 = vpop.f32.mrf.mxu0
          %v1103 = vadd.f32 0.0, %v1102
          %v1104 = vpop.f32.mrf.mxu0
          %1105 = vmatprep.mubr.f32.mxu0 0.0
          %1106 = vmatmul.mubr.f32.gmra.mxu0 %v1016
          %v1107 = vpop.f32.mrf.mxu0
          %v1108 = vadd.f32 0.0, %v1107
          %v1109 = vpop.f32.mrf.mxu0
          %1110 = vmatprep.mubr.f32.mxu0 0.0
          %1111 = vmatmul.mubr.f32.gmra.mxu0 %v1019
          %v1112 = vpop.f32.mrf.mxu0
          %v1113 = vadd.f32 0.0, %v1112
          %v1114 = vpop.f32.mrf.mxu0
          %1115 = vmatprep.mubr.f32.mxu0 0.0
          %1116 = vmatmul.mubr.f32.gmra.mxu0 %v1022
          %v1117 = vpop.f32.mrf.mxu0
          %v1118 = vadd.f32 0.0, %v1117
          %v1119 = vpop.f32.mrf.mxu0
          %1120 = vmatprep.mubr.f32.mxu0 0.0
          %1121 = vmatmul.mubr.f32.gmra.mxu0 %v1025
          %v1122 = vpop.f32.mrf.mxu0
          %v1123 = vadd.f32 0.0, %v1122
          %v1124 = vpop.f32.mrf.mxu0
          %1125 = vmatprep.mubr.f32.mxu0 0.0
          %1126 = vmatmul.mubr.f32.gmra.mxu0 %v1028
          %v1127 = vpop.f32.mrf.mxu0
          %v1128 = vadd.f32 0.0, %v1127
          %v1129 = vpop.f32.mrf.mxu0
          %1130 = vmatprep.mubr.f32.mxu0 0.0
          %1131 = vmatmul.mubr.f32.gmra.mxu0 %v1031
          %v1132 = vpop.f32.mrf.mxu0
          %v1133 = vadd.f32 0.0, %v1132
          %v1134 = vpop.f32.mrf.mxu0
          %1135 = vdwg.mxu0
          %v1136 = vld [vmem:[%s6] sm:$0xff]
          %v1137 = vld [vmem:[%s6 + $0x8] sm:$0xff]
          %v1138 = vld [vmem:[%s6 + $0x10] sm:$0xff]
          %v1139 = vld [vmem:[%s6 + $0x18] sm:$0xff]
          %v1140 = vld [vmem:[%s6 + $0x20] sm:$0xff]
          %v1141 = vld [vmem:[%s6 + $0x28] sm:$0xff]
          %v1142 = vld [vmem:[%s6 + $0x30] sm:$0x3]
          %1144 = vset.pattern.permute.xlu0 0
          %1145 = vperm.xlu0 %1144, %v1136
          %v1146 = vpop.permute.xlu0 %1145
          %1149 = vset.pattern.permute.xlu0 0
          %1150 = vperm.xlu0 %1149, %v1137
          %v1151 = vpop.permute.xlu0 %1150
          %1154 = vset.pattern.permute.xlu0 0
          %1155 = vperm.xlu0 %1154, %v1138
          %v1156 = vpop.permute.xlu0 %1155
          %1159 = vset.pattern.permute.xlu0 0
          %1160 = vperm.xlu0 %1159, %v1139
          %v1161 = vpop.permute.xlu0 %1160
          %1164 = vset.pattern.permute.xlu0 0
          %1165 = vperm.xlu0 %1164, %v1140
          %v1166 = vpop.permute.xlu0 %1165
          %1169 = vset.pattern.permute.xlu0 0
          %1170 = vperm.xlu0 %1169, %v1141
          %v1171 = vpop.permute.xlu0 %1170
          %1174 = vset.pattern.permute.xlu0 0
          %1175 = vperm.xlu0 %1174, %v1142
          %v1176 = vpop.permute.xlu0 %1175
          %v1179 = vsel %vm686, %v998, 0
          %v1182 = vsel %vm686, %v999, 0
          %v1185 = vsel %vm686, %v1000, 0
          %v1188 = vsel %vm686, %v1001, 0
          %v1191 = vsel %vm686, %v1002, 0
          %v1194 = vsel %vm686, %v1003, 0
          %v1197 = vsel %vm686, %v1004, 0
          %1199 = vmatprep.subr.mxu0 0.0
          %1200 = vmatpush1.xpose.msra.mxu0 0.0
          %1201 = vmatprep.subr.mxu0 0.0
          %1202 = vmatpush1.xpose.msra.mxu0 0.0
          %1203 = vmatprep.subr.mxu0 0.0
          %1204 = vmatpush1.xpose.msra.mxu0 0.0
          %1205 = vmatprep.subr.mxu0 0.0
          %1206 = vmatpush1.xpose.msra.mxu0 0.0
          %1207 = vmatprep.subr.mxu0 0.0
          %1208 = vmatpush1.xpose.msra.mxu0 0.0
          %1209 = vmatprep.subr.mxu0 0.0
          %1210 = vmatpush1.xpose.msra.mxu0 0.0
          %1211 = vmatprep.subr.mxu0 0.0
          %1212 = vmatpush1.xpose.msra.mxu0 0.0
          %1213 = vmatprep.subr.mxu0 0.0
          %1214 = vmatpush1.xpose.msra.mxu0 0.0
          %1215 = vmatprep.subr.mxu0 0.0
          %1216 = vmatpush1.xpose.msra.mxu0 0.0
          %1217 = vmatprep.subr.mxu0 0.0
          %1218 = vmatpush1.xpose.msra.mxu0 0.0
          %1219 = vmatprep.subr.mxu0 0.0
          %1220 = vmatpush1.xpose.msra.mxu0 0.0
          %1221 = vmatprep.subr.mxu0 0.0
          %1222 = vmatpush1.xpose.msra.mxu0 0.0
          %1223 = vmatprep.subr.mxu0 0.0
          %1224 = vmatpush1.xpose.msra.mxu0 0.0
          %1225 = vmatprep.subr.mxu0 0.0
          %1226 = vmatpush1.xpose.msra.mxu0 0.0
          %1227 = vmatprep.subr.mxu0 0.0
          %1228 = vmatpush1.xpose.msra.mxu0 0.0
          %1229 = vmatprep.subr.mxu0 0.0
          %1230 = vmatpush1.xpose.msra.mxu0 %v766
          %1231 = vmatprep.subr.mxu0 0.0
          %1232 = vmatpush2.xpose.msra.mxu0 0.0
          %1233 = vmatprep.subr.mxu0 0.0
          %1234 = vmatpush2.xpose.msra.mxu0 0.0
          %1235 = vmatprep.subr.mxu0 0.0
          %1236 = vmatpush2.xpose.msra.mxu0 0.0
          %1237 = vmatprep.subr.mxu0 0.0
          %1238 = vmatpush2.xpose.msra.mxu0 0.0
          %1239 = vmatprep.subr.mxu0 0.0
          %1240 = vmatpush2.xpose.msra.mxu0 0.0
          %1241 = vmatprep.subr.mxu0 0.0
          %1242 = vmatpush2.xpose.msra.mxu0 0.0
          %1243 = vmatprep.subr.mxu0 0.0
          %1244 = vmatpush2.xpose.msra.mxu0 0.0
          %1245 = vmatprep.subr.mxu0 0.0
          %1246 = vmatpush2.xpose.msra.mxu0 0.0
          %1247 = vmatprep.subr.mxu0 0.0
          %1248 = vmatpush2.xpose.msra.mxu0 0.0
          %1249 = vmatprep.subr.mxu0 0.0
          %1250 = vmatpush2.xpose.msra.mxu0 0.0
          %1251 = vmatprep.subr.mxu0 0.0
          %1252 = vmatpush2.xpose.msra.mxu0 0.0
          %1253 = vmatprep.subr.mxu0 0.0
          %1254 = vmatpush2.xpose.msra.mxu0 0.0
          %1255 = vmatprep.subr.mxu0 0.0
          %1256 = vmatpush2.xpose.msra.mxu0 0.0
          %1257 = vmatprep.subr.mxu0 0.0
          %1258 = vmatpush2.xpose.msra.mxu0 0.0
          %1259 = vmatprep.subr.mxu0 0.0
          %1260 = vmatpush2.xpose.msra.mxu0 0.0
          %1261 = vmatprep.subr.mxu0 0.0
          %1262 = vmatpush2.xpose.msra.mxu0 0.0
          %1263 = vmatprep.mubr.f32.mxu0 0.0
          %1264 = vmatmul.mubr.f32.gmra.mxu0 %v1179
          %v1265 = vpop.f32.mrf.mxu0
          %v1266 = vadd.f32 %v1146, %v1265
          %v1267 = vpop.f32.mrf.mxu0
          %1268 = vmatprep.mubr.f32.mxu0 0.0
          %1269 = vmatmul.mubr.f32.gmra.mxu0 %v1182
          %v1270 = vpop.f32.mrf.mxu0
          %v1271 = vadd.f32 %v1151, %v1270
          %v1272 = vpop.f32.mrf.mxu0
          %1273 = vmatprep.mubr.f32.mxu0 0.0
          %1274 = vmatmul.mubr.f32.gmra.mxu0 %v1185
          %v1275 = vpop.f32.mrf.mxu0
          %v1276 = vadd.f32 %v1156, %v1275
          %v1277 = vpop.f32.mrf.mxu0
          %1278 = vmatprep.mubr.f32.mxu0 0.0
          %1279 = vmatmul.mubr.f32.gmra.mxu0 %v1188
          %v1280 = vpop.f32.mrf.mxu0
          %v1281 = vadd.f32 %v1161, %v1280
          %v1282 = vpop.f32.mrf.mxu0
          %1283 = vmatprep.mubr.f32.mxu0 0.0
          %1284 = vmatmul.mubr.f32.gmra.mxu0 %v1191
          %v1285 = vpop.f32.mrf.mxu0
          %v1286 = vadd.f32 %v1166, %v1285
          %v1287 = vpop.f32.mrf.mxu0
          %1288 = vmatprep.mubr.f32.mxu0 0.0
          %1289 = vmatmul.mubr.f32.gmra.mxu0 %v1194
          %v1290 = vpop.f32.mrf.mxu0
          %v1291 = vadd.f32 %v1171, %v1290
          %v1292 = vpop.f32.mrf.mxu0
          %1293 = vmatprep.mubr.f32.mxu0 0.0
          %1294 = vmatmul.mubr.f32.gmra.mxu0 %v1197
          %v1295 = vpop.f32.mrf.mxu0
          %v1296 = vadd.f32 %v1176, %v1295
          %v1297 = vpop.f32.mrf.mxu0
          %1298 = vdwg.mxu0
          %v1299 = vlaneseq
          %v1300 = vshrl.u32 %v1299, 7
          %v1301 = vsub.s32 0, %v1300
          %v1302 = vrot.slane %v682, %v1301
          %v1303 = vmul.f32 %v1266, %v1302
          %v1304 = vmul.f32 %v1271, %v1302
          %v1305 = vmul.f32 %v1276, %v1302
          %v1306 = vmul.f32 %v1281, %v1302
          %v1307 = vmul.f32 %v1286, %v1302
          %v1308 = vmul.f32 %v1291, %v1302
          %v1309 = vmul.f32 %v1296, %v1302
          %v1310 = vadd.f32 %v1303, %v1103
          %v1311 = vadd.f32 %v1304, %v1108
          %v1312 = vadd.f32 %v1305, %v1113
          %v1313 = vadd.f32 %v1306, %v1118
          %v1314 = vadd.f32 %v1307, %v1123
          %v1315 = vadd.f32 %v1308, %v1128
          %v1316 = vadd.f32 %v1309, %v1133
          %v1317 = vld [vmem:[%s5] sm:$0xff]
          %v1318 = vld [vmem:[%s5 + $0x8] sm:$0xff]
          %v1319 = vld [vmem:[%s5 + $0x10] sm:$0xff]
          %v1320 = vld [vmem:[%s5 + $0x18] sm:$0xff]
          %v1321 = vld [vmem:[%s5 + $0x20] sm:$0xff]
          %v1322 = vld [vmem:[%s5 + $0x28] sm:$0xff]
          %v1323 = vld [vmem:[%s5 + $0x30] sm:$0x3]
          %1325 = vset.pattern.permute.xlu0 0
          %1326 = vperm.xlu0 %1325, %v1317
          %v1327 = vpop.permute.xlu0 %1326
          %1330 = vset.pattern.permute.xlu0 0
          %1331 = vperm.xlu0 %1330, %v1318
          %v1332 = vpop.permute.xlu0 %1331
          %1335 = vset.pattern.permute.xlu0 0
          %1336 = vperm.xlu0 %1335, %v1319
          %v1337 = vpop.permute.xlu0 %1336
          %1340 = vset.pattern.permute.xlu0 0
          %1341 = vperm.xlu0 %1340, %v1320
          %v1342 = vpop.permute.xlu0 %1341
          %1345 = vset.pattern.permute.xlu0 0
          %1346 = vperm.xlu0 %1345, %v1321
          %v1347 = vpop.permute.xlu0 %1346
          %1350 = vset.pattern.permute.xlu0 0
          %1351 = vperm.xlu0 %1350, %v1322
          %v1352 = vpop.permute.xlu0 %1351
          %1355 = vset.pattern.permute.xlu0 0
          %1356 = vperm.xlu0 %1355, %v1323
          %v1357 = vpop.permute.xlu0 %1356
          %v1359 = vlaneseq
          %v1360 = vshrl.u32 %v1359, 7
          %v1361 = vsub.s32 0, %v1360
          %v1362 = vrot.slane %v925, %v1361
          %v1363 = vmul.f32 %v1327, %v1362
          %v1364 = vmul.f32 %v1332, %v1362
          %v1365 = vmul.f32 %v1337, %v1362
          %v1366 = vmul.f32 %v1342, %v1362
          %v1367 = vmul.f32 %v1347, %v1362
          %v1368 = vmul.f32 %v1352, %v1362
          %v1369 = vmul.f32 %v1357, %v1362
          %v1370 = vadd.f32 %v1310, %v1363
          %v1371 = vadd.f32 %v1311, %v1364
          %v1372 = vadd.f32 %v1312, %v1365
          %v1373 = vadd.f32 %v1313, %v1366
          %v1374 = vadd.f32 %v1314, %v1367
          %v1375 = vadd.f32 %v1315, %v1368
          %v1376 = vadd.f32 %v1316, %v1369
          %1377 = vst.msk [vmem:[#allocation4] sm:$0xff] %vm608, %v1370
          %1378 = vst.msk [vmem:[#allocation4 + $0x8] sm:$0xff] %vm608, %v1371
          %1379 = vst.msk [vmem:[#allocation4 + $0x10] sm:$0xff] %vm608, %v1372
          %1380 = vst.msk [vmem:[#allocation4 + $0x18] sm:$0xff] %vm608, %v1373
          %1381 = vst.msk [vmem:[#allocation4 + $0x20] sm:$0xff] %vm608, %v1374
          %1382 = vst.msk [vmem:[#allocation4 + $0x28] sm:$0xff] %vm608, %v1375
          %vm1383 = vcmask 58368
          %1384 = vst.msk [vmem:[#allocation4 + $0x30] sm:$0x3] %vm1383, %v1376
          %vm1385 = vcmask 57344
          %1386 = vst.msk [vmem:[#allocation2] sm:$0x1] %vm1385, %v682
          %1387 = vst.msk [vmem:[#allocation3] sm:$0x1] %vm1385, %v759
          %v1388 = vld [vmem:[%s2] sm:$0xf]
          %vm1389 = vcmask 1043456
          %v1391 = vsel %vm1389, %v1388, 0
          %1393 = vmatprep.subr.mxu0 0.0
          %1394 = vmatpush1.msra.mxu0 0.0
          %1395 = vmatprep.subr.mxu0 0.0
          %1396 = vmatpush1.msra.mxu0 0.0
          %1397 = vmatprep.subr.mxu0 0.0
          %1398 = vmatpush1.msra.mxu0 0.0
          %1399 = vmatprep.subr.mxu0 0.0
          %1400 = vmatpush1.msra.mxu0 0.0
          %1401 = vmatprep.subr.mxu0 0.0
          %1402 = vmatpush1.msra.mxu0 0.0
          %1403 = vmatprep.subr.mxu0 0.0
          %1404 = vmatpush1.msra.mxu0 0.0
          %1405 = vmatprep.subr.mxu0 0.0
          %1406 = vmatpush1.msra.mxu0 0.0
          %1407 = vmatprep.subr.mxu0 0.0
          %1408 = vmatpush1.msra.mxu0 0.0
          %1409 = vmatprep.subr.mxu0 0.0
          %1410 = vmatpush1.msra.mxu0 0.0
          %1411 = vmatprep.subr.mxu0 0.0
          %1412 = vmatpush1.msra.mxu0 0.0
          %1413 = vmatprep.subr.mxu0 0.0
          %1414 = vmatpush1.msra.mxu0 0.0
          %1415 = vmatprep.subr.mxu0 0.0
          %1416 = vmatpush1.msra.mxu0 0.0
          %1417 = vmatprep.subr.mxu0 0.0
          %1418 = vmatpush1.msra.mxu0 0.0
          %1419 = vmatprep.subr.mxu0 0.0
          %1420 = vmatpush1.msra.mxu0 0.0
          %1421 = vmatprep.subr.mxu0 0.0
          %1422 = vmatpush1.msra.mxu0 0.0
          %1423 = vmatprep.subr.mxu0 0.0
          %1424 = vmatpush1.msra.mxu0 %v1391
          %1425 = vmatprep.subr.mxu0 0.0
          %1426 = vmatpush2.msra.mxu0 0.0
          %1427 = vmatprep.subr.mxu0 0.0
          %1428 = vmatpush2.msra.mxu0 0.0
          %1429 = vmatprep.subr.mxu0 0.0
          %1430 = vmatpush2.msra.mxu0 0.0
          %1431 = vmatprep.subr.mxu0 0.0
          %1432 = vmatpush2.msra.mxu0 0.0
          %1433 = vmatprep.subr.mxu0 0.0
          %1434 = vmatpush2.msra.mxu0 0.0
          %1435 = vmatprep.subr.mxu0 0.0
          %1436 = vmatpush2.msra.mxu0 0.0
          %1437 = vmatprep.subr.mxu0 0.0
          %1438 = vmatpush2.msra.mxu0 0.0
          %1439 = vmatprep.subr.mxu0 0.0
          %1440 = vmatpush2.msra.mxu0 0.0
          %1441 = vmatprep.subr.mxu0 0.0
          %1442 = vmatpush2.msra.mxu0 0.0
          %1443 = vmatprep.subr.mxu0 0.0
          %1444 = vmatpush2.msra.mxu0 0.0
          %1445 = vmatprep.subr.mxu0 0.0
          %1446 = vmatpush2.msra.mxu0 0.0
          %1447 = vmatprep.subr.mxu0 0.0
          %1448 = vmatpush2.msra.mxu0 0.0
          %1449 = vmatprep.subr.mxu0 0.0
          %1450 = vmatpush2.msra.mxu0 0.0
          %1451 = vmatprep.subr.mxu0 0.0
          %1452 = vmatpush2.msra.mxu0 0.0
          %1453 = vmatprep.subr.mxu0 0.0
          %1454 = vmatpush2.msra.mxu0 0.0
          %1455 = vmatprep.subr.mxu0 0.0
          %1456 = vmatpush2.msra.mxu0 0.0
          %1457 = vmatprep.mubr.f32.mxu0 0.0
          %1458 = vmatmul.mubr.f32.gmra.mxu0 %v766
          %v1459 = vpop.f32.mrf.mxu0
          %v1460 = vadd.f32 0.0, %v1459
          %v1461 = vpop.f32.mrf.mxu0
          %1462 = vdwg.mxu0
          %vm1463 = vcmask 408576
          %1464 = vst.msk [vmem:[#allocation5] sm:$0xff] %vm1463, %v1460
          %v1465 = vld [vmem:[%s9] sm:$0xf]
          %v1467 = vsel %vm1389, %v1465, 0
          %1469 = vmatprep.subr.mxu0 0.0
          %1470 = vmatpush1.msra.mxu0 0.0
          %1471 = vmatprep.subr.mxu0 0.0
          %1472 = vmatpush1.msra.mxu0 0.0
          %1473 = vmatprep.subr.mxu0 0.0
          %1474 = vmatpush1.msra.mxu0 0.0
          %1475 = vmatprep.subr.mxu0 0.0
          %1476 = vmatpush1.msra.mxu0 0.0
          %1477 = vmatprep.subr.mxu0 0.0
          %1478 = vmatpush1.msra.mxu0 0.0
          %1479 = vmatprep.subr.mxu0 0.0
          %1480 = vmatpush1.msra.mxu0 0.0
          %1481 = vmatprep.subr.mxu0 0.0
          %1482 = vmatpush1.msra.mxu0 0.0
          %1483 = vmatprep.subr.mxu0 0.0
          %1484 = vmatpush1.msra.mxu0 0.0
          %1485 = vmatprep.subr.mxu0 0.0
          %1486 = vmatpush1.msra.mxu0 0.0
          %1487 = vmatprep.subr.mxu0 0.0
          %1488 = vmatpush1.msra.mxu0 0.0
          %1489 = vmatprep.subr.mxu0 0.0
          %1490 = vmatpush1.msra.mxu0 0.0
          %1491 = vmatprep.subr.mxu0 0.0
          %1492 = vmatpush1.msra.mxu0 0.0
          %1493 = vmatprep.subr.mxu0 0.0
          %1494 = vmatpush1.msra.mxu0 0.0
          %1495 = vmatprep.subr.mxu0 0.0
          %1496 = vmatpush1.msra.mxu0 0.0
          %1497 = vmatprep.subr.mxu0 0.0
          %1498 = vmatpush1.msra.mxu0 0.0
          %1499 = vmatprep.subr.mxu0 0.0
          %1500 = vmatpush1.msra.mxu0 %v1467
          %1501 = vmatprep.subr.mxu0 0.0
          %1502 = vmatpush2.msra.mxu0 0.0
          %1503 = vmatprep.subr.mxu0 0.0
          %1504 = vmatpush2.msra.mxu0 0.0
          %1505 = vmatprep.subr.mxu0 0.0
          %1506 = vmatpush2.msra.mxu0 0.0
          %1507 = vmatprep.subr.mxu0 0.0
          %1508 = vmatpush2.msra.mxu0 0.0
          %1509 = vmatprep.subr.mxu0 0.0
          %1510 = vmatpush2.msra.mxu0 0.0
          %1511 = vmatprep.subr.mxu0 0.0
          %1512 = vmatpush2.msra.mxu0 0.0
          %1513 = vmatprep.subr.mxu0 0.0
          %1514 = vmatpush2.msra.mxu0 0.0
          %1515 = vmatprep.subr.mxu0 0.0
          %1516 = vmatpush2.msra.mxu0 0.0
          %1517 = vmatprep.subr.mxu0 0.0
          %1518 = vmatpush2.msra.mxu0 0.0
          %1519 = vmatprep.subr.mxu0 0.0
          %1520 = vmatpush2.msra.mxu0 0.0
          %1521 = vmatprep.subr.mxu0 0.0
          %1522 = vmatpush2.msra.mxu0 0.0
          %1523 = vmatprep.subr.mxu0 0.0
          %1524 = vmatpush2.msra.mxu0 0.0
          %1525 = vmatprep.subr.mxu0 0.0
          %1526 = vmatpush2.msra.mxu0 0.0
          %1527 = vmatprep.subr.mxu0 0.0
          %1528 = vmatpush2.msra.mxu0 0.0
          %1529 = vmatprep.subr.mxu0 0.0
          %1530 = vmatpush2.msra.mxu0 0.0
          %1531 = vmatprep.subr.mxu0 0.0
          %1532 = vmatpush2.msra.mxu0 0.0
          %1533 = vmatprep.mubr.f32.mxu0 0.0
          %1534 = vmatmul.mubr.f32.gmra.mxu0 %v766
          %v1535 = vpop.f32.mrf.mxu0
          %v1536 = vadd.f32 0.0, %v1535
          %v1537 = vpop.f32.mrf.mxu0
          %1538 = vdwg.mxu0
          %1539 = vst.msk [vmem:[#allocation6] sm:$0xff] %vm1463, %v1536
          %v1540 = vld [vmem:[%s14] sm:$0xf]
          %v1542 = vsel %vm1389, %v1540, 0
          %1544 = vmatprep.subr.mxu0 0.0
          %1545 = vmatpush1.msra.mxu0 0.0
          %1546 = vmatprep.subr.mxu0 0.0
          %1547 = vmatpush1.msra.mxu0 0.0
          %1548 = vmatprep.subr.mxu0 0.0
          %1549 = vmatpush1.msra.mxu0 0.0
          %1550 = vmatprep.subr.mxu0 0.0
          %1551 = vmatpush1.msra.mxu0 0.0
          %1552 = vmatprep.subr.mxu0 0.0
          %1553 = vmatpush1.msra.mxu0 0.0
          %1554 = vmatprep.subr.mxu0 0.0
          %1555 = vmatpush1.msra.mxu0 0.0
          %1556 = vmatprep.subr.mxu0 0.0
          %1557 = vmatpush1.msra.mxu0 0.0
          %1558 = vmatprep.subr.mxu0 0.0
          %1559 = vmatpush1.msra.mxu0 0.0
          %1560 = vmatprep.subr.mxu0 0.0
          %1561 = vmatpush1.msra.mxu0 0.0
          %1562 = vmatprep.subr.mxu0 0.0
          %1563 = vmatpush1.msra.mxu0 0.0
          %1564 = vmatprep.subr.mxu0 0.0
          %1565 = vmatpush1.msra.mxu0 0.0
          %1566 = vmatprep.subr.mxu0 0.0
          %1567 = vmatpush1.msra.mxu0 0.0
          %1568 = vmatprep.subr.mxu0 0.0
          %1569 = vmatpush1.msra.mxu0 0.0
          %1570 = vmatprep.subr.mxu0 0.0
          %1571 = vmatpush1.msra.mxu0 0.0
          %1572 = vmatprep.subr.mxu0 0.0
          %1573 = vmatpush1.msra.mxu0 0.0
          %1574 = vmatprep.subr.mxu0 0.0
          %1575 = vmatpush1.msra.mxu0 %v1542
          %1576 = vmatprep.subr.mxu0 0.0
          %1577 = vmatpush2.msra.mxu0 0.0
          %1578 = vmatprep.subr.mxu0 0.0
          %1579 = vmatpush2.msra.mxu0 0.0
          %1580 = vmatprep.subr.mxu0 0.0
          %1581 = vmatpush2.msra.mxu0 0.0
          %1582 = vmatprep.subr.mxu0 0.0
          %1583 = vmatpush2.msra.mxu0 0.0
          %1584 = vmatprep.subr.mxu0 0.0
          %1585 = vmatpush2.msra.mxu0 0.0
          %1586 = vmatprep.subr.mxu0 0.0
          %1587 = vmatpush2.msra.mxu0 0.0
          %1588 = vmatprep.subr.mxu0 0.0
          %1589 = vmatpush2.msra.mxu0 0.0
          %1590 = vmatprep.subr.mxu0 0.0
          %1591 = vmatpush2.msra.mxu0 0.0
          %1592 = vmatprep.subr.mxu0 0.0
          %1593 = vmatpush2.msra.mxu0 0.0
          %1594 = vmatprep.subr.mxu0 0.0
          %1595 = vmatpush2.msra.mxu0 0.0
          %1596 = vmatprep.subr.mxu0 0.0
          %1597 = vmatpush2.msra.mxu0 0.0
          %1598 = vmatprep.subr.mxu0 0.0
          %1599 = vmatpush2.msra.mxu0 0.0
          %1600 = vmatprep.subr.mxu0 0.0
          %1601 = vmatpush2.msra.mxu0 0.0
          %1602 = vmatprep.subr.mxu0 0.0
          %1603 = vmatpush2.msra.mxu0 0.0
          %1604 = vmatprep.subr.mxu0 0.0
          %1605 = vmatpush2.msra.mxu0 0.0
          %1606 = vmatprep.subr.mxu0 0.0
          %1607 = vmatpush2.msra.mxu0 0.0
          %1608 = vmatprep.mubr.f32.mxu0 0.0
          %1609 = vmatmul.mubr.f32.gmra.mxu0 %v766
          %v1610 = vpop.f32.mrf.mxu0
          %v1611 = vadd.f32 0.0, %v1610
          %v1612 = vpop.f32.mrf.mxu0
          %1613 = vdwg.mxu0
          %1614 = vst [vmem:[#allocation7] sm:$0xff] %v1611
          %v1615 = vld [vmem:[%s10] sm:$0xf]
          %v1617 = vsel %vm1389, %v1615, 0
          %1619 = vmatprep.subr.mxu0 0.0
          %1620 = vmatpush1.msra.mxu0 0.0
          %1621 = vmatprep.subr.mxu0 0.0
          %1622 = vmatpush1.msra.mxu0 0.0
          %1623 = vmatprep.subr.mxu0 0.0
          %1624 = vmatpush1.msra.mxu0 0.0
          %1625 = vmatprep.subr.mxu0 0.0
          %1626 = vmatpush1.msra.mxu0 0.0
          %1627 = vmatprep.subr.mxu0 0.0
          %1628 = vmatpush1.msra.mxu0 0.0
          %1629 = vmatprep.subr.mxu0 0.0
          %1630 = vmatpush1.msra.mxu0 0.0
          %1631 = vmatprep.subr.mxu0 0.0
          %1632 = vmatpush1.msra.mxu0 0.0
          %1633 = vmatprep.subr.mxu0 0.0
          %1634 = vmatpush1.msra.mxu0 0.0
          %1635 = vmatprep.subr.mxu0 0.0
          %1636 = vmatpush1.msra.mxu0 0.0
          %1637 = vmatprep.subr.mxu0 0.0
          %1638 = vmatpush1.msra.mxu0 0.0
          %1639 = vmatprep.subr.mxu0 0.0
          %1640 = vmatpush1.msra.mxu0 0.0
          %1641 = vmatprep.subr.mxu0 0.0
          %1642 = vmatpush1.msra.mxu0 0.0
          %1643 = vmatprep.subr.mxu0 0.0
          %1644 = vmatpush1.msra.mxu0 0.0
          %1645 = vmatprep.subr.mxu0 0.0
          %1646 = vmatpush1.msra.mxu0 0.0
          %1647 = vmatprep.subr.mxu0 0.0
          %1648 = vmatpush1.msra.mxu0 0.0
          %1649 = vmatprep.subr.mxu0 0.0
          %1650 = vmatpush1.msra.mxu0 %v1617
          %1651 = vmatprep.subr.mxu0 0.0
          %1652 = vmatpush2.msra.mxu0 0.0
          %1653 = vmatprep.subr.mxu0 0.0
          %1654 = vmatpush2.msra.mxu0 0.0
          %1655 = vmatprep.subr.mxu0 0.0
          %1656 = vmatpush2.msra.mxu0 0.0
          %1657 = vmatprep.subr.mxu0 0.0
          %1658 = vmatpush2.msra.mxu0 0.0
          %1659 = vmatprep.subr.mxu0 0.0
          %1660 = vmatpush2.msra.mxu0 0.0
          %1661 = vmatprep.subr.mxu0 0.0
          %1662 = vmatpush2.msra.mxu0 0.0
          %1663 = vmatprep.subr.mxu0 0.0
          %1664 = vmatpush2.msra.mxu0 0.0
          %1665 = vmatprep.subr.mxu0 0.0
          %1666 = vmatpush2.msra.mxu0 0.0
          %1667 = vmatprep.subr.mxu0 0.0
          %1668 = vmatpush2.msra.mxu0 0.0
          %1669 = vmatprep.subr.mxu0 0.0
          %1670 = vmatpush2.msra.mxu0 0.0
          %1671 = vmatprep.subr.mxu0 0.0
          %1672 = vmatpush2.msra.mxu0 0.0
          %1673 = vmatprep.subr.mxu0 0.0
          %1674 = vmatpush2.msra.mxu0 0.0
          %1675 = vmatprep.subr.mxu0 0.0
          %1676 = vmatpush2.msra.mxu0 0.0
          %1677 = vmatprep.subr.mxu0 0.0
          %1678 = vmatpush2.msra.mxu0 0.0
          %1679 = vmatprep.subr.mxu0 0.0
          %1680 = vmatpush2.msra.mxu0 0.0
          %1681 = vmatprep.subr.mxu0 0.0
          %1682 = vmatpush2.msra.mxu0 0.0
          %1683 = vmatprep.mubr.f32.mxu0 0.0
          %1684 = vmatmul.mubr.f32.gmra.mxu0 %v1034
          %v1685 = vpop.f32.mrf.mxu0
          %v1686 = vadd.f32 0.0, %v1685
          %v1687 = vpop.f32.mrf.mxu0
          %1688 = vdwg.mxu0
          %1689 = vst.msk [vmem:[#allocation8] sm:$0xff] %vm1463, %v1686
        $region100: #{spatial_graph_conv.1} parent=87 // pred_fallthru
          _
        %s1690 = smul.u32 %s38, 8
        %v1691 = vld [vmem:[%s597] sm:$0xff]
        %v1692 = vld [vmem:[%s601] sm:$0xff]
        %s1693 = scalar_lea.vmem %s597, %s1690
        %v1694 = vld [vmem:[%s1693] sm:$0xff]
        %s1695 = scalar_lea.vmem %s601, %s1690
        %v1696 = vld [vmem:[%s1695] sm:$0xff]
        %v1697 = vld [vmem:[#allocation2] sm:$0x1]
        %v1698 = vld [vmem:[#allocation3] sm:$0x1]
        %vm1699 = vcmask 31744
        %v1701 = vsel %vm1699, %v1694, 0
        %v1704 = vsel %vm1699, %v1691, 0
        %1706 = vmatprep.subr.mxu0 0.0
        %1707 = vmatpush1.xpose.msra.mxu0 0.0
        %1708 = vmatprep.subr.mxu0 0.0
        %1709 = vmatpush1.xpose.msra.mxu0 0.0
        %1710 = vmatprep.subr.mxu0 0.0
        %1711 = vmatpush1.xpose.msra.mxu0 0.0
        %1712 = vmatprep.subr.mxu0 0.0
        %1713 = vmatpush1.xpose.msra.mxu0 0.0
        %1714 = vmatprep.subr.mxu0 0.0
        %1715 = vmatpush1.xpose.msra.mxu0 0.0
        %1716 = vmatprep.subr.mxu0 0.0
        %1717 = vmatpush1.xpose.msra.mxu0 0.0
        %1718 = vmatprep.subr.mxu0 0.0
        %1719 = vmatpush1.xpose.msra.mxu0 0.0
        %1720 = vmatprep.subr.mxu0 0.0
        %1721 = vmatpush1.xpose.msra.mxu0 0.0
        %1722 = vmatprep.subr.mxu0 0.0
        %1723 = vmatpush1.xpose.msra.mxu0 0.0
        %1724 = vmatprep.subr.mxu0 0.0
        %1725 = vmatpush1.xpose.msra.mxu0 0.0
        %1726 = vmatprep.subr.mxu0 0.0
        %1727 = vmatpush1.xpose.msra.mxu0 0.0
        %1728 = vmatprep.subr.mxu0 0.0
        %1729 = vmatpush1.xpose.msra.mxu0 0.0
        %1730 = vmatprep.subr.mxu0 0.0
        %1731 = vmatpush1.xpose.msra.mxu0 0.0
        %1732 = vmatprep.subr.mxu0 0.0
        %1733 = vmatpush1.xpose.msra.mxu0 0.0
        %1734 = vmatprep.subr.mxu0 0.0
        %1735 = vmatpush1.xpose.msra.mxu0 0.0
        %1736 = vmatprep.subr.mxu0 0.0
        %1737 = vmatpush1.xpose.msra.mxu0 %v1704
        %1738 = vmatprep.subr.mxu0 0.0
        %1739 = vmatpush2.xpose.msra.mxu0 0.0
        %1740 = vmatprep.subr.mxu0 0.0
        %1741 = vmatpush2.xpose.msra.mxu0 0.0
        %1742 = vmatprep.subr.mxu0 0.0
        %1743 = vmatpush2.xpose.msra.mxu0 0.0
        %1744 = vmatprep.subr.mxu0 0.0
        %1745 = vmatpush2.xpose.msra.mxu0 0.0
        %1746 = vmatprep.subr.mxu0 0.0
        %1747 = vmatpush2.xpose.msra.mxu0 0.0
        %1748 = vmatprep.subr.mxu0 0.0
        %1749 = vmatpush2.xpose.msra.mxu0 0.0
        %1750 = vmatprep.subr.mxu0 0.0
        %1751 = vmatpush2.xpose.msra.mxu0 0.0
        %1752 = vmatprep.subr.mxu0 0.0
        %1753 = vmatpush2.xpose.msra.mxu0 0.0
        %1754 = vmatprep.subr.mxu0 0.0
        %1755 = vmatpush2.xpose.msra.mxu0 0.0
        %1756 = vmatprep.subr.mxu0 0.0
        %1757 = vmatpush2.xpose.msra.mxu0 0.0
        %1758 = vmatprep.subr.mxu0 0.0
        %1759 = vmatpush2.xpose.msra.mxu0 0.0
        %1760 = vmatprep.subr.mxu0 0.0
        %1761 = vmatpush2.xpose.msra.mxu0 0.0
        %1762 = vmatprep.subr.mxu0 0.0
        %1763 = vmatpush2.xpose.msra.mxu0 0.0
        %1764 = vmatprep.subr.mxu0 0.0
        %1765 = vmatpush2.xpose.msra.mxu0 0.0
        %1766 = vmatprep.subr.mxu0 0.0
        %1767 = vmatpush2.xpose.msra.mxu0 0.0
        %1768 = vmatprep.subr.mxu0 0.0
        %1769 = vmatpush2.xpose.msra.mxu0 0.0
        %1770 = vmatprep.mubr.f32.mxu0 0.0
        %1771 = vmatmul.mubr.f32.gmra.mxu0 %v1701
        %v1772 = vpop.f32.mrf.mxu0
        %v1773 = vadd.f32 0.0, %v1772
        %v1774 = vpop.f32.mrf.mxu0
        %1775 = vdwg.mxu0
        %v1776 = vmul.f32 %v1694, %v1694
        %v1777 = vsel %vm1699, %v1776, 0.0
        %1778 = vadd.xlane.f32.xlu0 %v1777
        %v1779 = vpop.xlane.xlu0 %1778
        %v1781 = vlaneseq
        %v1782 = vshrl.u32 %v1781, 7
        %v1783 = vsub.s32 0, %v1782
        %v1784 = vrot.slane %v1698, %v1783
        %v1786 = vadd.f32 %v1779, %v1784
        %v1787 = vmul.f32 %v1773, 2.0
        %v1788 = vsub.f32 %v1786, %v1787
        %v1789 = vmax.f32 %v1788, 0.0
        %v1790 = vadd.f32 %v1789, 1e-10
        %v1791 = vrsqrt.pop %v1790
        %v1792 = vmul.f32 %v1790, %v1791
        %vm1793 = vcmp.eq.f32.partialorder %v1790, inf
        %v1794 = vsel %vm1793, %v1790, %v1792
        %vm1795 = vcmp.eq.f32.partialorder %v1790, 0.0
        %v1796 = vand.u32 %v1790, 2147483648
        %v1797 = vsel %vm1795, %v1796, %v1794
        %vm1798 = vcmask 64512
        %v1800 = vsel %vm1798, %v1797, 0
        %v1803 = vsel %vm1798, %v1692, 0
        %1805 = vmatprep.subr.mxu0 0.0
        %1806 = vmatpush1.xpose.msra.mxu0 0.0
        %1807 = vmatprep.subr.mxu0 0.0
        %1808 = vmatpush1.xpose.msra.mxu0 0.0
        %1809 = vmatprep.subr.mxu0 0.0
        %1810 = vmatpush1.xpose.msra.mxu0 0.0
        %1811 = vmatprep.subr.mxu0 0.0
        %1812 = vmatpush1.xpose.msra.mxu0 0.0
        %1813 = vmatprep.subr.mxu0 0.0
        %1814 = vmatpush1.xpose.msra.mxu0 0.0
        %1815 = vmatprep.subr.mxu0 0.0
        %1816 = vmatpush1.xpose.msra.mxu0 0.0
        %1817 = vmatprep.subr.mxu0 0.0
        %1818 = vmatpush1.xpose.msra.mxu0 0.0
        %1819 = vmatprep.subr.mxu0 0.0
        %1820 = vmatpush1.xpose.msra.mxu0 0.0
        %1821 = vmatprep.subr.mxu0 0.0
        %1822 = vmatpush1.xpose.msra.mxu0 0.0
        %1823 = vmatprep.subr.mxu0 0.0
        %1824 = vmatpush1.xpose.msra.mxu0 0.0
        %1825 = vmatprep.subr.mxu0 0.0
        %1826 = vmatpush1.xpose.msra.mxu0 0.0
        %1827 = vmatprep.subr.mxu0 0.0
        %1828 = vmatpush1.xpose.msra.mxu0 0.0
        %1829 = vmatprep.subr.mxu0 0.0
        %1830 = vmatpush1.xpose.msra.mxu0 0.0
        %1831 = vmatprep.subr.mxu0 0.0
        %1832 = vmatpush1.xpose.msra.mxu0 0.0
        %1833 = vmatprep.subr.mxu0 0.0
        %1834 = vmatpush1.xpose.msra.mxu0 0.0
        %1835 = vmatprep.subr.mxu0 0.0
        %1836 = vmatpush1.xpose.msra.mxu0 %v1803
        %1837 = vmatprep.subr.mxu0 0.0
        %1838 = vmatpush2.xpose.msra.mxu0 0.0
        %1839 = vmatprep.subr.mxu0 0.0
        %1840 = vmatpush2.xpose.msra.mxu0 0.0
        %1841 = vmatprep.subr.mxu0 0.0
        %1842 = vmatpush2.xpose.msra.mxu0 0.0
        %1843 = vmatprep.subr.mxu0 0.0
        %1844 = vmatpush2.xpose.msra.mxu0 0.0
        %1845 = vmatprep.subr.mxu0 0.0
        %1846 = vmatpush2.xpose.msra.mxu0 0.0
        %1847 = vmatprep.subr.mxu0 0.0
        %1848 = vmatpush2.xpose.msra.mxu0 0.0
        %1849 = vmatprep.subr.mxu0 0.0
        %1850 = vmatpush2.xpose.msra.mxu0 0.0
        %1851 = vmatprep.subr.mxu0 0.0
        %1852 = vmatpush2.xpose.msra.mxu0 0.0
        %1853 = vmatprep.subr.mxu0 0.0
        %1854 = vmatpush2.xpose.msra.mxu0 0.0
        %1855 = vmatprep.subr.mxu0 0.0
        %1856 = vmatpush2.xpose.msra.mxu0 0.0
        %1857 = vmatprep.subr.mxu0 0.0
        %1858 = vmatpush2.xpose.msra.mxu0 0.0
        %1859 = vmatprep.subr.mxu0 0.0
        %1860 = vmatpush2.xpose.msra.mxu0 0.0
        %1861 = vmatprep.subr.mxu0 0.0
        %1862 = vmatpush2.xpose.msra.mxu0 0.0
        %1863 = vmatprep.subr.mxu0 0.0
        %1864 = vmatpush2.xpose.msra.mxu0 0.0
        %1865 = vmatprep.subr.mxu0 0.0
        %1866 = vmatpush2.xpose.msra.mxu0 0.0
        %1867 = vmatprep.subr.mxu0 0.0
        %1868 = vmatpush2.xpose.msra.mxu0 0.0
        %1869 = vmatprep.mubr.f32.mxu0 0.0
        %1870 = vmatmul.mubr.f32.gmra.mxu0 %v1800
        %v1871 = vpop.f32.mrf.mxu0
        %v1872 = vadd.f32 0.0, %v1871
        %v1873 = vpop.f32.mrf.mxu0
        %1874 = vdwg.mxu0
        %v1875 = vsel %vm1798, %v1696, 0.0
        %1876 = vadd.xlane.f32.xlu0 %v1875
        %v1877 = vpop.xlane.xlu0 %1876
        %v1878 = vmul.f32 %v1696, %v1797
        %v1879 = vsel %vm1798, %v1878, 0.0
        %1880 = vadd.xlane.f32.xlu0 %v1879
        %v1881 = vpop.xlane.xlu0 %1880
        %v1883 = vlaneseq
        %v1884 = vshrl.u32 %v1883, 7
        %v1885 = vsub.s32 0, %v1884
        %v1886 = vrot.slane %v1697, %v1885
        %v1888 = vmul.f32 %v1797, %v1886
        %s1889 = scalar_lea.vmem [#allocation5], %s1690
        %v1890 = vld [vmem:[%s1889] sm:$0xff]
        %1892 = vset.pattern.permute.xlu0 0
        %1893 = vperm.xlu0 %1892, %v1890
        %v1894 = vpop.permute.xlu0 %1893
        %v1896 = vmul.f32 %v1894, %v1886
        %s1897 = sld [smem:[#allocation9]]
        %v1898 = vstv %s1897
        %v1899 = vmul.f32 %v1898, %v1888
        %v1900 = vadd.f32 %v1896, %v1899
        %s1901 = sld [smem:[#allocation12]]
        %v1902 = vstv %s1901
        %v1903 = vmul.f32 %v1902, %v1872
        %v1904 = vadd.f32 %v1900, %v1903
        %v1905 = vld [vmem:[#allocation4] sm:$0x1]
        %v1906 = vlaneseq
        %v1907 = vshrl.u32 %v1906, 7
        %v1908 = vsub.s32 0, %v1907
        %v1909 = vrot.slane %v1905, %v1908
        %v1910 = vadd.f32 %v1904, %v1909
        %v1911 = vmul.f32 %v1696, %v1910
        %vm1912 = vcmp.ge.f32.partialorder %v1911, 0.0
        %v1913 = vmul.f32 %v1911, 0.05
        %v1914 = vsel %vm1912, %v1911, %v1913
        %v1915 = vmul.f32 %v1696, %v1914
        %v1916 = vsel %vm1798, %v1915, 0.0
        %1917 = vadd.xlane.f32.xlu0 %v1916
        %v1918 = vpop.xlane.xlu0 %1917
        %1919 = vset.pattern.permute.xlu0 1
        %1920 = vperm.xlu0 %1919, %v1890
        %v1921 = vpop.permute.xlu0 %1920
        %v1923 = vmul.f32 %v1921, %v1886
        %s1924 = sld [smem:[#allocation9 + $0x1]]
        %v1925 = vstv %s1924
        %v1926 = vmul.f32 %v1925, %v1888
        %v1927 = vadd.f32 %v1923, %v1926
        %s1928 = sld [smem:[#allocation12 + $0x1]]
        %v1929 = vstv %s1928
        %v1930 = vmul.f32 %v1929, %v1872
        %v1931 = vadd.f32 %v1927, %v1930
        %v1932 = vld [vmem:[#allocation4 + $0x1] sm:$0x1]
        %v1933 = vlaneseq
        %v1934 = vshrl.u32 %v1933, 7
        %v1935 = vsub.s32 0, %v1934
        %v1936 = vrot.slane %v1932, %v1935
        %v1937 = vadd.f32 %v1931, %v1936
        %v1938 = vmul.f32 %v1696, %v1937
        %vm1939 = vcmp.ge.f32.partialorder %v1938, 0.0
        %v1940 = vmul.f32 %v1938, 0.05
        %v1941 = vsel %vm1939, %v1938, %v1940
        %v1942 = vmul.f32 %v1696, %v1941
        %v1943 = vsel %vm1798, %v1942, 0.0
        %1944 = vadd.xlane.f32.xlu0 %v1943
        %v1945 = vpop.xlane.xlu0 %1944
        %1946 = vset.pattern.permute.xlu0 2
        %1947 = vperm.xlu0 %1946, %v1890
        %v1948 = vpop.permute.xlu0 %1947
        %v1950 = vmul.f32 %v1948, %v1886
        %s1951 = sld [smem:[#allocation9 + $0x2]]
        %v1952 = vstv %s1951
        %v1953 = vmul.f32 %v1952, %v1888
        %v1954 = vadd.f32 %v1950, %v1953
        %s1955 = sld [smem:[#allocation12 + $0x2]]
        %v1956 = vstv %s1955
        %v1957 = vmul.f32 %v1956, %v1872
        %v1958 = vadd.f32 %v1954, %v1957
        %v1959 = vld [vmem:[#allocation4 + $0x2] sm:$0x1]
        %v1960 = vlaneseq
        %v1961 = vshrl.u32 %v1960, 7
        %v1962 = vsub.s32 0, %v1961
        %v1963 = vrot.slane %v1959, %v1962
        %v1964 = vadd.f32 %v1958, %v1963
        %v1965 = vmul.f32 %v1696, %v1964
        %vm1966 = vcmp.ge.f32.partialorder %v1965, 0.0
        %v1967 = vmul.f32 %v1965, 0.05
        %v1968 = vsel %vm1966, %v1965, %v1967
        %v1969 = vmul.f32 %v1696, %v1968
        %v1970 = vsel %vm1798, %v1969, 0.0
        %1971 = vadd.xlane.f32.xlu0 %v1970
        %v1972 = vpop.xlane.xlu0 %1971
        %1973 = vset.pattern.permute.xlu0 3
        %1974 = vperm.xlu0 %1973, %v1890
        %v1975 = vpop.permute.xlu0 %1974
        %v1977 = vmul.f32 %v1975, %v1886
        %s1978 = sld [smem:[#allocation9 + $0x3]]
        %v1979 = vstv %s1978
        %v1980 = vmul.f32 %v1979, %v1888
        %v1981 = vadd.f32 %v1977, %v1980
        %s1982 = sld [smem:[#allocation12 + $0x3]]
        %v1983 = vstv %s1982
        %v1984 = vmul.f32 %v1983, %v1872
        %v1985 = vadd.f32 %v1981, %v1984
        %v1986 = vld [vmem:[#allocation4 + $0x3] sm:$0x1]
        %v1987 = vlaneseq
        %v1988 = vshrl.u32 %v1987, 7
        %v1989 = vsub.s32 0, %v1988
        %v1990 = vrot.slane %v1986, %v1989
        %v1991 = vadd.f32 %v1985, %v1990
        %v1992 = vmul.f32 %v1696, %v1991
        %vm1993 = vcmp.ge.f32.partialorder %v1992, 0.0
        %v1994 = vmul.f32 %v1992, 0.05
        %v1995 = vsel %vm1993, %v1992, %v1994
        %v1996 = vmul.f32 %v1696, %v1995
        %v1997 = vsel %vm1798, %v1996, 0.0
        %1998 = vadd.xlane.f32.xlu0 %v1997
        %v1999 = vpop.xlane.xlu0 %1998
        %2000 = vset.pattern.permute.xlu0 4
        %2001 = vperm.xlu0 %2000, %v1890
        %v2002 = vpop.permute.xlu0 %2001
        %v2004 = vmul.f32 %v2002, %v1886
        %s2005 = sld [smem:[#allocation9 + $0x4]]
        %v2006 = vstv %s2005
        %v2007 = vmul.f32 %v2006, %v1888
        %v2008 = vadd.f32 %v2004, %v2007
        %s2009 = sld [smem:[#allocation12 + $0x4]]
        %v2010 = vstv %s2009
        %v2011 = vmul.f32 %v2010, %v1872
        %v2012 = vadd.f32 %v2008, %v2011
        %v2013 = vld [vmem:[#allocation4 + $0x4] sm:$0x1]
        %v2014 = vlaneseq
        %v2015 = vshrl.u32 %v2014, 7
        %v2016 = vsub.s32 0, %v2015
        %v2017 = vrot.slane %v2013, %v2016
        %v2018 = vadd.f32 %v2012, %v2017
        %v2019 = vmul.f32 %v1696, %v2018
        %vm2020 = vcmp.ge.f32.partialorder %v2019, 0.0
        %v2021 = vmul.f32 %v2019, 0.05
        %v2022 = vsel %vm2020, %v2019, %v2021
        %v2023 = vmul.f32 %v1696, %v2022
        %v2024 = vsel %vm1798, %v2023, 0.0
        %2025 = vadd.xlane.f32.xlu0 %v2024
        %v2026 = vpop.xlane.xlu0 %2025
        %2027 = vset.pattern.permute.xlu0 5
        %2028 = vperm.xlu0 %2027, %v1890
        %v2029 = vpop.permute.xlu0 %2028
        %v2031 = vmul.f32 %v2029, %v1886
        %s2032 = sld [smem:[#allocation9 + $0x5]]
        %v2033 = vstv %s2032
        %v2034 = vmul.f32 %v2033, %v1888
        %v2035 = vadd.f32 %v2031, %v2034
        %s2036 = sld [smem:[#allocation12 + $0x5]]
        %v2037 = vstv %s2036
        %v2038 = vmul.f32 %v2037, %v1872
        %v2039 = vadd.f32 %v2035, %v2038
        %v2040 = vld [vmem:[#allocation4 + $0x5] sm:$0x1]
        %v2041 = vlaneseq
        %v2042 = vshrl.u32 %v2041, 7
        %v2043 = vsub.s32 0, %v2042
        %v2044 = vrot.slane %v2040, %v2043
        %v2045 = vadd.f32 %v2039, %v2044
        %v2046 = vmul.f32 %v1696, %v2045
        %vm2047 = vcmp.ge.f32.partialorder %v2046, 0.0
        %v2048 = vmul.f32 %v2046, 0.05
        %v2049 = vsel %vm2047, %v2046, %v2048
        %v2050 = vmul.f32 %v1696, %v2049
        %v2051 = vsel %vm1798, %v2050, 0.0
        %2052 = vadd.xlane.f32.xlu0 %v2051
        %v2053 = vpop.xlane.xlu0 %2052
        %2054 = vset.pattern.permute.xlu0 6
        %2055 = vperm.xlu0 %2054, %v1890
        %v2056 = vpop.permute.xlu0 %2055
        %v2058 = vmul.f32 %v2056, %v1886
        %s2059 = sld [smem:[#allocation9 + $0x6]]
        %v2060 = vstv %s2059
        %v2061 = vmul.f32 %v2060, %v1888
        %v2062 = vadd.f32 %v2058, %v2061
        %s2063 = sld [smem:[#allocation12 + $0x6]]
        %v2064 = vstv %s2063
        %v2065 = vmul.f32 %v2064, %v1872
        %v2066 = vadd.f32 %v2062, %v2065
        %v2067 = vld [vmem:[#allocation4 + $0x6] sm:$0x1]
        %v2068 = vlaneseq
        %v2069 = vshrl.u32 %v2068, 7
        %v2070 = vsub.s32 0, %v2069
        %v2071 = vrot.slane %v2067, %v2070
        %v2072 = vadd.f32 %v2066, %v2071
        %v2073 = vmul.f32 %v1696, %v2072
        %vm2074 = vcmp.ge.f32.partialorder %v2073, 0.0
        %v2075 = vmul.f32 %v2073, 0.05
        %v2076 = vsel %vm2074, %v2073, %v2075
        %v2077 = vmul.f32 %v1696, %v2076
        %v2078 = vsel %vm1798, %v2077, 0.0
        %2079 = vadd.xlane.f32.xlu0 %v2078
        %v2080 = vpop.xlane.xlu0 %2079
        %2081 = vset.pattern.permute.xlu0 7
        %2082 = vperm.xlu0 %2081, %v1890
        %v2083 = vpop.permute.xlu0 %2082
        %v2085 = vmul.f32 %v2083, %v1886
        %s2086 = sld [smem:[#allocation9 + $0x7]]
        %v2087 = vstv %s2086
        %v2088 = vmul.f32 %v2087, %v1888
        %v2089 = vadd.f32 %v2085, %v2088
        %s2090 = sld [smem:[#allocation12 + $0x7]]
        %v2091 = vstv %s2090
        %v2092 = vmul.f32 %v2091, %v1872
        %v2093 = vadd.f32 %v2089, %v2092
        %v2094 = vld [vmem:[#allocation4 + $0x7] sm:$0x1]
        %v2095 = vlaneseq
        %v2096 = vshrl.u32 %v2095, 7
        %v2097 = vsub.s32 0, %v2096
        %v2098 = vrot.slane %v2094, %v2097
        %v2099 = vadd.f32 %v2093, %v2098
        %v2100 = vmul.f32 %v1696, %v2099
        %vm2101 = vcmp.ge.f32.partialorder %v2100, 0.0
        %v2102 = vmul.f32 %v2100, 0.05
        %v2103 = vsel %vm2101, %v2100, %v2102
        %v2104 = vmul.f32 %v1696, %v2103
        %v2105 = vsel %vm1798, %v2104, 0.0
        %2106 = vadd.xlane.f32.xlu0 %v2105
        %v2107 = vpop.xlane.xlu0 %2106
        %2108 = vset.pattern.permute.xlu0 8
        %2109 = vperm.xlu0 %2108, %v1890
        %v2110 = vpop.permute.xlu0 %2109
        %v2112 = vmul.f32 %v2110, %v1886
        %s2113 = sld [smem:[#allocation9 + $0x8]]
        %v2114 = vstv %s2113
        %v2115 = vmul.f32 %v2114, %v1888
        %v2116 = vadd.f32 %v2112, %v2115
        %s2117 = sld [smem:[#allocation12 + $0x8]]
        %v2118 = vstv %s2117
        %v2119 = vmul.f32 %v2118, %v1872
        %v2120 = vadd.f32 %v2116, %v2119
        %v2121 = vld [vmem:[#allocation4 + $0x8] sm:$0x1]
        %v2122 = vlaneseq
        %v2123 = vshrl.u32 %v2122, 7
        %v2124 = vsub.s32 0, %v2123
        %v2125 = vrot.slane %v2121, %v2124
        %v2126 = vadd.f32 %v2120, %v2125
        %v2127 = vmul.f32 %v1696, %v2126
        %vm2128 = vcmp.ge.f32.partialorder %v2127, 0.0
        %v2129 = vmul.f32 %v2127, 0.05
        %v2130 = vsel %vm2128, %v2127, %v2129
        %v2131 = vmul.f32 %v1696, %v2130
        %v2132 = vsel %vm1798, %v2131, 0.0
        %2133 = vadd.xlane.f32.xlu0 %v2132
        %v2134 = vpop.xlane.xlu0 %2133
        %2135 = vset.pattern.permute.xlu0 9
        %2136 = vperm.xlu0 %2135, %v1890
        %v2137 = vpop.permute.xlu0 %2136
        %v2139 = vmul.f32 %v2137, %v1886
        %s2140 = sld [smem:[#allocation9 + $0x9]]
        %v2141 = vstv %s2140
        %v2142 = vmul.f32 %v2141, %v1888
        %v2143 = vadd.f32 %v2139, %v2142
        %s2144 = sld [smem:[#allocation12 + $0x9]]
        %v2145 = vstv %s2144
        %v2146 = vmul.f32 %v2145, %v1872
        %v2147 = vadd.f32 %v2143, %v2146
        %v2148 = vld [vmem:[#allocation4 + $0x9] sm:$0x1]
        %v2149 = vlaneseq
        %v2150 = vshrl.u32 %v2149, 7
        %v2151 = vsub.s32 0, %v2150
        %v2152 = vrot.slane %v2148, %v2151
        %v2153 = vadd.f32 %v2147, %v2152
        %v2154 = vmul.f32 %v1696, %v2153
        %vm2155 = vcmp.ge.f32.partialorder %v2154, 0.0
        %v2156 = vmul.f32 %v2154, 0.05
        %v2157 = vsel %vm2155, %v2154, %v2156
        %v2158 = vmul.f32 %v1696, %v2157
        %v2159 = vsel %vm1798, %v2158, 0.0
        %2160 = vadd.xlane.f32.xlu0 %v2159
        %v2161 = vpop.xlane.xlu0 %2160
        %2162 = vset.pattern.permute.xlu0 10
        %2163 = vperm.xlu0 %2162, %v1890
        %v2164 = vpop.permute.xlu0 %2163
        %v2166 = vmul.f32 %v2164, %v1886
        %s2167 = sld [smem:[#allocation9 + $0xa]]
        %v2168 = vstv %s2167
        %v2169 = vmul.f32 %v2168, %v1888
        %v2170 = vadd.f32 %v2166, %v2169
        %s2171 = sld [smem:[#allocation12 + $0xa]]
        %v2172 = vstv %s2171
        %v2173 = vmul.f32 %v2172, %v1872
        %v2174 = vadd.f32 %v2170, %v2173
        %v2175 = vld [vmem:[#allocation4 + $0xa] sm:$0x1]
        %v2176 = vlaneseq
        %v2177 = vshrl.u32 %v2176, 7
        %v2178 = vsub.s32 0, %v2177
        %v2179 = vrot.slane %v2175, %v2178
        %v2180 = vadd.f32 %v2174, %v2179
        %v2181 = vmul.f32 %v1696, %v2180
        %vm2182 = vcmp.ge.f32.partialorder %v2181, 0.0
        %v2183 = vmul.f32 %v2181, 0.05
        %v2184 = vsel %vm2182, %v2181, %v2183
        %v2185 = vmul.f32 %v1696, %v2184
        %v2186 = vsel %vm1798, %v2185, 0.0
        %2187 = vadd.xlane.f32.xlu0 %v2186
        %v2188 = vpop.xlane.xlu0 %2187
        %2189 = vset.pattern.permute.xlu0 11
        %2190 = vperm.xlu0 %2189, %v1890
        %v2191 = vpop.permute.xlu0 %2190
        %v2193 = vmul.f32 %v2191, %v1886
        %s2194 = sld [smem:[#allocation9 + $0xb]]
        %v2195 = vstv %s2194
        %v2196 = vmul.f32 %v2195, %v1888
        %v2197 = vadd.f32 %v2193, %v2196
        %s2198 = sld [smem:[#allocation12 + $0xb]]
        %v2199 = vstv %s2198
        %v2200 = vmul.f32 %v2199, %v1872
        %v2201 = vadd.f32 %v2197, %v2200
        %v2202 = vld [vmem:[#allocation4 + $0xb] sm:$0x1]
        %v2203 = vlaneseq
        %v2204 = vshrl.u32 %v2203, 7
        %v2205 = vsub.s32 0, %v2204
        %v2206 = vrot.slane %v2202, %v2205
        %v2207 = vadd.f32 %v2201, %v2206
        %v2208 = vmul.f32 %v1696, %v2207
        %vm2209 = vcmp.ge.f32.partialorder %v2208, 0.0
        %v2210 = vmul.f32 %v2208, 0.05
        %v2211 = vsel %vm2209, %v2208, %v2210
        %v2212 = vmul.f32 %v1696, %v2211
        %v2213 = vsel %vm1798, %v2212, 0.0
        %2214 = vadd.xlane.f32.xlu0 %v2213
        %v2215 = vpop.xlane.xlu0 %2214
        %2216 = vset.pattern.permute.xlu0 12
        %2217 = vperm.xlu0 %2216, %v1890
        %v2218 = vpop.permute.xlu0 %2217
        %v2220 = vmul.f32 %v2218, %v1886
        %s2221 = sld [smem:[#allocation9 + $0xc]]
        %v2222 = vstv %s2221
        %v2223 = vmul.f32 %v2222, %v1888
        %v2224 = vadd.f32 %v2220, %v2223
        %s2225 = sld [smem:[#allocation12 + $0xc]]
        %v2226 = vstv %s2225
        %v2227 = vmul.f32 %v2226, %v1872
        %v2228 = vadd.f32 %v2224, %v2227
        %v2229 = vld [vmem:[#allocation4 + $0xc] sm:$0x1]
        %v2230 = vlaneseq
        %v2231 = vshrl.u32 %v2230, 7
        %v2232 = vsub.s32 0, %v2231
        %v2233 = vrot.slane %v2229, %v2232
        %v2234 = vadd.f32 %v2228, %v2233
        %v2235 = vmul.f32 %v1696, %v2234
        %vm2236 = vcmp.ge.f32.partialorder %v2235, 0.0
        %v2237 = vmul.f32 %v2235, 0.05
        %v2238 = vsel %vm2236, %v2235, %v2237
        %v2239 = vmul.f32 %v1696, %v2238
        %v2240 = vsel %vm1798, %v2239, 0.0
        %2241 = vadd.xlane.f32.xlu0 %v2240
        %v2242 = vpop.xlane.xlu0 %2241
        %2243 = vset.pattern.permute.xlu0 13
        %2244 = vperm.xlu0 %2243, %v1890
        %v2245 = vpop.permute.xlu0 %2244
        %v2247 = vmul.f32 %v2245, %v1886
        %s2248 = sld [smem:[#allocation9 + $0xd]]
        %v2249 = vstv %s2248
        %v2250 = vmul.f32 %v2249, %v1888
        %v2251 = vadd.f32 %v2247, %v2250
        %s2252 = sld [smem:[#allocation12 + $0xd]]
        %v2253 = vstv %s2252
        %v2254 = vmul.f32 %v2253, %v1872
        %v2255 = vadd.f32 %v2251, %v2254
        %v2256 = vld [vmem:[#allocation4 + $0xd] sm:$0x1]
        %v2257 = vlaneseq
        %v2258 = vshrl.u32 %v2257, 7
        %v2259 = vsub.s32 0, %v2258
        %v2260 = vrot.slane %v2256, %v2259
        %v2261 = vadd.f32 %v2255, %v2260
        %v2262 = vmul.f32 %v1696, %v2261
        %vm2263 = vcmp.ge.f32.partialorder %v2262, 0.0
        %v2264 = vmul.f32 %v2262, 0.05
        %v2265 = vsel %vm2263, %v2262, %v2264
        %v2266 = vmul.f32 %v1696, %v2265
        %v2267 = vsel %vm1798, %v2266, 0.0
        %2268 = vadd.xlane.f32.xlu0 %v2267
        %v2269 = vpop.xlane.xlu0 %2268
        %2270 = vset.pattern.permute.xlu0 14
        %2271 = vperm.xlu0 %2270, %v1890
        %v2272 = vpop.permute.xlu0 %2271
        %v2274 = vmul.f32 %v2272, %v1886
        %s2275 = sld [smem:[#allocation9 + $0xe]]
        %v2276 = vstv %s2275
        %v2277 = vmul.f32 %v2276, %v1888
        %v2278 = vadd.f32 %v2274, %v2277
        %s2279 = sld [smem:[#allocation12 + $0xe]]
        %v2280 = vstv %s2279
        %v2281 = vmul.f32 %v2280, %v1872
        %v2282 = vadd.f32 %v2278, %v2281
        %v2283 = vld [vmem:[#allocation4 + $0xe] sm:$0x1]
        %v2284 = vlaneseq
        %v2285 = vshrl.u32 %v2284, 7
        %v2286 = vsub.s32 0, %v2285
        %v2287 = vrot.slane %v2283, %v2286
        %v2288 = vadd.f32 %v2282, %v2287
        %v2289 = vmul.f32 %v1696, %v2288
        %vm2290 = vcmp.ge.f32.partialorder %v2289, 0.0
        %v2291 = vmul.f32 %v2289, 0.05
        %v2292 = vsel %vm2290, %v2289, %v2291
        %v2293 = vmul.f32 %v1696, %v2292
        %v2294 = vsel %vm1798, %v2293, 0.0
        %2295 = vadd.xlane.f32.xlu0 %v2294
        %v2296 = vpop.xlane.xlu0 %2295
        %2297 = vset.pattern.permute.xlu0 15
        %2298 = vperm.xlu0 %2297, %v1890
        %v2299 = vpop.permute.xlu0 %2298
        %v2301 = vmul.f32 %v2299, %v1886
        %s2302 = sld [smem:[#allocation9 + $0xf]]
        %v2303 = vstv %s2302
        %v2304 = vmul.f32 %v2303, %v1888
        %v2305 = vadd.f32 %v2301, %v2304
        %s2306 = sld [smem:[#allocation12 + $0xf]]
        %v2307 = vstv %s2306
        %v2308 = vmul.f32 %v2307, %v1872
        %v2309 = vadd.f32 %v2305, %v2308
        %v2310 = vld [vmem:[#allocation4 + $0xf] sm:$0x1]
        %v2311 = vlaneseq
        %v2312 = vshrl.u32 %v2311, 7
        %v2313 = vsub.s32 0, %v2312
        %v2314 = vrot.slane %v2310, %v2313
        %v2315 = vadd.f32 %v2309, %v2314
        %v2316 = vmul.f32 %v1696, %v2315
        %vm2317 = vcmp.ge.f32.partialorder %v2316, 0.0
        %v2318 = vmul.f32 %v2316, 0.05
        %v2319 = vsel %vm2317, %v2316, %v2318
        %v2320 = vmul.f32 %v1696, %v2319
        %v2321 = vsel %vm1798, %v2320, 0.0
        %2322 = vadd.xlane.f32.xlu0 %v2321
        %v2323 = vpop.xlane.xlu0 %2322
        %2324 = vset.pattern.permute.xlu0 16
        %2325 = vperm.xlu0 %2324, %v1890
        %v2326 = vpop.permute.xlu0 %2325
        %v2328 = vmul.f32 %v2326, %v1886
        %s2329 = sld [smem:[#allocation9 + $0x10]]
        %v2330 = vstv %s2329
        %v2331 = vmul.f32 %v2330, %v1888
        %v2332 = vadd.f32 %v2328, %v2331
        %s2333 = sld [smem:[#allocation12 + $0x10]]
        %v2334 = vstv %s2333
        %v2335 = vmul.f32 %v2334, %v1872
        %v2336 = vadd.f32 %v2332, %v2335
        %v2337 = vld [vmem:[#allocation4 + $0x10] sm:$0x1]
        %v2338 = vlaneseq
        %v2339 = vshrl.u32 %v2338, 7
        %v2340 = vsub.s32 0, %v2339
        %v2341 = vrot.slane %v2337, %v2340
        %v2342 = vadd.f32 %v2336, %v2341
        %v2343 = vmul.f32 %v1696, %v2342
        %vm2344 = vcmp.ge.f32.partialorder %v2343, 0.0
        %v2345 = vmul.f32 %v2343, 0.05
        %v2346 = vsel %vm2344, %v2343, %v2345
        %v2347 = vmul.f32 %v1696, %v2346
        %v2348 = vsel %vm1798, %v2347, 0.0
        %2349 = vadd.xlane.f32.xlu0 %v2348
        %v2350 = vpop.xlane.xlu0 %2349
        %2351 = vset.pattern.permute.xlu0 17
        %2352 = vperm.xlu0 %2351, %v1890
        %v2353 = vpop.permute.xlu0 %2352
        %v2355 = vmul.f32 %v2353, %v1886
        %s2356 = sld [smem:[#allocation9 + $0x11]]
        %v2357 = vstv %s2356
        %v2358 = vmul.f32 %v2357, %v1888
        %v2359 = vadd.f32 %v2355, %v2358
        %s2360 = sld [smem:[#allocation12 + $0x11]]
        %v2361 = vstv %s2360
        %v2362 = vmul.f32 %v2361, %v1872
        %v2363 = vadd.f32 %v2359, %v2362
        %v2364 = vld [vmem:[#allocation4 + $0x11] sm:$0x1]
        %v2365 = vlaneseq
        %v2366 = vshrl.u32 %v2365, 7
        %v2367 = vsub.s32 0, %v2366
        %v2368 = vrot.slane %v2364, %v2367
        %v2369 = vadd.f32 %v2363, %v2368
        %v2370 = vmul.f32 %v1696, %v2369
        %vm2371 = vcmp.ge.f32.partialorder %v2370, 0.0
        %v2372 = vmul.f32 %v2370, 0.05
        %v2373 = vsel %vm2371, %v2370, %v2372
        %v2374 = vmul.f32 %v1696, %v2373
        %v2375 = vsel %vm1798, %v2374, 0.0
        %2376 = vadd.xlane.f32.xlu0 %v2375
        %v2377 = vpop.xlane.xlu0 %2376
        %2378 = vset.pattern.permute.xlu0 18
        %2379 = vperm.xlu0 %2378, %v1890
        %v2380 = vpop.permute.xlu0 %2379
        %v2382 = vmul.f32 %v2380, %v1886
        %s2383 = sld [smem:[#allocation9 + $0x12]]
        %v2384 = vstv %s2383
        %v2385 = vmul.f32 %v2384, %v1888
        %v2386 = vadd.f32 %v2382, %v2385
        %s2387 = sld [smem:[#allocation12 + $0x12]]
        %v2388 = vstv %s2387
        %v2389 = vmul.f32 %v2388, %v1872
        %v2390 = vadd.f32 %v2386, %v2389
        %v2391 = vld [vmem:[#allocation4 + $0x12] sm:$0x1]
        %v2392 = vlaneseq
        %v2393 = vshrl.u32 %v2392, 7
        %v2394 = vsub.s32 0, %v2393
        %v2395 = vrot.slane %v2391, %v2394
        %v2396 = vadd.f32 %v2390, %v2395
        %v2397 = vmul.f32 %v1696, %v2396
        %vm2398 = vcmp.ge.f32.partialorder %v2397, 0.0
        %v2399 = vmul.f32 %v2397, 0.05
        %v2400 = vsel %vm2398, %v2397, %v2399
        %v2401 = vmul.f32 %v1696, %v2400
        %v2402 = vsel %vm1798, %v2401, 0.0
        %2403 = vadd.xlane.f32.xlu0 %v2402
        %v2404 = vpop.xlane.xlu0 %2403
        %2405 = vset.pattern.permute.xlu0 19
        %2406 = vperm.xlu0 %2405, %v1890
        %v2407 = vpop.permute.xlu0 %2406
        %v2409 = vmul.f32 %v2407, %v1886
        %s2410 = sld [smem:[#allocation9 + $0x13]]
        %v2411 = vstv %s2410
        %v2412 = vmul.f32 %v2411, %v1888
        %v2413 = vadd.f32 %v2409, %v2412
        %s2414 = sld [smem:[#allocation12 + $0x13]]
        %v2415 = vstv %s2414
        %v2416 = vmul.f32 %v2415, %v1872
        %v2417 = vadd.f32 %v2413, %v2416
        %v2418 = vld [vmem:[#allocation4 + $0x13] sm:$0x1]
        %v2419 = vlaneseq
        %v2420 = vshrl.u32 %v2419, 7
        %v2421 = vsub.s32 0, %v2420
        %v2422 = vrot.slane %v2418, %v2421
        %v2423 = vadd.f32 %v2417, %v2422
        %v2424 = vmul.f32 %v1696, %v2423
        %vm2425 = vcmp.ge.f32.partialorder %v2424, 0.0
        %v2426 = vmul.f32 %v2424, 0.05
        %v2427 = vsel %vm2425, %v2424, %v2426
        %v2428 = vmul.f32 %v1696, %v2427
        %v2429 = vsel %vm1798, %v2428, 0.0
        %2430 = vadd.xlane.f32.xlu0 %v2429
        %v2431 = vpop.xlane.xlu0 %2430
        %2432 = vset.pattern.permute.xlu0 20
        %2433 = vperm.xlu0 %2432, %v1890
        %v2434 = vpop.permute.xlu0 %2433
        %v2436 = vmul.f32 %v2434, %v1886
        %s2437 = sld [smem:[#allocation9 + $0x14]]
        %v2438 = vstv %s2437
        %v2439 = vmul.f32 %v2438, %v1888
        %v2440 = vadd.f32 %v2436, %v2439
        %s2441 = sld [smem:[#allocation12 + $0x14]]
        %v2442 = vstv %s2441
        %v2443 = vmul.f32 %v2442, %v1872
        %v2444 = vadd.f32 %v2440, %v2443
        %v2445 = vld [vmem:[#allocation4 + $0x14] sm:$0x1]
        %v2446 = vlaneseq
        %v2447 = vshrl.u32 %v2446, 7
        %v2448 = vsub.s32 0, %v2447
        %v2449 = vrot.slane %v2445, %v2448
        %v2450 = vadd.f32 %v2444, %v2449
        %v2451 = vmul.f32 %v1696, %v2450
        %vm2452 = vcmp.ge.f32.partialorder %v2451, 0.0
        %v2453 = vmul.f32 %v2451, 0.05
        %v2454 = vsel %vm2452, %v2451, %v2453
        %v2455 = vmul.f32 %v1696, %v2454
        %v2456 = vsel %vm1798, %v2455, 0.0
        %2457 = vadd.xlane.f32.xlu0 %v2456
        %v2458 = vpop.xlane.xlu0 %2457
        %2459 = vset.pattern.permute.xlu0 21
        %2460 = vperm.xlu0 %2459, %v1890
        %v2461 = vpop.permute.xlu0 %2460
        %v2463 = vmul.f32 %v2461, %v1886
        %s2464 = sld [smem:[#allocation9 + $0x15]]
        %v2465 = vstv %s2464
        %v2466 = vmul.f32 %v2465, %v1888
        %v2467 = vadd.f32 %v2463, %v2466
        %s2468 = sld [smem:[#allocation12 + $0x15]]
        %v2469 = vstv %s2468
        %v2470 = vmul.f32 %v2469, %v1872
        %v2471 = vadd.f32 %v2467, %v2470
        %v2472 = vld [vmem:[#allocation4 + $0x15] sm:$0x1]
        %v2473 = vlaneseq
        %v2474 = vshrl.u32 %v2473, 7
        %v2475 = vsub.s32 0, %v2474
        %v2476 = vrot.slane %v2472, %v2475
        %v2477 = vadd.f32 %v2471, %v2476
        %v2478 = vmul.f32 %v1696, %v2477
        %vm2479 = vcmp.ge.f32.partialorder %v2478, 0.0
        %v2480 = vmul.f32 %v2478, 0.05
        %v2481 = vsel %vm2479, %v2478, %v2480
        %v2482 = vmul.f32 %v1696, %v2481
        %v2483 = vsel %vm1798, %v2482, 0.0
        %2484 = vadd.xlane.f32.xlu0 %v2483
        %v2485 = vpop.xlane.xlu0 %2484
        %2486 = vset.pattern.permute.xlu0 22
        %2487 = vperm.xlu0 %2486, %v1890
        %v2488 = vpop.permute.xlu0 %2487
        %v2490 = vmul.f32 %v2488, %v1886
        %s2491 = sld [smem:[#allocation9 + $0x16]]
        %v2492 = vstv %s2491
        %v2493 = vmul.f32 %v2492, %v1888
        %v2494 = vadd.f32 %v2490, %v2493
        %s2495 = sld [smem:[#allocation12 + $0x16]]
        %v2496 = vstv %s2495
        %v2497 = vmul.f32 %v2496, %v1872
        %v2498 = vadd.f32 %v2494, %v2497
        %v2499 = vld [vmem:[#allocation4 + $0x16] sm:$0x1]
        %v2500 = vlaneseq
        %v2501 = vshrl.u32 %v2500, 7
        %v2502 = vsub.s32 0, %v2501
        %v2503 = vrot.slane %v2499, %v2502
        %v2504 = vadd.f32 %v2498, %v2503
        %v2505 = vmul.f32 %v1696, %v2504
        %vm2506 = vcmp.ge.f32.partialorder %v2505, 0.0
        %v2507 = vmul.f32 %v2505, 0.05
        %v2508 = vsel %vm2506, %v2505, %v2507
        %v2509 = vmul.f32 %v1696, %v2508
        %v2510 = vsel %vm1798, %v2509, 0.0
        %2511 = vadd.xlane.f32.xlu0 %v2510
        %v2512 = vpop.xlane.xlu0 %2511
        %2513 = vset.pattern.permute.xlu0 23
        %2514 = vperm.xlu0 %2513, %v1890
        %v2515 = vpop.permute.xlu0 %2514
        %v2517 = vmul.f32 %v2515, %v1886
        %s2518 = sld [smem:[#allocation9 + $0x17]]
        %v2519 = vstv %s2518
        %v2520 = vmul.f32 %v2519, %v1888
        %v2521 = vadd.f32 %v2517, %v2520
        %s2522 = sld [smem:[#allocation12 + $0x17]]
        %v2523 = vstv %s2522
        %v2524 = vmul.f32 %v2523, %v1872
        %v2525 = vadd.f32 %v2521, %v2524
        %v2526 = vld [vmem:[#allocation4 + $0x17] sm:$0x1]
        %v2527 = vlaneseq
        %v2528 = vshrl.u32 %v2527, 7
        %v2529 = vsub.s32 0, %v2528
        %v2530 = vrot.slane %v2526, %v2529
        %v2531 = vadd.f32 %v2525, %v2530
        %v2532 = vmul.f32 %v1696, %v2531
        %vm2533 = vcmp.ge.f32.partialorder %v2532, 0.0
        %v2534 = vmul.f32 %v2532, 0.05
        %v2535 = vsel %vm2533, %v2532, %v2534
        %v2536 = vmul.f32 %v1696, %v2535
        %v2537 = vsel %vm1798, %v2536, 0.0
        %2538 = vadd.xlane.f32.xlu0 %v2537
        %v2539 = vpop.xlane.xlu0 %2538
        %2540 = vset.pattern.permute.xlu0 24
        %2541 = vperm.xlu0 %2540, %v1890
        %v2542 = vpop.permute.xlu0 %2541
        %v2544 = vmul.f32 %v2542, %v1886
        %s2545 = sld [smem:[#allocation9 + $0x18]]
        %v2546 = vstv %s2545
        %v2547 = vmul.f32 %v2546, %v1888
        %v2548 = vadd.f32 %v2544, %v2547
        %s2549 = sld [smem:[#allocation12 + $0x18]]
        %v2550 = vstv %s2549
        %v2551 = vmul.f32 %v2550, %v1872
        %v2552 = vadd.f32 %v2548, %v2551
        %v2553 = vld [vmem:[#allocation4 + $0x18] sm:$0x1]
        %v2554 = vlaneseq
        %v2555 = vshrl.u32 %v2554, 7
        %v2556 = vsub.s32 0, %v2555
        %v2557 = vrot.slane %v2553, %v2556
        %v2558 = vadd.f32 %v2552, %v2557
        %v2559 = vmul.f32 %v1696, %v2558
        %vm2560 = vcmp.ge.f32.partialorder %v2559, 0.0
        %v2561 = vmul.f32 %v2559, 0.05
        %v2562 = vsel %vm2560, %v2559, %v2561
        %v2563 = vmul.f32 %v1696, %v2562
        %v2564 = vsel %vm1798, %v2563, 0.0
        %2565 = vadd.xlane.f32.xlu0 %v2564
        %v2566 = vpop.xlane.xlu0 %2565
        %2567 = vset.pattern.permute.xlu0 25
        %2568 = vperm.xlu0 %2567, %v1890
        %v2569 = vpop.permute.xlu0 %2568
        %v2571 = vmul.f32 %v2569, %v1886
        %s2572 = sld [smem:[#allocation9 + $0x19]]
        %v2573 = vstv %s2572
        %v2574 = vmul.f32 %v2573, %v1888
        %v2575 = vadd.f32 %v2571, %v2574
        %s2576 = sld [smem:[#allocation12 + $0x19]]
        %v2577 = vstv %s2576
        %v2578 = vmul.f32 %v2577, %v1872
        %v2579 = vadd.f32 %v2575, %v2578
        %v2580 = vld [vmem:[#allocation4 + $0x19] sm:$0x1]
        %v2581 = vlaneseq
        %v2582 = vshrl.u32 %v2581, 7
        %v2583 = vsub.s32 0, %v2582
        %v2584 = vrot.slane %v2580, %v2583
        %v2585 = vadd.f32 %v2579, %v2584
        %v2586 = vmul.f32 %v1696, %v2585
        %vm2587 = vcmp.ge.f32.partialorder %v2586, 0.0
        %v2588 = vmul.f32 %v2586, 0.05
        %v2589 = vsel %vm2587, %v2586, %v2588
        %v2590 = vmul.f32 %v1696, %v2589
        %v2591 = vsel %vm1798, %v2590, 0.0
        %2592 = vadd.xlane.f32.xlu0 %v2591
        %v2593 = vpop.xlane.xlu0 %2592
        %2594 = vset.pattern.permute.xlu0 26
        %2595 = vperm.xlu0 %2594, %v1890
        %v2596 = vpop.permute.xlu0 %2595
        %v2598 = vmul.f32 %v2596, %v1886
        %s2599 = sld [smem:[#allocation9 + $0x1a]]
        %v2600 = vstv %s2599
        %v2601 = vmul.f32 %v2600, %v1888
        %v2602 = vadd.f32 %v2598, %v2601
        %s2603 = sld [smem:[#allocation12 + $0x1a]]
        %v2604 = vstv %s2603
        %v2605 = vmul.f32 %v2604, %v1872
        %v2606 = vadd.f32 %v2602, %v2605
        %v2607 = vld [vmem:[#allocation4 + $0x1a] sm:$0x1]
        %v2608 = vlaneseq
        %v2609 = vshrl.u32 %v2608, 7
        %v2610 = vsub.s32 0, %v2609
        %v2611 = vrot.slane %v2607, %v2610
        %v2612 = vadd.f32 %v2606, %v2611
        %v2613 = vmul.f32 %v1696, %v2612
        %vm2614 = vcmp.ge.f32.partialorder %v2613, 0.0
        %v2615 = vmul.f32 %v2613, 0.05
        %v2616 = vsel %vm2614, %v2613, %v2615
        %v2617 = vmul.f32 %v1696, %v2616
        %v2618 = vsel %vm1798, %v2617, 0.0
        %2619 = vadd.xlane.f32.xlu0 %v2618
        %v2620 = vpop.xlane.xlu0 %2619
        %2621 = vset.pattern.permute.xlu0 27
        %2622 = vperm.xlu0 %2621, %v1890
        %v2623 = vpop.permute.xlu0 %2622
        %v2625 = vmul.f32 %v2623, %v1886
        %s2626 = sld [smem:[#allocation9 + $0x1b]]
        %v2627 = vstv %s2626
        %v2628 = vmul.f32 %v2627, %v1888
        %v2629 = vadd.f32 %v2625, %v2628
        %s2630 = sld [smem:[#allocation12 + $0x1b]]
        %v2631 = vstv %s2630
        %v2632 = vmul.f32 %v2631, %v1872
        %v2633 = vadd.f32 %v2629, %v2632
        %v2634 = vld [vmem:[#allocation4 + $0x1b] sm:$0x1]
        %v2635 = vlaneseq
        %v2636 = vshrl.u32 %v2635, 7
        %v2637 = vsub.s32 0, %v2636
        %v2638 = vrot.slane %v2634, %v2637
        %v2639 = vadd.f32 %v2633, %v2638
        %v2640 = vmul.f32 %v1696, %v2639
        %vm2641 = vcmp.ge.f32.partialorder %v2640, 0.0
        %v2642 = vmul.f32 %v2640, 0.05
        %v2643 = vsel %vm2641, %v2640, %v2642
        %v2644 = vmul.f32 %v1696, %v2643
        %v2645 = vsel %vm1798, %v2644, 0.0
        %2646 = vadd.xlane.f32.xlu0 %v2645
        %v2647 = vpop.xlane.xlu0 %2646
        %2648 = vset.pattern.permute.xlu0 28
        %2649 = vperm.xlu0 %2648, %v1890
        %v2650 = vpop.permute.xlu0 %2649
        %v2652 = vmul.f32 %v2650, %v1886
        %s2653 = sld [smem:[#allocation9 + $0x1c]]
        %v2654 = vstv %s2653
        %v2655 = vmul.f32 %v2654, %v1888
        %v2656 = vadd.f32 %v2652, %v2655
        %s2657 = sld [smem:[#allocation12 + $0x1c]]
        %v2658 = vstv %s2657
        %v2659 = vmul.f32 %v2658, %v1872
        %v2660 = vadd.f32 %v2656, %v2659
        %v2661 = vld [vmem:[#allocation4 + $0x1c] sm:$0x1]
        %v2662 = vlaneseq
        %v2663 = vshrl.u32 %v2662, 7
        %v2664 = vsub.s32 0, %v2663
        %v2665 = vrot.slane %v2661, %v2664
        %v2666 = vadd.f32 %v2660, %v2665
        %v2667 = vmul.f32 %v1696, %v2666
        %vm2668 = vcmp.ge.f32.partialorder %v2667, 0.0
        %v2669 = vmul.f32 %v2667, 0.05
        %v2670 = vsel %vm2668, %v2667, %v2669
        %v2671 = vmul.f32 %v1696, %v2670
        %v2672 = vsel %vm1798, %v2671, 0.0
        %2673 = vadd.xlane.f32.xlu0 %v2672
        %v2674 = vpop.xlane.xlu0 %2673
        %2675 = vset.pattern.permute.xlu0 29
        %2676 = vperm.xlu0 %2675, %v1890
        %v2677 = vpop.permute.xlu0 %2676
        %v2679 = vmul.f32 %v2677, %v1886
        %s2680 = sld [smem:[#allocation9 + $0x1d]]
        %v2681 = vstv %s2680
        %v2682 = vmul.f32 %v2681, %v1888
        %v2683 = vadd.f32 %v2679, %v2682
        %s2684 = sld [smem:[#allocation12 + $0x1d]]
        %v2685 = vstv %s2684
        %v2686 = vmul.f32 %v2685, %v1872
        %v2687 = vadd.f32 %v2683, %v2686
        %v2688 = vld [vmem:[#allocation4 + $0x1d] sm:$0x1]
        %v2689 = vlaneseq
        %v2690 = vshrl.u32 %v2689, 7
        %v2691 = vsub.s32 0, %v2690
        %v2692 = vrot.slane %v2688, %v2691
        %v2693 = vadd.f32 %v2687, %v2692
        %v2694 = vmul.f32 %v1696, %v2693
        %vm2695 = vcmp.ge.f32.partialorder %v2694, 0.0
        %v2696 = vmul.f32 %v2694, 0.05
        %v2697 = vsel %vm2695, %v2694, %v2696
        %v2698 = vmul.f32 %v1696, %v2697
        %v2699 = vsel %vm1798, %v2698, 0.0
        %2700 = vadd.xlane.f32.xlu0 %v2699
        %v2701 = vpop.xlane.xlu0 %2700
        %2702 = vset.pattern.permute.xlu0 30
        %2703 = vperm.xlu0 %2702, %v1890
        %v2704 = vpop.permute.xlu0 %2703
        %v2706 = vmul.f32 %v2704, %v1886
        %s2707 = sld [smem:[#allocation9 + $0x1e]]
        %v2708 = vstv %s2707
        %v2709 = vmul.f32 %v2708, %v1888
        %v2710 = vadd.f32 %v2706, %v2709
        %s2711 = sld [smem:[#allocation12 + $0x1e]]
        %v2712 = vstv %s2711
        %v2713 = vmul.f32 %v2712, %v1872
        %v2714 = vadd.f32 %v2710, %v2713
        %v2715 = vld [vmem:[#allocation4 + $0x1e] sm:$0x1]
        %v2716 = vlaneseq
        %v2717 = vshrl.u32 %v2716, 7
        %v2718 = vsub.s32 0, %v2717
        %v2719 = vrot.slane %v2715, %v2718
        %v2720 = vadd.f32 %v2714, %v2719
        %v2721 = vmul.f32 %v1696, %v2720
        %vm2722 = vcmp.ge.f32.partialorder %v2721, 0.0
        %v2723 = vmul.f32 %v2721, 0.05
        %v2724 = vsel %vm2722, %v2721, %v2723
        %v2725 = vmul.f32 %v1696, %v2724
        %v2726 = vsel %vm1798, %v2725, 0.0
        %2727 = vadd.xlane.f32.xlu0 %v2726
        %v2728 = vpop.xlane.xlu0 %2727
        %2729 = vset.pattern.permute.xlu0 31
        %2730 = vperm.xlu0 %2729, %v1890
        %v2731 = vpop.permute.xlu0 %2730
        %v2733 = vmul.f32 %v2731, %v1886
        %s2734 = sld [smem:[#allocation9 + $0x1f]]
        %v2735 = vstv %s2734
        %v2736 = vmul.f32 %v2735, %v1888
        %v2737 = vadd.f32 %v2733, %v2736
        %s2738 = sld [smem:[#allocation12 + $0x1f]]
        %v2739 = vstv %s2738
        %v2740 = vmul.f32 %v2739, %v1872
        %v2741 = vadd.f32 %v2737, %v2740
        %v2742 = vld [vmem:[#allocation4 + $0x1f] sm:$0x1]
        %v2743 = vlaneseq
        %v2744 = vshrl.u32 %v2743, 7
        %v2745 = vsub.s32 0, %v2744
        %v2746 = vrot.slane %v2742, %v2745
        %v2747 = vadd.f32 %v2741, %v2746
        %v2748 = vmul.f32 %v1696, %v2747
        %vm2749 = vcmp.ge.f32.partialorder %v2748, 0.0
        %v2750 = vmul.f32 %v2748, 0.05
        %v2751 = vsel %vm2749, %v2748, %v2750
        %v2752 = vmul.f32 %v1696, %v2751
        %v2753 = vsel %vm1798, %v2752, 0.0
        %2754 = vadd.xlane.f32.xlu0 %v2753
        %v2755 = vpop.xlane.xlu0 %2754
        %2756 = vset.pattern.permute.xlu0 32
        %2757 = vperm.xlu0 %2756, %v1890
        %v2758 = vpop.permute.xlu0 %2757
        %v2760 = vmul.f32 %v2758, %v1886
        %s2761 = sld [smem:[#allocation9 + $0x20]]
        %v2762 = vstv %s2761
        %v2763 = vmul.f32 %v2762, %v1888
        %v2764 = vadd.f32 %v2760, %v2763
        %s2765 = sld [smem:[#allocation12 + $0x20]]
        %v2766 = vstv %s2765
        %v2767 = vmul.f32 %v2766, %v1872
        %v2768 = vadd.f32 %v2764, %v2767
        %v2769 = vld [vmem:[#allocation4 + $0x20] sm:$0x1]
        %v2770 = vlaneseq
        %v2771 = vshrl.u32 %v2770, 7
        %v2772 = vsub.s32 0, %v2771
        %v2773 = vrot.slane %v2769, %v2772
        %v2774 = vadd.f32 %v2768, %v2773
        %v2775 = vmul.f32 %v1696, %v2774
        %vm2776 = vcmp.ge.f32.partialorder %v2775, 0.0
        %v2777 = vmul.f32 %v2775, 0.05
        %v2778 = vsel %vm2776, %v2775, %v2777
        %v2779 = vmul.f32 %v1696, %v2778
        %v2780 = vsel %vm1798, %v2779, 0.0
        %2781 = vadd.xlane.f32.xlu0 %v2780
        %v2782 = vpop.xlane.xlu0 %2781
        %2783 = vset.pattern.permute.xlu0 33
        %2784 = vperm.xlu0 %2783, %v1890
        %v2785 = vpop.permute.xlu0 %2784
        %v2787 = vmul.f32 %v2785, %v1886
        %s2788 = sld [smem:[#allocation9 + $0x21]]
        %v2789 = vstv %s2788
        %v2790 = vmul.f32 %v2789, %v1888
        %v2791 = vadd.f32 %v2787, %v2790
        %s2792 = sld [smem:[#allocation12 + $0x21]]
        %v2793 = vstv %s2792
        %v2794 = vmul.f32 %v2793, %v1872
        %v2795 = vadd.f32 %v2791, %v2794
        %v2796 = vld [vmem:[#allocation4 + $0x21] sm:$0x1]
        %v2797 = vlaneseq
        %v2798 = vshrl.u32 %v2797, 7
        %v2799 = vsub.s32 0, %v2798
        %v2800 = vrot.slane %v2796, %v2799
        %v2801 = vadd.f32 %v2795, %v2800
        %v2802 = vmul.f32 %v1696, %v2801
        %vm2803 = vcmp.ge.f32.partialorder %v2802, 0.0
        %v2804 = vmul.f32 %v2802, 0.05
        %v2805 = vsel %vm2803, %v2802, %v2804
        %v2806 = vmul.f32 %v1696, %v2805
        %v2807 = vsel %vm1798, %v2806, 0.0
        %2808 = vadd.xlane.f32.xlu0 %v2807
        %v2809 = vpop.xlane.xlu0 %2808
        %2810 = vset.pattern.permute.xlu0 34
        %2811 = vperm.xlu0 %2810, %v1890
        %v2812 = vpop.permute.xlu0 %2811
        %v2814 = vmul.f32 %v2812, %v1886
        %s2815 = sld [smem:[#allocation9 + $0x22]]
        %v2816 = vstv %s2815
        %v2817 = vmul.f32 %v2816, %v1888
        %v2818 = vadd.f32 %v2814, %v2817
        %s2819 = sld [smem:[#allocation12 + $0x22]]
        %v2820 = vstv %s2819
        %v2821 = vmul.f32 %v2820, %v1872
        %v2822 = vadd.f32 %v2818, %v2821
        %v2823 = vld [vmem:[#allocation4 + $0x22] sm:$0x1]
        %v2824 = vlaneseq
        %v2825 = vshrl.u32 %v2824, 7
        %v2826 = vsub.s32 0, %v2825
        %v2827 = vrot.slane %v2823, %v2826
        %v2828 = vadd.f32 %v2822, %v2827
        %v2829 = vmul.f32 %v1696, %v2828
        %vm2830 = vcmp.ge.f32.partialorder %v2829, 0.0
        %v2831 = vmul.f32 %v2829, 0.05
        %v2832 = vsel %vm2830, %v2829, %v2831
        %v2833 = vmul.f32 %v1696, %v2832
        %v2834 = vsel %vm1798, %v2833, 0.0
        %2835 = vadd.xlane.f32.xlu0 %v2834
        %v2836 = vpop.xlane.xlu0 %2835
        %2837 = vset.pattern.permute.xlu0 35
        %2838 = vperm.xlu0 %2837, %v1890
        %v2839 = vpop.permute.xlu0 %2838
        %v2841 = vmul.f32 %v2839, %v1886
        %s2842 = sld [smem:[#allocation9 + $0x23]]
        %v2843 = vstv %s2842
        %v2844 = vmul.f32 %v2843, %v1888
        %v2845 = vadd.f32 %v2841, %v2844
        %s2846 = sld [smem:[#allocation12 + $0x23]]
        %v2847 = vstv %s2846
        %v2848 = vmul.f32 %v2847, %v1872
        %v2849 = vadd.f32 %v2845, %v2848
        %v2850 = vld [vmem:[#allocation4 + $0x23] sm:$0x1]
        %v2851 = vlaneseq
        %v2852 = vshrl.u32 %v2851, 7
        %v2853 = vsub.s32 0, %v2852
        %v2854 = vrot.slane %v2850, %v2853
        %v2855 = vadd.f32 %v2849, %v2854
        %v2856 = vmul.f32 %v1696, %v2855
        %vm2857 = vcmp.ge.f32.partialorder %v2856, 0.0
        %v2858 = vmul.f32 %v2856, 0.05
        %v2859 = vsel %vm2857, %v2856, %v2858
        %v2860 = vmul.f32 %v1696, %v2859
        %v2861 = vsel %vm1798, %v2860, 0.0
        %2862 = vadd.xlane.f32.xlu0 %v2861
        %v2863 = vpop.xlane.xlu0 %2862
        %2864 = vset.pattern.permute.xlu0 36
        %2865 = vperm.xlu0 %2864, %v1890
        %v2866 = vpop.permute.xlu0 %2865
        %v2868 = vmul.f32 %v2866, %v1886
        %s2869 = sld [smem:[#allocation9 + $0x24]]
        %v2870 = vstv %s2869
        %v2871 = vmul.f32 %v2870, %v1888
        %v2872 = vadd.f32 %v2868, %v2871
        %s2873 = sld [smem:[#allocation12 + $0x24]]
        %v2874 = vstv %s2873
        %v2875 = vmul.f32 %v2874, %v1872
        %v2876 = vadd.f32 %v2872, %v2875
        %v2877 = vld [vmem:[#allocation4 + $0x24] sm:$0x1]
        %v2878 = vlaneseq
        %v2879 = vshrl.u32 %v2878, 7
        %v2880 = vsub.s32 0, %v2879
        %v2881 = vrot.slane %v2877, %v2880
        %v2882 = vadd.f32 %v2876, %v2881
        %v2883 = vmul.f32 %v1696, %v2882
        %vm2884 = vcmp.ge.f32.partialorder %v2883, 0.0
        %v2885 = vmul.f32 %v2883, 0.05
        %v2886 = vsel %vm2884, %v2883, %v2885
        %v2887 = vmul.f32 %v1696, %v2886
        %v2888 = vsel %vm1798, %v2887, 0.0
        %2889 = vadd.xlane.f32.xlu0 %v2888
        %v2890 = vpop.xlane.xlu0 %2889
        %2891 = vset.pattern.permute.xlu0 37
        %2892 = vperm.xlu0 %2891, %v1890
        %v2893 = vpop.permute.xlu0 %2892
        %v2895 = vmul.f32 %v2893, %v1886
        %s2896 = sld [smem:[#allocation9 + $0x25]]
        %v2897 = vstv %s2896
        %v2898 = vmul.f32 %v2897, %v1888
        %v2899 = vadd.f32 %v2895, %v2898
        %s2900 = sld [smem:[#allocation12 + $0x25]]
        %v2901 = vstv %s2900
        %v2902 = vmul.f32 %v2901, %v1872
        %v2903 = vadd.f32 %v2899, %v2902
        %v2904 = vld [vmem:[#allocation4 + $0x25] sm:$0x1]
        %v2905 = vlaneseq
        %v2906 = vshrl.u32 %v2905, 7
        %v2907 = vsub.s32 0, %v2906
        %v2908 = vrot.slane %v2904, %v2907
        %v2909 = vadd.f32 %v2903, %v2908
        %v2910 = vmul.f32 %v1696, %v2909
        %vm2911 = vcmp.ge.f32.partialorder %v2910, 0.0
        %v2912 = vmul.f32 %v2910, 0.05
        %v2913 = vsel %vm2911, %v2910, %v2912
        %v2914 = vmul.f32 %v1696, %v2913
        %v2915 = vsel %vm1798, %v2914, 0.0
        %2916 = vadd.xlane.f32.xlu0 %v2915
        %v2917 = vpop.xlane.xlu0 %2916
        %2918 = vset.pattern.permute.xlu0 38
        %2919 = vperm.xlu0 %2918, %v1890
        %v2920 = vpop.permute.xlu0 %2919
        %v2922 = vmul.f32 %v2920, %v1886
        %s2923 = sld [smem:[#allocation9 + $0x26]]
        %v2924 = vstv %s2923
        %v2925 = vmul.f32 %v2924, %v1888
        %v2926 = vadd.f32 %v2922, %v2925
        %s2927 = sld [smem:[#allocation12 + $0x26]]
        %v2928 = vstv %s2927
        %v2929 = vmul.f32 %v2928, %v1872
        %v2930 = vadd.f32 %v2926, %v2929
        %v2931 = vld [vmem:[#allocation4 + $0x26] sm:$0x1]
        %v2932 = vlaneseq
        %v2933 = vshrl.u32 %v2932, 7
        %v2934 = vsub.s32 0, %v2933
        %v2935 = vrot.slane %v2931, %v2934
        %v2936 = vadd.f32 %v2930, %v2935
        %v2937 = vmul.f32 %v1696, %v2936
        %vm2938 = vcmp.ge.f32.partialorder %v2937, 0.0
        %v2939 = vmul.f32 %v2937, 0.05
        %v2940 = vsel %vm2938, %v2937, %v2939
        %v2941 = vmul.f32 %v1696, %v2940
        %v2942 = vsel %vm1798, %v2941, 0.0
        %2943 = vadd.xlane.f32.xlu0 %v2942
        %v2944 = vpop.xlane.xlu0 %2943
        %2945 = vset.pattern.permute.xlu0 39
        %2946 = vperm.xlu0 %2945, %v1890
        %v2947 = vpop.permute.xlu0 %2946
        %v2949 = vmul.f32 %v2947, %v1886
        %s2950 = sld [smem:[#allocation9 + $0x27]]
        %v2951 = vstv %s2950
        %v2952 = vmul.f32 %v2951, %v1888
        %v2953 = vadd.f32 %v2949, %v2952
        %s2954 = sld [smem:[#allocation12 + $0x27]]
        %v2955 = vstv %s2954
        %v2956 = vmul.f32 %v2955, %v1872
        %v2957 = vadd.f32 %v2953, %v2956
        %v2958 = vld [vmem:[#allocation4 + $0x27] sm:$0x1]
        %v2959 = vlaneseq
        %v2960 = vshrl.u32 %v2959, 7
        %v2961 = vsub.s32 0, %v2960
        %v2962 = vrot.slane %v2958, %v2961
        %v2963 = vadd.f32 %v2957, %v2962
        %v2964 = vmul.f32 %v1696, %v2963
        %vm2965 = vcmp.ge.f32.partialorder %v2964, 0.0
        %v2966 = vmul.f32 %v2964, 0.05
        %v2967 = vsel %vm2965, %v2964, %v2966
        %v2968 = vmul.f32 %v1696, %v2967
        %v2969 = vsel %vm1798, %v2968, 0.0
        %2970 = vadd.xlane.f32.xlu0 %v2969
        %v2971 = vpop.xlane.xlu0 %2970
        %2972 = vset.pattern.permute.xlu0 40
        %2973 = vperm.xlu0 %2972, %v1890
        %v2974 = vpop.permute.xlu0 %2973
        %v2976 = vmul.f32 %v2974, %v1886
        %s2977 = sld [smem:[#allocation9 + $0x28]]
        %v2978 = vstv %s2977
        %v2979 = vmul.f32 %v2978, %v1888
        %v2980 = vadd.f32 %v2976, %v2979
        %s2981 = sld [smem:[#allocation12 + $0x28]]
        %v2982 = vstv %s2981
        %v2983 = vmul.f32 %v2982, %v1872
        %v2984 = vadd.f32 %v2980, %v2983
        %v2985 = vld [vmem:[#allocation4 + $0x28] sm:$0x1]
        %v2986 = vlaneseq
        %v2987 = vshrl.u32 %v2986, 7
        %v2988 = vsub.s32 0, %v2987
        %v2989 = vrot.slane %v2985, %v2988
        %v2990 = vadd.f32 %v2984, %v2989
        %v2991 = vmul.f32 %v1696, %v2990
        %vm2992 = vcmp.ge.f32.partialorder %v2991, 0.0
        %v2993 = vmul.f32 %v2991, 0.05
        %v2994 = vsel %vm2992, %v2991, %v2993
        %v2995 = vmul.f32 %v1696, %v2994
        %v2996 = vsel %vm1798, %v2995, 0.0
        %2997 = vadd.xlane.f32.xlu0 %v2996
        %v2998 = vpop.xlane.xlu0 %2997
        %2999 = vset.pattern.permute.xlu0 41
        %3000 = vperm.xlu0 %2999, %v1890
        %v3001 = vpop.permute.xlu0 %3000
        %v3003 = vmul.f32 %v3001, %v1886
        %s3004 = sld [smem:[#allocation9 + $0x29]]
        %v3005 = vstv %s3004
        %v3006 = vmul.f32 %v3005, %v1888
        %v3007 = vadd.f32 %v3003, %v3006
        %s3008 = sld [smem:[#allocation12 + $0x29]]
        %v3009 = vstv %s3008
        %v3010 = vmul.f32 %v3009, %v1872
        %v3011 = vadd.f32 %v3007, %v3010
        %v3012 = vld [vmem:[#allocation4 + $0x29] sm:$0x1]
        %v3013 = vlaneseq
        %v3014 = vshrl.u32 %v3013, 7
        %v3015 = vsub.s32 0, %v3014
        %v3016 = vrot.slane %v3012, %v3015
        %v3017 = vadd.f32 %v3011, %v3016
        %v3018 = vmul.f32 %v1696, %v3017
        %vm3019 = vcmp.ge.f32.partialorder %v3018, 0.0
        %v3020 = vmul.f32 %v3018, 0.05
        %v3021 = vsel %vm3019, %v3018, %v3020
        %v3022 = vmul.f32 %v1696, %v3021
        %v3023 = vsel %vm1798, %v3022, 0.0
        %3024 = vadd.xlane.f32.xlu0 %v3023
        %v3025 = vpop.xlane.xlu0 %3024
        %3026 = vset.pattern.permute.xlu0 42
        %3027 = vperm.xlu0 %3026, %v1890
        %v3028 = vpop.permute.xlu0 %3027
        %v3030 = vmul.f32 %v3028, %v1886
        %s3031 = sld [smem:[#allocation9 + $0x2a]]
        %v3032 = vstv %s3031
        %v3033 = vmul.f32 %v3032, %v1888
        %v3034 = vadd.f32 %v3030, %v3033
        %s3035 = sld [smem:[#allocation12 + $0x2a]]
        %v3036 = vstv %s3035
        %v3037 = vmul.f32 %v3036, %v1872
        %v3038 = vadd.f32 %v3034, %v3037
        %v3039 = vld [vmem:[#allocation4 + $0x2a] sm:$0x1]
        %v3040 = vlaneseq
        %v3041 = vshrl.u32 %v3040, 7
        %v3042 = vsub.s32 0, %v3041
        %v3043 = vrot.slane %v3039, %v3042
        %v3044 = vadd.f32 %v3038, %v3043
        %v3045 = vmul.f32 %v1696, %v3044
        %vm3046 = vcmp.ge.f32.partialorder %v3045, 0.0
        %v3047 = vmul.f32 %v3045, 0.05
        %v3048 = vsel %vm3046, %v3045, %v3047
        %v3049 = vmul.f32 %v1696, %v3048
        %v3050 = vsel %vm1798, %v3049, 0.0
        %3051 = vadd.xlane.f32.xlu0 %v3050
        %v3052 = vpop.xlane.xlu0 %3051
        %3053 = vset.pattern.permute.xlu0 43
        %3054 = vperm.xlu0 %3053, %v1890
        %v3055 = vpop.permute.xlu0 %3054
        %v3057 = vmul.f32 %v3055, %v1886
        %s3058 = sld [smem:[#allocation9 + $0x2b]]
        %v3059 = vstv %s3058
        %v3060 = vmul.f32 %v3059, %v1888
        %v3061 = vadd.f32 %v3057, %v3060
        %s3062 = sld [smem:[#allocation12 + $0x2b]]
        %v3063 = vstv %s3062
        %v3064 = vmul.f32 %v3063, %v1872
        %v3065 = vadd.f32 %v3061, %v3064
        %v3066 = vld [vmem:[#allocation4 + $0x2b] sm:$0x1]
        %v3067 = vlaneseq
        %v3068 = vshrl.u32 %v3067, 7
        %v3069 = vsub.s32 0, %v3068
        %v3070 = vrot.slane %v3066, %v3069
        %v3071 = vadd.f32 %v3065, %v3070
        %v3072 = vmul.f32 %v1696, %v3071
        %vm3073 = vcmp.ge.f32.partialorder %v3072, 0.0
        %v3074 = vmul.f32 %v3072, 0.05
        %v3075 = vsel %vm3073, %v3072, %v3074
        %v3076 = vmul.f32 %v1696, %v3075
        %v3077 = vsel %vm1798, %v3076, 0.0
        %3078 = vadd.xlane.f32.xlu0 %v3077
        %v3079 = vpop.xlane.xlu0 %3078
        %3080 = vset.pattern.permute.xlu0 44
        %3081 = vperm.xlu0 %3080, %v1890
        %v3082 = vpop.permute.xlu0 %3081
        %v3084 = vmul.f32 %v3082, %v1886
        %s3085 = sld [smem:[#allocation9 + $0x2c]]
        %v3086 = vstv %s3085
        %v3087 = vmul.f32 %v3086, %v1888
        %v3088 = vadd.f32 %v3084, %v3087
        %s3089 = sld [smem:[#allocation12 + $0x2c]]
        %v3090 = vstv %s3089
        %v3091 = vmul.f32 %v3090, %v1872
        %v3092 = vadd.f32 %v3088, %v3091
        %v3093 = vld [vmem:[#allocation4 + $0x2c] sm:$0x1]
        %v3094 = vlaneseq
        %v3095 = vshrl.u32 %v3094, 7
        %v3096 = vsub.s32 0, %v3095
        %v3097 = vrot.slane %v3093, %v3096
        %v3098 = vadd.f32 %v3092, %v3097
        %v3099 = vmul.f32 %v1696, %v3098
        %vm3100 = vcmp.ge.f32.partialorder %v3099, 0.0
        %v3101 = vmul.f32 %v3099, 0.05
        %v3102 = vsel %vm3100, %v3099, %v3101
        %v3103 = vmul.f32 %v1696, %v3102
        %v3104 = vsel %vm1798, %v3103, 0.0
        %3105 = vadd.xlane.f32.xlu0 %v3104
        %v3106 = vpop.xlane.xlu0 %3105
        %3107 = vset.pattern.permute.xlu0 45
        %3108 = vperm.xlu0 %3107, %v1890
        %v3109 = vpop.permute.xlu0 %3108
        %v3111 = vmul.f32 %v3109, %v1886
        %s3112 = sld [smem:[#allocation9 + $0x2d]]
        %v3113 = vstv %s3112
        %v3114 = vmul.f32 %v3113, %v1888
        %v3115 = vadd.f32 %v3111, %v3114
        %s3116 = sld [smem:[#allocation12 + $0x2d]]
        %v3117 = vstv %s3116
        %v3118 = vmul.f32 %v3117, %v1872
        %v3119 = vadd.f32 %v3115, %v3118
        %v3120 = vld [vmem:[#allocation4 + $0x2d] sm:$0x1]
        %v3121 = vlaneseq
        %v3122 = vshrl.u32 %v3121, 7
        %v3123 = vsub.s32 0, %v3122
        %v3124 = vrot.slane %v3120, %v3123
        %v3125 = vadd.f32 %v3119, %v3124
        %v3126 = vmul.f32 %v1696, %v3125
        %vm3127 = vcmp.ge.f32.partialorder %v3126, 0.0
        %v3128 = vmul.f32 %v3126, 0.05
        %v3129 = vsel %vm3127, %v3126, %v3128
        %v3130 = vmul.f32 %v1696, %v3129
        %v3131 = vsel %vm1798, %v3130, 0.0
        %3132 = vadd.xlane.f32.xlu0 %v3131
        %v3133 = vpop.xlane.xlu0 %3132
        %3134 = vset.pattern.permute.xlu0 46
        %3135 = vperm.xlu0 %3134, %v1890
        %v3136 = vpop.permute.xlu0 %3135
        %v3138 = vmul.f32 %v3136, %v1886
        %s3139 = sld [smem:[#allocation9 + $0x2e]]
        %v3140 = vstv %s3139
        %v3141 = vmul.f32 %v3140, %v1888
        %v3142 = vadd.f32 %v3138, %v3141
        %s3143 = sld [smem:[#allocation12 + $0x2e]]
        %v3144 = vstv %s3143
        %v3145 = vmul.f32 %v3144, %v1872
        %v3146 = vadd.f32 %v3142, %v3145
        %v3147 = vld [vmem:[#allocation4 + $0x2e] sm:$0x1]
        %v3148 = vlaneseq
        %v3149 = vshrl.u32 %v3148, 7
        %v3150 = vsub.s32 0, %v3149
        %v3151 = vrot.slane %v3147, %v3150
        %v3152 = vadd.f32 %v3146, %v3151
        %v3153 = vmul.f32 %v1696, %v3152
        %vm3154 = vcmp.ge.f32.partialorder %v3153, 0.0
        %v3155 = vmul.f32 %v3153, 0.05
        %v3156 = vsel %vm3154, %v3153, %v3155
        %v3157 = vmul.f32 %v1696, %v3156
        %v3158 = vsel %vm1798, %v3157, 0.0
        %3159 = vadd.xlane.f32.xlu0 %v3158
        %v3160 = vpop.xlane.xlu0 %3159
        %3161 = vset.pattern.permute.xlu0 47
        %3162 = vperm.xlu0 %3161, %v1890
        %v3163 = vpop.permute.xlu0 %3162
        %v3165 = vmul.f32 %v3163, %v1886
        %s3166 = sld [smem:[#allocation9 + $0x2f]]
        %v3167 = vstv %s3166
        %v3168 = vmul.f32 %v3167, %v1888
        %v3169 = vadd.f32 %v3165, %v3168
        %s3170 = sld [smem:[#allocation12 + $0x2f]]
        %v3171 = vstv %s3170
        %v3172 = vmul.f32 %v3171, %v1872
        %v3173 = vadd.f32 %v3169, %v3172
        %v3174 = vld [vmem:[#allocation4 + $0x2f] sm:$0x1]
        %v3175 = vlaneseq
        %v3176 = vshrl.u32 %v3175, 7
        %v3177 = vsub.s32 0, %v3176
        %v3178 = vrot.slane %v3174, %v3177
        %v3179 = vadd.f32 %v3173, %v3178
        %v3180 = vmul.f32 %v1696, %v3179
        %vm3181 = vcmp.ge.f32.partialorder %v3180, 0.0
        %v3182 = vmul.f32 %v3180, 0.05
        %v3183 = vsel %vm3181, %v3180, %v3182
        %v3184 = vmul.f32 %v1696, %v3183
        %v3185 = vsel %vm1798, %v3184, 0.0
        %3186 = vadd.xlane.f32.xlu0 %v3185
        %v3187 = vpop.xlane.xlu0 %3186
        %3188 = vset.pattern.permute.xlu0 48
        %3189 = vperm.xlu0 %3188, %v1890
        %v3190 = vpop.permute.xlu0 %3189
        %v3192 = vmul.f32 %v3190, %v1886
        %s3193 = sld [smem:[#allocation9 + $0x30]]
        %v3194 = vstv %s3193
        %v3195 = vmul.f32 %v3194, %v1888
        %v3196 = vadd.f32 %v3192, %v3195
        %s3197 = sld [smem:[#allocation12 + $0x30]]
        %v3198 = vstv %s3197
        %v3199 = vmul.f32 %v3198, %v1872
        %v3200 = vadd.f32 %v3196, %v3199
        %v3201 = vld [vmem:[#allocation4 + $0x30] sm:$0x1]
        %v3202 = vlaneseq
        %v3203 = vshrl.u32 %v3202, 7
        %v3204 = vsub.s32 0, %v3203
        %v3205 = vrot.slane %v3201, %v3204
        %v3206 = vadd.f32 %v3200, %v3205
        %v3207 = vmul.f32 %v1696, %v3206
        %vm3208 = vcmp.ge.f32.partialorder %v3207, 0.0
        %v3209 = vmul.f32 %v3207, 0.05
        %v3210 = vsel %vm3208, %v3207, %v3209
        %v3211 = vmul.f32 %v1696, %v3210
        %v3212 = vsel %vm1798, %v3211, 0.0
        %3213 = vadd.xlane.f32.xlu0 %v3212
        %v3214 = vpop.xlane.xlu0 %3213
        %3215 = vset.pattern.permute.xlu0 49
        %3216 = vperm.xlu0 %3215, %v1890
        %v3217 = vpop.permute.xlu0 %3216
        %v3219 = vmul.f32 %v3217, %v1886
        %s3220 = sld [smem:[#allocation9 + $0x31]]
        %v3221 = vstv %s3220
        %v3222 = vmul.f32 %v3221, %v1888
        %v3223 = vadd.f32 %v3219, %v3222
        %s3224 = sld [smem:[#allocation12 + $0x31]]
        %v3225 = vstv %s3224
        %v3226 = vmul.f32 %v3225, %v1872
        %v3227 = vadd.f32 %v3223, %v3226
        %v3228 = vld [vmem:[#allocation4 + $0x31] sm:$0x1]
        %v3229 = vlaneseq
        %v3230 = vshrl.u32 %v3229, 7
        %v3231 = vsub.s32 0, %v3230
        %v3232 = vrot.slane %v3228, %v3231
        %v3233 = vadd.f32 %v3227, %v3232
        %v3234 = vmul.f32 %v1696, %v3233
        %vm3235 = vcmp.ge.f32.partialorder %v3234, 0.0
        %v3236 = vmul.f32 %v3234, 0.05
        %v3237 = vsel %vm3235, %v3234, %v3236
        %v3238 = vmul.f32 %v1696, %v3237
        %v3239 = vsel %vm1798, %v3238, 0.0
        %3240 = vadd.xlane.f32.xlu0 %v3239
        %v3241 = vpop.xlane.xlu0 %3240
        %vm3242 = vcmask 7168
        %v3243 = vsel %vm3242, %v1918, %v1945
        %vm3244 = vcmask 15360
        %v3245 = vsel %vm3244, %v3243, %v1972
        %vm3246 = vcmask 23552
        %v3247 = vsel %vm3246, %v3245, %v1999
        %v3248 = vsel %vm1699, %v3247, %v2026
        %vm3249 = vcmask 39936
        %v3250 = vsel %vm3249, %v3248, %v2053
        %vm3251 = vcmask 48128
        %v3252 = vsel %vm3251, %v3250, %v2080
        %vm3253 = vcmask 56320
        %v3254 = vsel %vm3253, %v3252, %v2107
        %v3255 = vsel %vm1798, %v3254, %v2134
        %vm3256 = vcmask 72704
        %v3257 = vsel %vm3256, %v3255, %v2161
        %vm3258 = vcmask 80896
        %v3259 = vsel %vm3258, %v3257, %v2188
        %vm3260 = vcmask 89088
        %v3261 = vsel %vm3260, %v3259, %v2215
        %vm3262 = vcmask 97280
        %v3263 = vsel %vm3262, %v3261, %v2242
        %vm3264 = vcmask 105472
        %v3265 = vsel %vm3264, %v3263, %v2269
        %vm3266 = vcmask 113664
        %v3267 = vsel %vm3266, %v3265, %v2296
        %vm3268 = vcmask 121856
        %v3269 = vsel %vm3268, %v3267, %v2323
        %v3270 = vsel %vm3242, %v2350, %v2377
        %v3271 = vsel %vm3244, %v3270, %v2404
        %v3272 = vsel %vm3246, %v3271, %v2431
        %v3273 = vsel %vm1699, %v3272, %v2458
        %v3274 = vsel %vm3249, %v3273, %v2485
        %v3275 = vsel %vm3251, %v3274, %v2512
        %v3276 = vsel %vm3253, %v3275, %v2539
        %v3277 = vsel %vm1798, %v3276, %v2566
        %v3278 = vsel %vm3256, %v3277, %v2593
        %v3279 = vsel %vm3258, %v3278, %v2620
        %v3280 = vsel %vm3260, %v3279, %v2647
        %v3281 = vsel %vm3262, %v3280, %v2674
        %v3282 = vsel %vm3264, %v3281, %v2701
        %v3283 = vsel %vm3266, %v3282, %v2728
        %v3284 = vsel %vm3268, %v3283, %v2755
        %v3285 = vsel %vm3242, %v2782, %v2809
        %v3286 = vsel %vm3244, %v3285, %v2836
        %v3287 = vsel %vm3246, %v3286, %v2863
        %v3288 = vsel %vm1699, %v3287, %v2890
        %v3289 = vsel %vm3249, %v3288, %v2917
        %v3290 = vsel %vm3251, %v3289, %v2944
        %v3291 = vsel %vm3253, %v3290, %v2971
        %v3292 = vsel %vm1798, %v3291, %v2998
        %v3293 = vsel %vm3256, %v3292, %v3025
        %v3294 = vsel %vm3258, %v3293, %v3052
        %v3295 = vsel %vm3260, %v3294, %v3079
        %v3296 = vsel %vm3262, %v3295, %v3106
        %v3297 = vsel %vm3264, %v3296, %v3133
        %v3298 = vsel %vm3266, %v3297, %v3160
        %v3299 = vsel %vm3268, %v3298, %v3187
        %v3300 = vsel %vm3242, %v3214, %v3241
        %3302 = vrot.lane.b32.xlu0 %v3284, 16
        %v3303 = vpop.permute.xlu0 %3302
        %3306 = vrot.lane.b32.xlu0 %v3299, 32
        %v3307 = vpop.permute.xlu0 %3306
        %3310 = vrot.lane.b32.xlu0 %v3300, 48
        %v3311 = vpop.permute.xlu0 %3310
        %vm3313 = vcmask 130048
        %v3314 = vsel %vm3313, %v3269, %v3303
        %vm3315 = vcmask 261120
        %v3316 = vsel %vm3315, %v3314, %v3307
        %vm3317 = vcmask 392192
        %v3318 = vsel %vm3317, %v3316, %v3311
        %s3319 = scalar_lea.vmem [#allocation6], %s1690
        %v3320 = vld [vmem:[%s3319] sm:$0xff]
        %v3321 = vmul.f32 %v1877, %v3320
        %s3322 = scalar_lea.vmem [#allocation8], %s1690
        %v3323 = vld [vmem:[%s3322] sm:$0xff]
        %v3324 = vadd.f32 %v3321, %v3323
        %v3325 = vld [vmem:[%s11] sm:$0x1]
        %v3327 = vlaneseq
        %v3328 = vshrl.u32 %v3327, 7
        %v3329 = vsub.s32 0, %v3328
        %v3330 = vrot.slane %v3325, %v3329
        %v3332 = vmul.f32 %v1881, %v3330
        %v3333 = vadd.f32 %v3324, %v3332
        %v3334 = vld [vmem:[%s12] sm:$0xff]
        %v3335 = vld [vmem:[%s12 + $0x8] sm:$0xff]
        %v3336 = vld [vmem:[%s12 + $0x10] sm:$0xff]
        %v3337 = vld [vmem:[%s12 + $0x18] sm:$0xff]
        %v3338 = vld [vmem:[%s12 + $0x20] sm:$0xff]
        %v3339 = vld [vmem:[%s12 + $0x28] sm:$0xff]
        %v3340 = vld [vmem:[%s12 + $0x30] sm:$0x3]
        %vm3341 = vcmask 408576
        %v3343 = vsel %vm3341, %v3318, 0
        %vm3345 = vcmask 1041408
        %v3347 = vsel %vm3345, %v3340, 0
        %3349 = vmatprep.subr.mxu0 0.0
        %3350 = vmatpush1.msra.mxu0 0.0
        %3351 = vmatprep.subr.mxu0 0.0
        %3352 = vmatpush1.msra.mxu0 0.0
        %3353 = vmatprep.subr.mxu0 0.0
        %3354 = vmatpush1.msra.mxu0 0.0
        %3355 = vmatprep.subr.mxu0 0.0
        %3356 = vmatpush1.msra.mxu0 0.0
        %3357 = vmatprep.subr.mxu0 0.0
        %3358 = vmatpush1.msra.mxu0 0.0
        %3359 = vmatprep.subr.mxu0 0.0
        %3360 = vmatpush1.msra.mxu0 0.0
        %3361 = vmatprep.subr.mxu0 0.0
        %3362 = vmatpush1.msra.mxu0 0.0
        %3363 = vmatprep.subr.mxu0 0.0
        %3364 = vmatpush1.msra.mxu0 0.0
        %3365 = vmatprep.subr.mxu0 0.0
        %3366 = vmatpush1.msra.mxu0 0.0
        %3367 = vmatprep.subr.mxu0 0.0
        %3368 = vmatpush1.msra.mxu0 %v3347
        %3369 = vmatprep.subr.mxu0 0.0
        %3370 = vmatpush1.msra.mxu0 %v3339
        %3371 = vmatprep.subr.mxu0 0.0
        %3372 = vmatpush1.msra.mxu0 %v3338
        %3373 = vmatprep.subr.mxu0 0.0
        %3374 = vmatpush1.msra.mxu0 %v3337
        %3375 = vmatprep.subr.mxu0 0.0
        %3376 = vmatpush1.msra.mxu0 %v3336
        %3377 = vmatprep.subr.mxu0 0.0
        %3378 = vmatpush1.msra.mxu0 %v3335
        %3379 = vmatprep.subr.mxu0 0.0
        %3380 = vmatpush1.msra.mxu0 %v3334
        %3381 = vmatprep.subr.mxu0 0.0
        %3382 = vmatpush2.msra.mxu0 0.0
        %3383 = vmatprep.subr.mxu0 0.0
        %3384 = vmatpush2.msra.mxu0 0.0
        %3385 = vmatprep.subr.mxu0 0.0
        %3386 = vmatpush2.msra.mxu0 0.0
        %3387 = vmatprep.subr.mxu0 0.0
        %3388 = vmatpush2.msra.mxu0 0.0
        %3389 = vmatprep.subr.mxu0 0.0
        %3390 = vmatpush2.msra.mxu0 0.0
        %3391 = vmatprep.subr.mxu0 0.0
        %3392 = vmatpush2.msra.mxu0 0.0
        %3393 = vmatprep.subr.mxu0 0.0
        %3394 = vmatpush2.msra.mxu0 0.0
        %3395 = vmatprep.subr.mxu0 0.0
        %3396 = vmatpush2.msra.mxu0 0.0
        %3397 = vmatprep.subr.mxu0 0.0
        %3398 = vmatpush2.msra.mxu0 0.0
        %3399 = vmatprep.subr.mxu0 0.0
        %3400 = vmatpush2.msra.mxu0 0.0
        %3401 = vmatprep.subr.mxu0 0.0
        %3402 = vmatpush2.msra.mxu0 0.0
        %3403 = vmatprep.subr.mxu0 0.0
        %3404 = vmatpush2.msra.mxu0 0.0
        %3405 = vmatprep.subr.mxu0 0.0
        %3406 = vmatpush2.msra.mxu0 0.0
        %3407 = vmatprep.subr.mxu0 0.0
        %3408 = vmatpush2.msra.mxu0 0.0
        %3409 = vmatprep.subr.mxu0 0.0
        %3410 = vmatpush2.msra.mxu0 0.0
        %3411 = vmatprep.subr.mxu0 0.0
        %3412 = vmatpush2.msra.mxu0 0.0
        %3413 = vmatprep.mubr.f32.mxu0 0.0
        %3414 = vmatmul.mubr.f32.gmra.mxu0 %v3343
        %v3415 = vpop.f32.mrf.mxu0
        %v3416 = vadd.f32 0.0, %v3415
        %v3417 = vpop.f32.mrf.mxu0
        %3418 = vdwg.mxu0
        %v3419 = vadd.f32 %v3333, %v3416
        %v3420 = vld [vmem:[%s13] sm:$0x1]
        %v3422 = vlaneseq
        %v3423 = vshrl.u32 %v3422, 7
        %v3424 = vsub.s32 0, %v3423
        %v3425 = vrot.slane %v3420, %v3424
        %v3427 = vmul.f32 %v1877, %v3425
        %v3428 = vadd.f32 %v3419, %v3427
        %vm3429 = vcmp.ge.f32.partialorder %v3428, 0.0
        %v3430 = vmul.f32 %v3428, 0.05
        %v3431 = vsel %vm3429, %v3428, %v3430
        %s3432 = scalar_lea.vmem [#allocation7], %s1690
        %v3433 = vld [vmem:[%s3432] sm:$0xff]
        %v3434 = vld [vmem:[%s15] sm:$0xff]
        %v3435 = vld [vmem:[%s15 + $0x8] sm:$0xff]
        %v3436 = vld [vmem:[%s15 + $0x10] sm:$0xff]
        %v3437 = vld [vmem:[%s15 + $0x18] sm:$0xff]
        %v3438 = vld [vmem:[%s15 + $0x20] sm:$0xff]
        %v3439 = vld [vmem:[%s15 + $0x28] sm:$0xff]
        %v3440 = vld [vmem:[%s15 + $0x30] sm:$0x3]
        %v3442 = vsel %vm3341, %v3431, 0
        %v3445 = vsel %vm3345, %v3440, 0
        %3447 = vmatprep.subr.mxu0 0.0
        %3448 = vmatpush1.msra.mxu0 0.0
        %3449 = vmatprep.subr.mxu0 0.0
        %3450 = vmatpush1.msra.mxu0 0.0
        %3451 = vmatprep.subr.mxu0 0.0
        %3452 = vmatpush1.msra.mxu0 0.0
        %3453 = vmatprep.subr.mxu0 0.0
        %3454 = vmatpush1.msra.mxu0 0.0
        %3455 = vmatprep.subr.mxu0 0.0
        %3456 = vmatpush1.msra.mxu0 0.0
        %3457 = vmatprep.subr.mxu0 0.0
        %3458 = vmatpush1.msra.mxu0 0.0
        %3459 = vmatprep.subr.mxu0 0.0
        %3460 = vmatpush1.msra.mxu0 0.0
        %3461 = vmatprep.subr.mxu0 0.0
        %3462 = vmatpush1.msra.mxu0 0.0
        %3463 = vmatprep.subr.mxu0 0.0
        %3464 = vmatpush1.msra.mxu0 0.0
        %3465 = vmatprep.subr.mxu0 0.0
        %3466 = vmatpush1.msra.mxu0 %v3445
        %3467 = vmatprep.subr.mxu0 0.0
        %3468 = vmatpush1.msra.mxu0 %v3439
        %3469 = vmatprep.subr.mxu0 0.0
        %3470 = vmatpush1.msra.mxu0 %v3438
        %3471 = vmatprep.subr.mxu0 0.0
        %3472 = vmatpush1.msra.mxu0 %v3437
        %3473 = vmatprep.subr.mxu0 0.0
        %3474 = vmatpush1.msra.mxu0 %v3436
        %3475 = vmatprep.subr.mxu0 0.0
        %3476 = vmatpush1.msra.mxu0 %v3435
        %3477 = vmatprep.subr.mxu0 0.0
        %3478 = vmatpush1.msra.mxu0 %v3434
        %3479 = vmatprep.subr.mxu0 0.0
        %3480 = vmatpush2.msra.mxu0 0.0
        %3481 = vmatprep.subr.mxu0 0.0
        %3482 = vmatpush2.msra.mxu0 0.0
        %3483 = vmatprep.subr.mxu0 0.0
        %3484 = vmatpush2.msra.mxu0 0.0
        %3485 = vmatprep.subr.mxu0 0.0
        %3486 = vmatpush2.msra.mxu0 0.0
        %3487 = vmatprep.subr.mxu0 0.0
        %3488 = vmatpush2.msra.mxu0 0.0
        %3489 = vmatprep.subr.mxu0 0.0
        %3490 = vmatpush2.msra.mxu0 0.0
        %3491 = vmatprep.subr.mxu0 0.0
        %3492 = vmatpush2.msra.mxu0 0.0
        %3493 = vmatprep.subr.mxu0 0.0
        %3494 = vmatpush2.msra.mxu0 0.0
        %3495 = vmatprep.subr.mxu0 0.0
        %3496 = vmatpush2.msra.mxu0 0.0
        %3497 = vmatprep.subr.mxu0 0.0
        %3498 = vmatpush2.msra.mxu0 0.0
        %3499 = vmatprep.subr.mxu0 0.0
        %3500 = vmatpush2.msra.mxu0 0.0
        %3501 = vmatprep.subr.mxu0 0.0
        %3502 = vmatpush2.msra.mxu0 0.0
        %3503 = vmatprep.subr.mxu0 0.0
        %3504 = vmatpush2.msra.mxu0 0.0
        %3505 = vmatprep.subr.mxu0 0.0
        %3506 = vmatpush2.msra.mxu0 0.0
        %3507 = vmatprep.subr.mxu0 0.0
        %3508 = vmatpush2.msra.mxu0 0.0
        %3509 = vmatprep.subr.mxu0 0.0
        %3510 = vmatpush2.msra.mxu0 0.0
        %3511 = vmatprep.mubr.f32.mxu0 0.0
        %3512 = vmatmul.mubr.f32.gmra.mxu0 %v3442
        %v3513 = vpop.f32.mrf.mxu0
        %v3514 = vadd.f32 0.0, %v3513
        %v3515 = vpop.f32.mrf.mxu0
        %3516 = vdwg.mxu0
        %v3517 = vadd.f32 %v3433, %v3514
        %v3518 = vld [vmem:[%s16] sm:$0x1]
        %v3520 = vlaneseq
        %v3521 = vshrl.u32 %v3520, 7
        %v3522 = vsub.s32 0, %v3521
        %v3523 = vrot.slane %v3518, %v3522
        %v3525 = vadd.f32 %v3517, %v3523
        %vm3526 = vcmp.ge.f32.partialorder %v3525, 0.0
        %v3527 = vmul.f32 %v3525, 0.05
        %v3528 = vsel %vm3526, %v3525, %v3527
        %3529 = vst [vmem:[%s593] sm:$0xff] %v3528
        %s3530 = sand.u32 %s422, 1
        %s3531 = scalar_lea.sflag [#allocation10], %s3530
        %s3532 = sand.u32 %s422, 1
        %s3533 = smul.addr %s3532, 8
        %s3534 = scalar_lea.vmem [#allocation14], %s3533
        // Predicated region
        $region101: #{spatial_graph_conv.1} parent=87 // pred_check
          %p3535 = pneg %p432
        $region102: #{spatial_graph_conv.1} parent=87 // pred_check_branch
          %3537 = sbr.rel (%p3535) target = $region104
        $region103: #{spatial_graph_conv.1} parent=87 // pred_region
          %s3539 = ssub.s32 128, 128
          %3540 = vsyncadd %s3531, %s3539
          %s3541 = sadd.s32 %s38, %s37
          %s3542 = smul.addr %s3541, 128
          %s3543 = scalar_lea.hbm %s17, %s3542
          %s3545 = sshll.u32 %s3534, 4
          %s3546 = int_to_ptr.vmem [resolvable:$true] %s3545
          %3548 = dma.vmem_to_hbm [thread:$0]  %s3546, 128, %s3543, %s3531
        $region104: #{spatial_graph_conv.1} parent=87 // pred_fallthru
          _
      $region88: #{spatial_graph_conv.1} parent=5 // pred_fallthru
        _
      %p3549 = scmp.le.s32.totalorder 2, %s28
      // Predicated region
      $region105: #{spatial_graph_conv.1} parent=5 // pred_check
        %p3550 = pneg %p3549
      $region106: #{spatial_graph_conv.1} parent=5 // pred_check_branch
        %3552 = sbr.rel (%p3550) target = $region108
      $region107: #{spatial_graph_conv.1} parent=5 // pred_region
        %s3553 = ssub.s32 %s28, 2
        // Predicated region
        $region109: #{spatial_graph_conv.1} parent=107 // pred_check
          %p3554 = pneg %p438
        $region110: #{spatial_graph_conv.1} parent=107 // pred_check_branch
          %3556 = sbr.rel (%p3554) target = $region112
        $region111: #{spatial_graph_conv.1} parent=107 // pred_region
          %s3557 = sand.u32 %s423, 1
          %s3558 = scalar_lea.sflag [#allocation10], %s3557
          %s3559 = sand.u32 %s423, 1
          %s3560 = smul.addr %s3559, 8
          %s3561 = scalar_lea.vmem [#allocation14], %s3560
          %3562 = dma.done %s3558, 128
        $region112: #{spatial_graph_conv.1} parent=107 // pred_fallthru
          _
      $region108: #{spatial_graph_conv.1} parent=5 // pred_fallthru
        _
    $region6: #{spatial_graph_conv.1} parent=1 // loop_footer
      %s32 = sadd.s32 1, %s28
    $region7: #{spatial_graph_conv.1} parent=1 // loop_footer_branch
      %27 = sbr.rel target = $region3
    $region8: #{spatial_graph_conv.1} parent=1 // loop_exit
      _
    %3563 = vsyncpa [#allocation10], 1
    %s3564 = scalar_lea.sflag [#allocation10], 1
    %3565 = vsyncpa %s3564, 1
    %3566 = vsyncpa [#allocation11], 1
    %s3567 = scalar_lea.sflag [#allocation11], 1
    %3568 = vsyncpa %s3567, 1
    %3569 = vsyncpa [#allocation13], 1

</llo_original>
